<compile_context>
chip_gen: v6e
topology: v6e:2x2x1
jax: 0.10.0
libtpu: 0.0.40
codegen_flags: <defaults>
</compile_context>

<pallas_src>
import numpy as np
import jax
import jax.numpy as jnp
from jax import lax
from jax.experimental import pallas as pl
from jax.experimental.pallas import tpu as pltpu  # noqa: F401

# ------------------------------ config ---------------------------------------
SEQ_LEN = 8
NUM_BLOCKS = 2
VOCAB = 32
H = 4
D_MODEL = 32
D_K = D_MODEL // H
D_V = D_MODEL // H
FF_HIDDEN = 4 * D_MODEL          # 128
MLP_HIDDEN = 64
LN_EPS = 1e-5
BATCH = 2
N_ROWS = BATCH * SEQ_LEN         # 16 flattened (B*L) rows
HN = H * N_ROWS                  # 64 = heads stacked along lanes
LANE = 128                       # lane-dense pad width for 128-lane slab / output

# ---- packed-slab row offsets (shared by pack function and kernel) ----
# f32, 32-lane slab
W32_TOKEMB = 0
W32_POS = W32_TOKEMB + VOCAB                         # 32
W32_BLK = W32_POS + N_ROWS                           # 48
W32_BLK_STRIDE = D_MODEL + FF_HIDDEN                 # 160 (W_o, FFN W2)
W32_ROWS = W32_BLK + NUM_BLOCKS * W32_BLK_STRIDE     # 368

# bf16, 128-lane slab
W128_BLK_STRIDE = 2 * D_MODEL                        # 64 (W_qkv padded, FFN W1)
W128_MLP_W1 = NUM_BLOCKS * W128_BLK_STRIDE           # 128
W128_MLP_W2 = W128_MLP_W1 + D_MODEL                  # 160
W128_ROWS = W128_MLP_W2 + LANE                       # 288

# f32 bias slab: 8 rows per block + 2 MLP-head rows
BIAS_PER_BLK = 8
BIAS_MLP = NUM_BLOCKS * BIAS_PER_BLK                 # 16
BIAS_ROWS = BIAS_MLP + 2                             # 18

# f32 constants slab (HN = 64 lanes)
MSK_AMASK = 0                                        # (N_ROWS, HN) additive causal
MSK_VMASK = MSK_AMASK + N_ROWS                       # (HN, D_MODEL) 0/1 head blocks
MSK_SUMBD = MSK_VMASK + HN                           # (HN, HN) block-diag ones
MSK_ROWS = MSK_SUMBD + HN                            # 144


# ------------------------------ kernel ----------------------------------------
def _bf16_dot(a, b):
    # bf16 MXU operands, f32 accumulation.
    return jnp.dot(a.astype(jnp.bfloat16), b.astype(jnp.bfloat16),
                   preferred_element_type=jnp.float32)


def _layernorm(x, gamma, beta):
    # f32 elementwise (v5e-safe).  var = E[x^2] - E[x]^2 so the two cross-lane
    # reductions issue back-to-back.
    mu = jnp.mean(x, axis=-1, keepdims=True)
    ms = jnp.mean(x * x, axis=-1, keepdims=True)
    var = ms - mu * mu
    return (x - mu) * lax.rsqrt(var + LN_EPS) * gamma + beta


def gpt_fused_kernel(tok_ref, w32_ref, w128_ref, bias_ref, msk_ref, out_ref):
    N = N_ROWS
    D = D_MODEL

    # packed constants
    amask = msk_ref[MSK_AMASK:MSK_AMASK + N, :]            # (16, 64) 0 / -1e30
    vmask = msk_ref[MSK_VMASK:MSK_VMASK + HN, 0:D]         # (64, 32) 0/1 head blocks
    sumbd = msk_ref[MSK_SUMBD:MSK_SUMBD + HN, :]           # (64, 64) block-diag ones

    # ---- TextEmbedding: one-hot matmul gather (HIGHEST => f32-accurate) + pos ----
    tok = tok_ref[...]                                                      # (16,1) i32
    onehot = (tok == lax.broadcasted_iota(jnp.int32, (N, VOCAB), 1)).astype(jnp.float32)
    x = jnp.dot(onehot, w32_ref[W32_TOKEMB:W32_TOKEMB + VOCAB, :],
                precision=lax.Precision.HIGHEST,
                preferred_element_type=jnp.float32)
    x = x + w32_ref[W32_POS:W32_POS + N, :]                                 # (16, 32)

    # ---- NUM_BLOCKS post-LN encoder blocks ----
    for blk in range(NUM_BLOCKS):
        r32 = W32_BLK + blk * W32_BLK_STRIDE
        r128 = blk * W128_BLK_STRIDE
        br = blk * BIAS_PER_BLK

        wqkv = w128_ref[r128:r128 + D, :]                    # (32,128) bf16 (scale folded)
        ffw1 = w128_ref[r128 + D:r128 + 2 * D, :]            # (32,128) bf16
        wo = w32_ref[r32:r32 + D, :]                         # (32,32)  f32
        ffw2 = w32_ref[r32 + D:r32 + D + FF_HIDDEN, :]       # (128,32) f32

        bqkv = bias_ref[br + 0:br + 1, :]                    # (1,128)
        b_o = bias_ref[br + 1:br + 2, 0:D]
        g1 = bias_ref[br + 2:br + 3, 0:D]
        be1 = bias_ref[br + 3:br + 4, 0:D]
        fb1 = bias_ref[br + 4:br + 5, :]                     # (1,128)
        fb2 = bias_ref[br + 5:br + 6, 0:D]
        g2 = bias_ref[br + 6:br + 7, 0:D]
        be2 = bias_ref[br + 7:br + 8, 0:D]

        # fused Q/K/V projection: one (16,32)x(32,128) MXU push
        qkv = _bf16_dot(x, wqkv) + bqkv                      # (16,128); lanes 96:128 = 0
        q = qkv[:, 0:D]                                      # (16,32), already 1/sqrt(dk)-scaled
        k = qkv[:, D:2 * D]
        v = qkv[:, 2 * D:3 * D]

        # all heads at once via block-diagonal K / V stacks
        k_bd = jnp.concatenate([k] * H, axis=0) * vmask      # (64,32)
        v_bd = jnp.concatenate([v] * H, axis=0) * vmask      # (64,32)

        # scores: q @ K_stack^T (contract last dims; no explicit transpose)
        s = lax.dot_general(q.astype(jnp.bfloat16), k_bd.astype(jnp.bfloat16),
                            (((1,), (1,)), ((), ())),
                            preferred_element_type=jnp.float32)             # (16,64)
        s = s + amask                                        # additive causal+batch mask

        # softmax per 16-lane head block; a single full-row max is a valid stabilizer
        # for every block (scores here are tiny, so no cross-head underflow risk).
        m = jnp.max(s, axis=-1, keepdims=True)
        e = jnp.exp(s - m)                                   # masked lanes -> exactly 0
        denom = jnp.dot(e, sumbd, precision=lax.Precision.HIGHEST,
                        preferred_element_type=jnp.float32)  # per-head sums, broadcast
        p = e * pl.reciprocal(denom, approx=True)            # (16,64)

        attn = _bf16_dot(p, v_bd)                            # (16,32): PV, heads re-merged
        attn = _bf16_dot(attn, wo) + b_o                     # output projection

        # residual + LN, FFN (ReLU), residual + LN  (post-LN block)
        y = _layernorm(x + attn, g1, be1)
        h1 = jnp.maximum(_bf16_dot(y, ffw1) + fb1, 0.0)      # (16,128)
        ff = _bf16_dot(h1, ffw2) + fb2                       # (16,32)
        x = _layernorm(y + ff, g2, be2)

    # ---- MLP head: Linear -> ReLU -> Linear, lane-dense (16,128) store ----
    w1 = w128_ref[W128_MLP_W1:W128_MLP_W1 + D, :]            # (32,128) bf16 (padded)
    w2 = w128_ref[W128_MLP_W2:W128_MLP_W2 + LANE, :]         # (128,128) bf16 (padded)
    b1 = bias_ref[BIAS_MLP:BIAS_MLP + 1, :]
    b2 = bias_ref[BIAS_MLP + 1:BIAS_MLP + 2, :]
    h = jnp.maximum(_bf16_dot(x, w1) + b1, 0.0)              # (16,128)
    out_ref[...] = _bf16_dot(h, w2) + b2                     # (16,128), unmasked store


# ------------------------------ parameters ------------------------------------
def init_gpt_params(key):
    keys = iter(jax.random.split(key, 64))

    def dense(fan_in, fan_out):
        return jax.random.normal(next(keys), (fan_in, fan_out), jnp.float32) * 0.02

    params = {
        'tok_emb': jax.random.normal(next(keys), (VOCAB, D_MODEL), jnp.float32) * 0.02,
        'pos_emb': jax.random.normal(next(keys), (SEQ_LEN, D_MODEL), jnp.float32) * 0.02,
        'blocks': [],
    }
    for _ in range(NUM_BLOCKS):
        params['blocks'].append(dict(
            wq=dense(D_MODEL, H * D_K), bq=jnp.zeros((1, H * D_K), jnp.float32),
            wk=dense(D_MODEL, H * D_K), bk=jnp.zeros((1, H * D_K), jnp.float32),
            wv=dense(D_MODEL, H * D_V), bv=jnp.zeros((1, H * D_V), jnp.float32),
            wo=dense(H * D_V, D_MODEL), bo=jnp.zeros((1, D_MODEL), jnp.float32),
            ln1_g=jnp.ones((1, D_MODEL), jnp.float32), ln1_b=jnp.zeros((1, D_MODEL), jnp.float32),
            ff_w1=dense(D_MODEL, FF_HIDDEN), ff_b1=jnp.zeros((1, FF_HIDDEN), jnp.float32),
            ff_w2=dense(FF_HIDDEN, D_MODEL), ff_b2=jnp.zeros((1, D_MODEL), jnp.float32),
            ln2_g=jnp.ones((1, D_MODEL), jnp.float32), ln2_b=jnp.zeros((1, D_MODEL), jnp.float32),
        ))
    params['mlp'] = dict(
        w1=dense(D_MODEL, MLP_HIDDEN), b1=jnp.zeros((1, MLP_HIDDEN), jnp.float32),
        w2=dense(MLP_HIDDEN, VOCAB), b2=jnp.zeros((1, VOCAB), jnp.float32),
    )
    return params


def pack_gpt_params(params, batch_size):
    """One-time packing of all parameters + constants into 4 slabs (done at init)."""
    assert batch_size * SEQ_LEN == N_ROWS
    scale = jnp.float32(1.0 / (D_K ** 0.5))

    def pad_lanes(w, lanes=LANE):
        return jnp.pad(w, ((0, 0), (0, lanes - w.shape[1])))

    # ---- f32 32-lane slab: tok_emb | pos (pre-tiled over batch) | per-block W_o, FFN W2
    pos_tiled = jnp.concatenate([params['pos_emb']] * batch_size, axis=0)    # (N,32)
    w32_parts = [params['tok_emb'], pos_tiled]
    for blk in params['blocks']:
        w32_parts += [blk['wo'], blk['ff_w2']]
    w32 = jnp.concatenate(w32_parts, axis=0).astype(jnp.float32)
    assert w32.shape == (W32_ROWS, D_MODEL)

    # ---- bf16 128-lane slab: per-block [W_qkv (scale folded) | FFN W1], MLP W1, MLP W2
    w128_parts = []
    for blk in params['blocks']:
        wqkv = jnp.concatenate([blk['wq'] * scale, blk['wk'], blk['wv']], axis=1)  # (32,96)
        w128_parts += [pad_lanes(wqkv), pad_lanes(blk['ff_w1'])]
    w128_parts.append(pad_lanes(params['mlp']['w1']))                        # (32,128)
    w2p = jnp.pad(params['mlp']['w2'],
                  ((0, LANE - MLP_HIDDEN), (0, LANE - VOCAB)))               # (128,128)
    w128_parts.append(w2p)
    w128 = jnp.concatenate(w128_parts, axis=0).astype(jnp.bfloat16)
    assert w128.shape == (W128_ROWS, LANE)

    # ---- f32 bias/LN slab, one 128-lane row per vector
    bias_rows = []
    for blk in params['blocks']:
        bqkv = jnp.concatenate([blk['bq'] * scale, blk['bk'], blk['bv']], axis=1)
        for r in (bqkv, blk['bo'], blk['ln1_g'], blk['ln1_b'],
                  blk['ff_b1'], blk['ff_b2'], blk['ln2_g'], blk['ln2_b']):
            bias_rows.append(pad_lanes(r))
    bias_rows.append(pad_lanes(params['mlp']['b1']))
    bias_rows.append(pad_lanes(params['mlp']['b2']))
    biases = jnp.concatenate(bias_rows, axis=0).astype(jnp.float32)
    assert biases.shape == (BIAS_ROWS, LANE)

    # ---- f32 constants slab (64 lanes): additive causal mask, head mask, seg-sum ones
    N = N_ROWS
    i = np.arange(N)[:, None]
    j = np.arange(HN)[None, :] % N
    valid = ((i // SEQ_LEN) == (j // SEQ_LEN)) & (j <= i)
    amask = np.where(valid, 0.0, -1e30).astype(np.float32)                   # (16,64)

    hr = np.arange(HN)[:, None] // N
    dcol = np.arange(D_MODEL)[None, :] // D_K
    vmask = (hr == dcol).astype(np.float32)                                  # (64,32)
    vmask_p = np.pad(vmask, ((0, 0), (0, HN - D_MODEL)))                     # (64,64)

    a = np.arange(HN)[:, None] // N
    b = np.arange(HN)[None, :] // N
    sumbd = (a == b).astype(np.float32)                                      # (64,64)

    masks = jnp.asarray(np.concatenate([amask, vmask_p, sumbd], axis=0))
    assert masks.shape == (MSK_ROWS, HN)

    return dict(w32=w32, w128=w128, biases=biases, masks=masks)


# ------------------------------ forward ---------------------------------------
def gpt_forward(tokens, packed):
    B, L = tokens.shape
    N = B * L
    tok = tokens.reshape(N, 1).astype(jnp.int32)

    padded_logits = pl.pallas_call(
        gpt_fused_kernel,
        out_shape=jax.ShapeDtypeStruct((N, LANE), jnp.float32),
    )(tok, packed['w32'], packed['w128'], packed['biases'], packed['masks'])

    return padded_logits[:, :VOCAB]          # (B*L, vocab_size), matches PyTorch forward


if __name__ == "__main__":
    key = jax.random.PRNGKey(0)
    pkey, tkey = jax.random.split(key)
    params = init_gpt_params(pkey)
    packed = pack_gpt_params(params, BATCH)   # packing happens ONCE, not per call
    tokens = jax.random.randint(tkey, (BATCH, SEQ_LEN), 0, VOCAB, dtype=jnp.int32)

    fwd = jax.jit(gpt_forward)
    logits = jax.block_until_ready(fwd(tokens, packed))

    assert logits.shape == (BATCH * SEQ_LEN, VOCAB)
    assert bool(jnp.all(jnp.isfinite(logits)))
    print("KERNEL_OK")
</pallas_src>

<mosaic_0001>
module attributes {stable_mosaic.version = 11 : i64} {
  func.func @gpt_fused_kernel(%arg0: memref<16x1xi32, #tpu.memory_space<vmem>>, %arg1: memref<368x32xf32, #tpu.memory_space<vmem>>, %arg2: memref<288x128xbf16, #tpu.memory_space<vmem>>, %arg3: memref<18x128xf32, #tpu.memory_space<vmem>>, %arg4: memref<144x64xf32, #tpu.memory_space<vmem>>, %arg5: memref<16x128xf32, #tpu.memory_space<vmem>>) attributes {dimension_semantics = [], scalar_prefetch = 0 : i64, scratch_operands = 0 : i64, tpu.core_type = #tpu.core_type<tc>} {
    %c0 = arith.constant 0 : index
    %c0_0 = arith.constant 0 : index
    %0 = vector.load %arg4[%c0, %c0_0] : memref<144x64xf32, #tpu.memory_space<vmem>>, vector<16x64xf32>
    %c16 = arith.constant 16 : index
    %c0_1 = arith.constant 0 : index
    %1 = vector.load %arg4[%c16, %c0_1] : memref<144x64xf32, #tpu.memory_space<vmem>>, vector<64x32xf32>
    %c80 = arith.constant 80 : index
    %c0_2 = arith.constant 0 : index
    %2 = vector.load %arg4[%c80, %c0_2] : memref<144x64xf32, #tpu.memory_space<vmem>>, vector<64x64xf32>
    %c0_3 = arith.constant 0 : index
    %c0_4 = arith.constant 0 : index
    %3 = vector.load %arg0[%c0_3, %c0_4] : memref<16x1xi32, #tpu.memory_space<vmem>>, vector<16x1xi32>
    %4 = tpu.iota {dimensions = array<i32: 1>} : vector<16x32xi32>
    %5 = vector.broadcast %3 : vector<16x1xi32> to vector<16x32xi32>
    %6 = arith.cmpi eq, %5, %4 : vector<16x32xi32>
    %7 = arith.extui %6 : vector<16x32xi1> to vector<16x32xi32>
    %8 = arith.sitofp %7 : vector<16x32xi32> to vector<16x32xf32>
    %c0_5 = arith.constant 0 : index
    %c0_6 = arith.constant 0 : index
    %9 = vector.load %arg1[%c0_5, %c0_6] : memref<368x32xf32, #tpu.memory_space<vmem>>, vector<32x32xf32>
    %cst = arith.constant dense<0.000000e+00> : vector<16x32xf32>
    %10 = tpu.matmul %8, %9, %cst {dimension_numbers = #tpu.dot_dimension_numbers<[1], [0], [0], [1], [0, 0, 1, 1], [], []>, precision = #tpu.contract_precision<fp32>} : vector<16x32xf32>, vector<32x32xf32>, vector<16x32xf32> -> vector<16x32xf32>
    %c32 = arith.constant 32 : index
    %c0_7 = arith.constant 0 : index
    %11 = vector.load %arg1[%c32, %c0_7] : memref<368x32xf32, #tpu.memory_space<vmem>>, vector<16x32xf32>
    %12 = arith.addf %10, %11 : vector<16x32xf32>
    %c0_8 = arith.constant 0 : index
    %c0_9 = arith.constant 0 : index
    %13 = vector.load %arg2[%c0_8, %c0_9] : memref<288x128xbf16, #tpu.memory_space<vmem>>, vector<32x128xbf16>
    %c32_10 = arith.constant 32 : index
    %c0_11 = arith.constant 0 : index
    %14 = vector.load %arg2[%c32_10, %c0_11] : memref<288x128xbf16, #tpu.memory_space<vmem>>, vector<32x128xbf16>
    %c48 = arith.constant 48 : index
    %c0_12 = arith.constant 0 : index
    %15 = vector.load %arg1[%c48, %c0_12] : memref<368x32xf32, #tpu.memory_space<vmem>>, vector<32x32xf32>
    %c80_13 = arith.constant 80 : index
    %c0_14 = arith.constant 0 : index
    %16 = vector.load %arg1[%c80_13, %c0_14] : memref<368x32xf32, #tpu.memory_space<vmem>>, vector<128x32xf32>
    %c0_15 = arith.constant 0 : index
    %c0_16 = arith.constant 0 : index
    %17 = vector.load %arg3[%c0_15, %c0_16] : memref<18x128xf32, #tpu.memory_space<vmem>>, vector<1x128xf32>
    %c1 = arith.constant 1 : index
    %c0_17 = arith.constant 0 : index
    %18 = vector.load %arg3[%c1, %c0_17] : memref<18x128xf32, #tpu.memory_space<vmem>>, vector<1x32xf32>
    %c2 = arith.constant 2 : index
    %c0_18 = arith.constant 0 : index
    %19 = vector.load %arg3[%c2, %c0_18] : memref<18x128xf32, #tpu.memory_space<vmem>>, vector<1x32xf32>
    %c3 = arith.constant 3 : index
    %c0_19 = arith.constant 0 : index
    %20 = vector.load %arg3[%c3, %c0_19] : memref<18x128xf32, #tpu.memory_space<vmem>>, vector<1x32xf32>
    %c4 = arith.constant 4 : index
    %c0_20 = arith.constant 0 : index
    %21 = vector.load %arg3[%c4, %c0_20] : memref<18x128xf32, #tpu.memory_space<vmem>>, vector<1x128xf32>
    %c5 = arith.constant 5 : index
    %c0_21 = arith.constant 0 : index
    %22 = vector.load %arg3[%c5, %c0_21] : memref<18x128xf32, #tpu.memory_space<vmem>>, vector<1x32xf32>
    %c6 = arith.constant 6 : index
    %c0_22 = arith.constant 0 : index
    %23 = vector.load %arg3[%c6, %c0_22] : memref<18x128xf32, #tpu.memory_space<vmem>>, vector<1x32xf32>
    %c7 = arith.constant 7 : index
    %c0_23 = arith.constant 0 : index
    %24 = vector.load %arg3[%c7, %c0_23] : memref<18x128xf32, #tpu.memory_space<vmem>>, vector<1x32xf32>
    %25 = arith.truncf %12 : vector<16x32xf32> to vector<16x32xbf16>
    %cst_24 = arith.constant dense<0.000000e+00> : vector<16x128xf32>
    %26 = tpu.matmul %25, %13, %cst_24 {dimension_numbers = #tpu.dot_dimension_numbers<[1], [0], [0], [1], [0, 0, 1, 1], [], []>} : vector<16x32xbf16>, vector<32x128xbf16>, vector<16x128xf32> -> vector<16x128xf32>
    %27 = vector.broadcast %17 : vector<1x128xf32> to vector<16x128xf32>
    %28 = arith.addf %26, %27 : vector<16x128xf32>
    %29 = vector.extract_strided_slice %28 {offsets = [0, 0], sizes = [16, 32], strides = [1, 1]} : vector<16x128xf32> to vector<16x32xf32>
    %30 = vector.extract_strided_slice %28 {offsets = [0, 32], sizes = [16, 32], strides = [1, 1]} : vector<16x128xf32> to vector<16x32xf32>
    %31 = vector.extract_strided_slice %28 {offsets = [0, 64], sizes = [16, 32], strides = [1, 1]} : vector<16x128xf32> to vector<16x32xf32>
    %32 = tpu.concatenate %30, %30, %30, %30 in 0 : vector<16x32xf32>, vector<16x32xf32>, vector<16x32xf32>, vector<16x32xf32> -> vector<64x32xf32>
    %33 = arith.mulf %32, %1 : vector<64x32xf32>
    %34 = tpu.concatenate %31, %31, %31, %31 in 0 : vector<16x32xf32>, vector<16x32xf32>, vector<16x32xf32>, vector<16x32xf32> -> vector<64x32xf32>
    %35 = arith.mulf %34, %1 : vector<64x32xf32>
    %36 = arith.truncf %29 : vector<16x32xf32> to vector<16x32xbf16>
    %37 = arith.truncf %33 : vector<64x32xf32> to vector<64x32xbf16>
    %cst_25 = arith.constant dense<0.000000e+00> : vector<16x64xf32>
    %38 = tpu.matmul %36, %37, %cst_25 {dimension_numbers = #tpu.dot_dimension_numbers<[1], [1], [0], [0], [0, 0, 1, 0], [], []>} : vector<16x32xbf16>, vector<64x32xbf16>, vector<16x64xf32> -> vector<16x64xf32>
    %39 = arith.addf %38, %0 : vector<16x64xf32>
    %cst_26 = arith.constant dense<0xFF800000> : vector<16xf32>
    %40 = vector.multi_reduction <maximumf>, %39, %cst_26 [1] : vector<16x64xf32> to vector<16xf32>
    %41 = vector.shape_cast %40 : vector<16xf32> to vector<16x1xf32>
    %42 = vector.broadcast %41 : vector<16x1xf32> to vector<16x64xf32>
    %43 = arith.subf %39, %42 : vector<16x64xf32>
    %44 = math.exp %43 : vector<16x64xf32>
    %cst_27 = arith.constant dense<0.000000e+00> : vector<16x64xf32>
    %45 = tpu.matmul %44, %2, %cst_27 {dimension_numbers = #tpu.dot_dimension_numbers<[1], [0], [0], [1], [0, 0, 1, 1], [], []>, precision = #tpu.contract_precision<fp32>} : vector<16x64xf32>, vector<64x64xf32>, vector<16x64xf32> -> vector<16x64xf32>
    %46 = tpu.reciprocal %45 {approx = true} : vector<16x64xf32> -> vector<16x64xf32>
    %47 = arith.mulf %44, %46 : vector<16x64xf32>
    %48 = arith.truncf %47 : vector<16x64xf32> to vector<16x64xbf16>
    %49 = arith.truncf %35 : vector<64x32xf32> to vector<64x32xbf16>
    %cst_28 = arith.constant dense<0.000000e+00> : vector<16x32xf32>
    %50 = tpu.matmul %48, %49, %cst_28 {dimension_numbers = #tpu.dot_dimension_numbers<[1], [0], [0], [1], [0, 0, 1, 1], [], []>} : vector<16x64xbf16>, vector<64x32xbf16>, vector<16x32xf32> -> vector<16x32xf32>
    %51 = arith.truncf %50 : vector<16x32xf32> to vector<16x32xbf16>
    %52 = arith.truncf %15 : vector<32x32xf32> to vector<32x32xbf16>
    %cst_29 = arith.constant dense<0.000000e+00> : vector<16x32xf32>
    %53 = tpu.matmul %51, %52, %cst_29 {dimension_numbers = #tpu.dot_dimension_numbers<[1], [0], [0], [1], [0, 0, 1, 1], [], []>} : vector<16x32xbf16>, vector<32x32xbf16>, vector<16x32xf32> -> vector<16x32xf32>
    %54 = vector.broadcast %18 : vector<1x32xf32> to vector<16x32xf32>
    %55 = arith.addf %53, %54 : vector<16x32xf32>
    %56 = arith.addf %12, %55 : vector<16x32xf32>
    %cst_30 = arith.constant dense<0.000000e+00> : vector<16xf32>
    %57 = vector.multi_reduction <add>, %56, %cst_30 [1] : vector<16x32xf32> to vector<16xf32>
    %58 = vector.shape_cast %57 : vector<16xf32> to vector<16x1xf32>
    %cst_31 = arith.constant 3.200000e+01 : f32
    %59 = vector.broadcast %cst_31 : f32 to vector<16x1xf32>
    %60 = arith.divf %58, %59 : vector<16x1xf32>
    %61 = arith.mulf %56, %56 : vector<16x32xf32>
    %cst_32 = arith.constant dense<0.000000e+00> : vector<16xf32>
    %62 = vector.multi_reduction <add>, %61, %cst_32 [1] : vector<16x32xf32> to vector<16xf32>
    %63 = vector.shape_cast %62 : vector<16xf32> to vector<16x1xf32>
    %cst_33 = arith.constant 3.200000e+01 : f32
    %64 = vector.broadcast %cst_33 : f32 to vector<16x1xf32>
    %65 = arith.divf %63, %64 : vector<16x1xf32>
    %66 = arith.mulf %60, %60 : vector<16x1xf32>
    %67 = arith.subf %65, %66 : vector<16x1xf32>
    %68 = vector.broadcast %60 : vector<16x1xf32> to vector<16x32xf32>
    %69 = arith.subf %56, %68 : vector<16x32xf32>
    %cst_34 = arith.constant 9.99999974E-6 : f32
    %70 = vector.broadcast %cst_34 : f32 to vector<16x1xf32>
    %71 = arith.addf %67, %70 : vector<16x1xf32>
    %72 = math.rsqrt %71 : vector<16x1xf32>
    %73 = vector.broadcast %72 : vector<16x1xf32> to vector<16x32xf32>
    %74 = arith.mulf %69, %73 : vector<16x32xf32>
    %75 = vector.broadcast %19 : vector<1x32xf32> to vector<16x32xf32>
    %76 = arith.mulf %74, %75 : vector<16x32xf32>
    %77 = vector.broadcast %20 : vector<1x32xf32> to vector<16x32xf32>
    %78 = arith.addf %76, %77 : vector<16x32xf32>
    %79 = arith.truncf %78 : vector<16x32xf32> to vector<16x32xbf16>
    %cst_35 = arith.constant dense<0.000000e+00> : vector<16x128xf32>
    %80 = tpu.matmul %79, %14, %cst_35 {dimension_numbers = #tpu.dot_dimension_numbers<[1], [0], [0], [1], [0, 0, 1, 1], [], []>} : vector<16x32xbf16>, vector<32x128xbf16>, vector<16x128xf32> -> vector<16x128xf32>
    %81 = vector.broadcast %21 : vector<1x128xf32> to vector<16x128xf32>
    %82 = arith.addf %80, %81 : vector<16x128xf32>
    %cst_36 = arith.constant 0.000000e+00 : f32
    %83 = vector.broadcast %cst_36 : f32 to vector<16x128xf32>
    %84 = arith.maximumf %82, %83 : vector<16x128xf32>
    %85 = arith.truncf %84 : vector<16x128xf32> to vector<16x128xbf16>
    %86 = arith.truncf %16 : vector<128x32xf32> to vector<128x32xbf16>
    %cst_37 = arith.constant dense<0.000000e+00> : vector<16x32xf32>
    %87 = tpu.matmul %85, %86, %cst_37 {dimension_numbers = #tpu.dot_dimension_numbers<[1], [0], [0], [1], [0, 0, 1, 1], [], []>} : vector<16x128xbf16>, vector<128x32xbf16>, vector<16x32xf32> -> vector<16x32xf32>
    %88 = vector.broadcast %22 : vector<1x32xf32> to vector<16x32xf32>
    %89 = arith.addf %87, %88 : vector<16x32xf32>
    %90 = arith.addf %78, %89 : vector<16x32xf32>
    %cst_38 = arith.constant dense<0.000000e+00> : vector<16xf32>
    %91 = vector.multi_reduction <add>, %90, %cst_38 [1] : vector<16x32xf32> to vector<16xf32>
    %92 = vector.shape_cast %91 : vector<16xf32> to vector<16x1xf32>
    %cst_39 = arith.constant 3.200000e+01 : f32
    %93 = vector.broadcast %cst_39 : f32 to vector<16x1xf32>
    %94 = arith.divf %92, %93 : vector<16x1xf32>
    %95 = arith.mulf %90, %90 : vector<16x32xf32>
    %cst_40 = arith.constant dense<0.000000e+00> : vector<16xf32>
    %96 = vector.multi_reduction <add>, %95, %cst_40 [1] : vector<16x32xf32> to vector<16xf32>
    %97 = vector.shape_cast %96 : vector<16xf32> to vector<16x1xf32>
    %cst_41 = arith.constant 3.200000e+01 : f32
    %98 = vector.broadcast %cst_41 : f32 to vector<16x1xf32>
    %99 = arith.divf %97, %98 : vector<16x1xf32>
    %100 = arith.mulf %94, %94 : vector<16x1xf32>
    %101 = arith.subf %99, %100 : vector<16x1xf32>
    %102 = vector.broadcast %94 : vector<16x1xf32> to vector<16x32xf32>
    %103 = arith.subf %90, %102 : vector<16x32xf32>
    %cst_42 = arith.constant 9.99999974E-6 : f32
    %104 = vector.broadcast %cst_42 : f32 to vector<16x1xf32>
    %105 = arith.addf %101, %104 : vector<16x1xf32>
    %106 = math.rsqrt %105 : vector<16x1xf32>
    %107 = vector.broadcast %106 : vector<16x1xf32> to vector<16x32xf32>
    %108 = arith.mulf %103, %107 : vector<16x32xf32>
    %109 = vector.broadcast %23 : vector<1x32xf32> to vector<16x32xf32>
    %110 = arith.mulf %108, %109 : vector<16x32xf32>
    %111 = vector.broadcast %24 : vector<1x32xf32> to vector<16x32xf32>
    %112 = arith.addf %110, %111 : vector<16x32xf32>
    %c64 = arith.constant 64 : index
    %c0_43 = arith.constant 0 : index
    %113 = vector.load %arg2[%c64, %c0_43] : memref<288x128xbf16, #tpu.memory_space<vmem>>, vector<32x128xbf16>
    %c96 = arith.constant 96 : index
    %c0_44 = arith.constant 0 : index
    %114 = vector.load %arg2[%c96, %c0_44] : memref<288x128xbf16, #tpu.memory_space<vmem>>, vector<32x128xbf16>
    %c208 = arith.constant 208 : index
    %c0_45 = arith.constant 0 : index
    %115 = vector.load %arg1[%c208, %c0_45] : memref<368x32xf32, #tpu.memory_space<vmem>>, vector<32x32xf32>
    %c240 = arith.constant 240 : index
    %c0_46 = arith.constant 0 : index
    %116 = vector.load %arg1[%c240, %c0_46] : memref<368x32xf32, #tpu.memory_space<vmem>>, vector<128x32xf32>
    %c8 = arith.constant 8 : index
    %c0_47 = arith.constant 0 : index
    %117 = vector.load %arg3[%c8, %c0_47] : memref<18x128xf32, #tpu.memory_space<vmem>>, vector<1x128xf32>
    %c9 = arith.constant 9 : index
    %c0_48 = arith.constant 0 : index
    %118 = vector.load %arg3[%c9, %c0_48] : memref<18x128xf32, #tpu.memory_space<vmem>>, vector<1x32xf32>
    %c10 = arith.constant 10 : index
    %c0_49 = arith.constant 0 : index
    %119 = vector.load %arg3[%c10, %c0_49] : memref<18x128xf32, #tpu.memory_space<vmem>>, vector<1x32xf32>
    %c11 = arith.constant 11 : index
    %c0_50 = arith.constant 0 : index
    %120 = vector.load %arg3[%c11, %c0_50] : memref<18x128xf32, #tpu.memory_space<vmem>>, vector<1x32xf32>
    %c12 = arith.constant 12 : index
    %c0_51 = arith.constant 0 : index
    %121 = vector.load %arg3[%c12, %c0_51] : memref<18x128xf32, #tpu.memory_space<vmem>>, vector<1x128xf32>
    %c13 = arith.constant 13 : index
    %c0_52 = arith.constant 0 : index
    %122 = vector.load %arg3[%c13, %c0_52] : memref<18x128xf32, #tpu.memory_space<vmem>>, vector<1x32xf32>
    %c14 = arith.constant 14 : index
    %c0_53 = arith.constant 0 : index
    %123 = vector.load %arg3[%c14, %c0_53] : memref<18x128xf32, #tpu.memory_space<vmem>>, vector<1x32xf32>
    %c15 = arith.constant 15 : index
    %c0_54 = arith.constant 0 : index
    %124 = vector.load %arg3[%c15, %c0_54] : memref<18x128xf32, #tpu.memory_space<vmem>>, vector<1x32xf32>
    %125 = arith.truncf %112 : vector<16x32xf32> to vector<16x32xbf16>
    %cst_55 = arith.constant dense<0.000000e+00> : vector<16x128xf32>
    %126 = tpu.matmul %125, %113, %cst_55 {dimension_numbers = #tpu.dot_dimension_numbers<[1], [0], [0], [1], [0, 0, 1, 1], [], []>} : vector<16x32xbf16>, vector<32x128xbf16>, vector<16x128xf32> -> vector<16x128xf32>
    %127 = vector.broadcast %117 : vector<1x128xf32> to vector<16x128xf32>
    %128 = arith.addf %126, %127 : vector<16x128xf32>
    %129 = vector.extract_strided_slice %128 {offsets = [0, 0], sizes = [16, 32], strides = [1, 1]} : vector<16x128xf32> to vector<16x32xf32>
    %130 = vector.extract_strided_slice %128 {offsets = [0, 32], sizes = [16, 32], strides = [1, 1]} : vector<16x128xf32> to vector<16x32xf32>
    %131 = vector.extract_strided_slice %128 {offsets = [0, 64], sizes = [16, 32], strides = [1, 1]} : vector<16x128xf32> to vector<16x32xf32>
    %132 = tpu.concatenate %130, %130, %130, %130 in 0 : vector<16x32xf32>, vector<16x32xf32>, vector<16x32xf32>, vector<16x32xf32> -> vector<64x32xf32>
    %133 = arith.mulf %132, %1 : vector<64x32xf32>
    %134 = tpu.concatenate %131, %131, %131, %131 in 0 : vector<16x32xf32>, vector<16x32xf32>, vector<16x32xf32>, vector<16x32xf32> -> vector<64x32xf32>
    %135 = arith.mulf %134, %1 : vector<64x32xf32>
    %136 = arith.truncf %129 : vector<16x32xf32> to vector<16x32xbf16>
    %137 = arith.truncf %133 : vector<64x32xf32> to vector<64x32xbf16>
    %cst_56 = arith.constant dense<0.000000e+00> : vector<16x64xf32>
    %138 = tpu.matmul %136, %137, %cst_56 {dimension_numbers = #tpu.dot_dimension_numbers<[1], [1], [0], [0], [0, 0, 1, 0], [], []>} : vector<16x32xbf16>, vector<64x32xbf16>, vector<16x64xf32> -> vector<16x64xf32>
    %139 = arith.addf %138, %0 : vector<16x64xf32>
    %cst_57 = arith.constant dense<0xFF800000> : vector<16xf32>
    %140 = vector.multi_reduction <maximumf>, %139, %cst_57 [1] : vector<16x64xf32> to vector<16xf32>
    %141 = vector.shape_cast %140 : vector<16xf32> to vector<16x1xf32>
    %142 = vector.broadcast %141 : vector<16x1xf32> to vector<16x64xf32>
    %143 = arith.subf %139, %142 : vector<16x64xf32>
    %144 = math.exp %143 : vector<16x64xf32>
    %cst_58 = arith.constant dense<0.000000e+00> : vector<16x64xf32>
    %145 = tpu.matmul %144, %2, %cst_58 {dimension_numbers = #tpu.dot_dimension_numbers<[1], [0], [0], [1], [0, 0, 1, 1], [], []>, precision = #tpu.contract_precision<fp32>} : vector<16x64xf32>, vector<64x64xf32>, vector<16x64xf32> -> vector<16x64xf32>
    %146 = tpu.reciprocal %145 {approx = true} : vector<16x64xf32> -> vector<16x64xf32>
    %147 = arith.mulf %144, %146 : vector<16x64xf32>
    %148 = arith.truncf %147 : vector<16x64xf32> to vector<16x64xbf16>
    %149 = arith.truncf %135 : vector<64x32xf32> to vector<64x32xbf16>
    %cst_59 = arith.constant dense<0.000000e+00> : vector<16x32xf32>
    %150 = tpu.matmul %148, %149, %cst_59 {dimension_numbers = #tpu.dot_dimension_numbers<[1], [0], [0], [1], [0, 0, 1, 1], [], []>} : vector<16x64xbf16>, vector<64x32xbf16>, vector<16x32xf32> -> vector<16x32xf32>
    %151 = arith.truncf %150 : vector<16x32xf32> to vector<16x32xbf16>
    %152 = arith.truncf %115 : vector<32x32xf32> to vector<32x32xbf16>
    %cst_60 = arith.constant dense<0.000000e+00> : vector<16x32xf32>
    %153 = tpu.matmul %151, %152, %cst_60 {dimension_numbers = #tpu.dot_dimension_numbers<[1], [0], [0], [1], [0, 0, 1, 1], [], []>} : vector<16x32xbf16>, vector<32x32xbf16>, vector<16x32xf32> -> vector<16x32xf32>
    %154 = vector.broadcast %118 : vector<1x32xf32> to vector<16x32xf32>
    %155 = arith.addf %153, %154 : vector<16x32xf32>
    %156 = arith.addf %112, %155 : vector<16x32xf32>
    %cst_61 = arith.constant dense<0.000000e+00> : vector<16xf32>
    %157 = vector.multi_reduction <add>, %156, %cst_61 [1] : vector<16x32xf32> to vector<16xf32>
    %158 = vector.shape_cast %157 : vector<16xf32> to vector<16x1xf32>
    %cst_62 = arith.constant 3.200000e+01 : f32
    %159 = vector.broadcast %cst_62 : f32 to vector<16x1xf32>
    %160 = arith.divf %158, %159 : vector<16x1xf32>
    %161 = arith.mulf %156, %156 : vector<16x32xf32>
    %cst_63 = arith.constant dense<0.000000e+00> : vector<16xf32>
    %162 = vector.multi_reduction <add>, %161, %cst_63 [1] : vector<16x32xf32> to vector<16xf32>
    %163 = vector.shape_cast %162 : vector<16xf32> to vector<16x1xf32>
    %cst_64 = arith.constant 3.200000e+01 : f32
    %164 = vector.broadcast %cst_64 : f32 to vector<16x1xf32>
    %165 = arith.divf %163, %164 : vector<16x1xf32>
    %166 = arith.mulf %160, %160 : vector<16x1xf32>
    %167 = arith.subf %165, %166 : vector<16x1xf32>
    %168 = vector.broadcast %160 : vector<16x1xf32> to vector<16x32xf32>
    %169 = arith.subf %156, %168 : vector<16x32xf32>
    %cst_65 = arith.constant 9.99999974E-6 : f32
    %170 = vector.broadcast %cst_65 : f32 to vector<16x1xf32>
    %171 = arith.addf %167, %170 : vector<16x1xf32>
    %172 = math.rsqrt %171 : vector<16x1xf32>
    %173 = vector.broadcast %172 : vector<16x1xf32> to vector<16x32xf32>
    %174 = arith.mulf %169, %173 : vector<16x32xf32>
    %175 = vector.broadcast %119 : vector<1x32xf32> to vector<16x32xf32>
    %176 = arith.mulf %174, %175 : vector<16x32xf32>
    %177 = vector.broadcast %120 : vector<1x32xf32> to vector<16x32xf32>
    %178 = arith.addf %176, %177 : vector<16x32xf32>
    %179 = arith.truncf %178 : vector<16x32xf32> to vector<16x32xbf16>
    %cst_66 = arith.constant dense<0.000000e+00> : vector<16x128xf32>
    %180 = tpu.matmul %179, %114, %cst_66 {dimension_numbers = #tpu.dot_dimension_numbers<[1], [0], [0], [1], [0, 0, 1, 1], [], []>} : vector<16x32xbf16>, vector<32x128xbf16>, vector<16x128xf32> -> vector<16x128xf32>
    %181 = vector.broadcast %121 : vector<1x128xf32> to vector<16x128xf32>
    %182 = arith.addf %180, %181 : vector<16x128xf32>
    %cst_67 = arith.constant 0.000000e+00 : f32
    %183 = vector.broadcast %cst_67 : f32 to vector<16x128xf32>
    %184 = arith.maximumf %182, %183 : vector<16x128xf32>
    %185 = arith.truncf %184 : vector<16x128xf32> to vector<16x128xbf16>
    %186 = arith.truncf %116 : vector<128x32xf32> to vector<128x32xbf16>
    %cst_68 = arith.constant dense<0.000000e+00> : vector<16x32xf32>
    %187 = tpu.matmul %185, %186, %cst_68 {dimension_numbers = #tpu.dot_dimension_numbers<[1], [0], [0], [1], [0, 0, 1, 1], [], []>} : vector<16x128xbf16>, vector<128x32xbf16>, vector<16x32xf32> -> vector<16x32xf32>
    %188 = vector.broadcast %122 : vector<1x32xf32> to vector<16x32xf32>
    %189 = arith.addf %187, %188 : vector<16x32xf32>
    %190 = arith.addf %178, %189 : vector<16x32xf32>
    %cst_69 = arith.constant dense<0.000000e+00> : vector<16xf32>
    %191 = vector.multi_reduction <add>, %190, %cst_69 [1] : vector<16x32xf32> to vector<16xf32>
    %192 = vector.shape_cast %191 : vector<16xf32> to vector<16x1xf32>
    %cst_70 = arith.constant 3.200000e+01 : f32
    %193 = vector.broadcast %cst_70 : f32 to vector<16x1xf32>
    %194 = arith.divf %192, %193 : vector<16x1xf32>
    %195 = arith.mulf %190, %190 : vector<16x32xf32>
    %cst_71 = arith.constant dense<0.000000e+00> : vector<16xf32>
    %196 = vector.multi_reduction <add>, %195, %cst_71 [1] : vector<16x32xf32> to vector<16xf32>
    %197 = vector.shape_cast %196 : vector<16xf32> to vector<16x1xf32>
    %cst_72 = arith.constant 3.200000e+01 : f32
    %198 = vector.broadcast %cst_72 : f32 to vector<16x1xf32>
    %199 = arith.divf %197, %198 : vector<16x1xf32>
    %200 = arith.mulf %194, %194 : vector<16x1xf32>
    %201 = arith.subf %199, %200 : vector<16x1xf32>
    %202 = vector.broadcast %194 : vector<16x1xf32> to vector<16x32xf32>
    %203 = arith.subf %190, %202 : vector<16x32xf32>
    %cst_73 = arith.constant 9.99999974E-6 : f32
    %204 = vector.broadcast %cst_73 : f32 to vector<16x1xf32>
    %205 = arith.addf %201, %204 : vector<16x1xf32>
    %206 = math.rsqrt %205 : vector<16x1xf32>
    %207 = vector.broadcast %206 : vector<16x1xf32> to vector<16x32xf32>
    %208 = arith.mulf %203, %207 : vector<16x32xf32>
    %209 = vector.broadcast %123 : vector<1x32xf32> to vector<16x32xf32>
    %210 = arith.mulf %208, %209 : vector<16x32xf32>
    %211 = vector.broadcast %124 : vector<1x32xf32> to vector<16x32xf32>
    %212 = arith.addf %210, %211 : vector<16x32xf32>
    %c128 = arith.constant 128 : index
    %c0_74 = arith.constant 0 : index
    %213 = vector.load %arg2[%c128, %c0_74] : memref<288x128xbf16, #tpu.memory_space<vmem>>, vector<32x128xbf16>
    %c160 = arith.constant 160 : index
    %c0_75 = arith.constant 0 : index
    %214 = vector.load %arg2[%c160, %c0_75] : memref<288x128xbf16, #tpu.memory_space<vmem>>, vector<128x128xbf16>
    %c16_76 = arith.constant 16 : index
    %c0_77 = arith.constant 0 : index
    %215 = vector.load %arg3[%c16_76, %c0_77] : memref<18x128xf32, #tpu.memory_space<vmem>>, vector<1x128xf32>
    %c17 = arith.constant 17 : index
    %c0_78 = arith.constant 0 : index
    %216 = vector.load %arg3[%c17, %c0_78] : memref<18x128xf32, #tpu.memory_space<vmem>>, vector<1x128xf32>
    %217 = arith.truncf %212 : vector<16x32xf32> to vector<16x32xbf16>
    %cst_79 = arith.constant dense<0.000000e+00> : vector<16x128xf32>
    %218 = tpu.matmul %217, %213, %cst_79 {dimension_numbers = #tpu.dot_dimension_numbers<[1], [0], [0], [1], [0, 0, 1, 1], [], []>} : vector<16x32xbf16>, vector<32x128xbf16>, vector<16x128xf32> -> vector<16x128xf32>
    %219 = vector.broadcast %215 : vector<1x128xf32> to vector<16x128xf32>
    %220 = arith.addf %218, %219 : vector<16x128xf32>
    %cst_80 = arith.constant 0.000000e+00 : f32
    %221 = vector.broadcast %cst_80 : f32 to vector<16x128xf32>
    %222 = arith.maximumf %220, %221 : vector<16x128xf32>
    %223 = arith.truncf %222 : vector<16x128xf32> to vector<16x128xbf16>
    %cst_81 = arith.constant dense<0.000000e+00> : vector<16x128xf32>
    %224 = tpu.matmul %223, %214, %cst_81 {dimension_numbers = #tpu.dot_dimension_numbers<[1], [0], [0], [1], [0, 0, 1, 1], [], []>} : vector<16x128xbf16>, vector<128x128xbf16>, vector<16x128xf32> -> vector<16x128xf32>
    %225 = vector.broadcast %216 : vector<1x128xf32> to vector<16x128xf32>
    %226 = arith.addf %224, %225 : vector<16x128xf32>
    %c0_82 = arith.constant 0 : index
    %c0_83 = arith.constant 0 : index
    %227 = vector.load %arg5[%c0_82, %c0_83] : memref<16x128xf32, #tpu.memory_space<vmem>>, vector<16x128xf32>
    tpu.vector_store %arg5[%c0_82, %c0_83], %226 {strides = array<i32>} : memref<16x128xf32, #tpu.memory_space<vmem>>, vector<16x128xf32>,
    return
  }
}

</mosaic_0001>

<llo_original>
// kernel: gpt_forward.1
$region0: #{gpt_forward.1}
  #allocation0 [shape = 'u32[]', space=smem, size = 0x4, offset = 0x4, fixed_abs, tag = 'smem constant byte address 0x4 - core index']
  #allocation1 [shape = 'u32[144,128]{1,0:T(1,128)}', space=vmem, size = 0x12000, scoped, tag = 'internal scratch']
  %s0 = inlined_call_operand.vmem [shape: s32[16,1], index: 0, kind: input, shape index: {}]
  %s1 = inlined_call_operand.vmem [shape: f32[368,32], index: 1, kind: input, shape index: {}]
  %s2 = inlined_call_operand.vmem [shape: bf16[288,128], index: 2, kind: input, shape index: {}]
  %s3 = inlined_call_operand.vmem [shape: f32[18,128], index: 3, kind: input, shape index: {}]
  %s4 = inlined_call_operand.vmem [shape: f32[144,64], index: 4, kind: input, shape index: {}]
  %s5 = inlined_call_operand.hbm [shape: f32[16,128], index: 5, kind: output, shape index: {}]
  %s6 = sld [smem:[#allocation0]]
  $region30: #{gpt_forward.1} parent=0
    _
  %s8 = ssub.s32 1, %s6
  %s9 = scalar_select 0, %s8, %s6
  $region1: #{gpt_forward.1} parent=0
    #allocation2 [shape = 'u8[8192]{0}', space=vmem, size = 0x2000, scoped, tag = 'output window, operand 0, single buffered']
    #allocation3 [shape = 's32[1]{0}', space=sflag, size = 0x4, scoped, tag = 'scoped memory for gpt_forward.1']
    %10 = vsyncpa [#allocation3], 0
    // Predicated region
    $region2: #{gpt_forward.1} parent=1 // pred_check
      _
    $region3: #{gpt_forward.1} parent=1 // pred_check_branch
      %12 = sbr.rel (0) target = $region5
    $region4: #{gpt_forward.1} parent=1 // pred_region
      _
    $region5: #{gpt_forward.1} parent=1 // pred_fallthru
      _
    // Predicated region
    $region6: #{gpt_forward.1} parent=1 // pred_check
      _
    $region7: #{gpt_forward.1} parent=1 // pred_check_branch
      %14 = sbr.rel (0) target = $region9
    $region8: #{gpt_forward.1} parent=1 // pred_region
      _
    $region9: #{gpt_forward.1} parent=1 // pred_fallthru
      _
    // Predicated region
    $region10: #{gpt_forward.1} parent=1 // pred_check
      _
    $region11: #{gpt_forward.1} parent=1 // pred_check_branch
      %16 = sbr.rel (0) target = $region13
    $region12: #{gpt_forward.1} parent=1 // pred_region
      _
    $region13: #{gpt_forward.1} parent=1 // pred_fallthru
      _
    // Predicated region
    $region14: #{gpt_forward.1} parent=1 // pred_check
      _
    $region15: #{gpt_forward.1} parent=1 // pred_check_branch
      %18 = sbr.rel (0) target = $region17
    $region16: #{gpt_forward.1} parent=1 // pred_region
      _
    $region17: #{gpt_forward.1} parent=1 // pred_fallthru
      _
    // Predicated region
    $region18: #{gpt_forward.1} parent=1 // pred_check
      _
    $region19: #{gpt_forward.1} parent=1 // pred_check_branch
      %20 = sbr.rel (0) target = $region21
    $region20: #{gpt_forward.1} parent=1 // pred_region
      _
    $region21: #{gpt_forward.1} parent=1 // pred_fallthru
      _
    %v22 = vld [vmem:[%s4] sm:$0xff]
    %v23 = vld [vmem:[%s4 + $0x8] sm:$0xff]
    %v24 = vld [vmem:[%s4 + $0x10] sm:$0xff]
    %v25 = vld [vmem:[%s4 + $0x18] sm:$0xff]
    %v26 = vld [vmem:[%s4 + $0x20] sm:$0xff]
    %v27 = vld [vmem:[%s4 + $0x28] sm:$0xff]
    %v28 = vld [vmem:[%s4 + $0x30] sm:$0xff]
    %v29 = vld [vmem:[%s4 + $0x38] sm:$0xff]
    %v30 = vld [vmem:[%s4 + $0x40] sm:$0xff]
    %v31 = vld [vmem:[%s4 + $0x48] sm:$0xff]
    %v32 = vld [vmem:[%s4 + $0x50] sm:$0xff]
    %v33 = vld [vmem:[%s4 + $0x58] sm:$0xff]
    %v34 = vld [vmem:[%s4 + $0x60] sm:$0xff]
    %v35 = vld [vmem:[%s4 + $0x68] sm:$0xff]
    %v36 = vld [vmem:[%s4 + $0x70] sm:$0xff]
    %v37 = vld [vmem:[%s4 + $0x78] sm:$0xff]
    %v38 = vld [vmem:[%s4 + $0x80] sm:$0xff]
    %v39 = vld [vmem:[%s4 + $0x88] sm:$0xff]
    %v40 = vld [vmem:[%s0] sm:$0xff]
    %v41 = vld [vmem:[%s0 + $0x8] sm:$0xff]
    %v42 = vlaneseq
    %v43 = vand.u32 %v42, 127
    %44 = vset.pattern.permute.xlu0 0
    %45 = vperm.xlu0 %44, %v40
    %v46 = vpop.permute.xlu0 %45
    %47 = vset.pattern.permute.xlu0 0
    %48 = vperm.xlu0 %47, %v41
    %v49 = vpop.permute.xlu0 %48
    %vm50 = vcmp.eq.s32.totalorder %v46, %v43
    %vm51 = vcmp.eq.s32.totalorder %v49, %v43
    %v52 = vsel %vm50, 1, 0
    %v53 = vsel %vm51, 1, 0
    %v54 = vcvt.s32.f32 %v52
    %v55 = vcvt.s32.f32 %v53
    %v56 = vld [vmem:[%s1] sm:$0xff]
    %v57 = vld [vmem:[%s1 + $0x8] sm:$0xff]
    %v58 = vld [vmem:[%s1 + $0x10] sm:$0xff]
    %v59 = vld [vmem:[%s1 + $0x18] sm:$0xff]
    %v60 = vld [vmem:[%s1 + $0x20] sm:$0xff]
    %v61 = vld [vmem:[%s1 + $0x28] sm:$0xff]
    %vm62 = vcmask 261120
    %v64 = vsel %vm62, %v54, 0
    %v67 = vsel %vm62, %v55, 0
    %69 = vmatprep.subr.mxu0 0.0
    %70 = vmatpush1.msra.mxu0 0.0
    %71 = vmatprep.subr.mxu0 0.0
    %72 = vmatpush1.msra.mxu0 0.0
    %73 = vmatprep.subr.mxu0 0.0
    %74 = vmatpush1.msra.mxu0 0.0
    %75 = vmatprep.subr.mxu0 0.0
    %76 = vmatpush1.msra.mxu0 0.0
    %77 = vmatprep.subr.mxu0 0.0
    %78 = vmatpush1.msra.mxu0 0.0
    %79 = vmatprep.subr.mxu0 0.0
    %80 = vmatpush1.msra.mxu0 0.0
    %81 = vmatprep.subr.mxu0 0.0
    %82 = vmatpush1.msra.mxu0 0.0
    %83 = vmatprep.subr.mxu0 0.0
    %84 = vmatpush1.msra.mxu0 0.0
    %85 = vmatprep.subr.mxu0 0.0
    %86 = vmatpush1.msra.mxu0 0.0
    %87 = vmatprep.subr.mxu0 0.0
    %88 = vmatpush1.msra.mxu0 0.0
    %89 = vmatprep.subr.mxu0 0.0
    %90 = vmatpush1.msra.mxu0 0.0
    %91 = vmatprep.subr.mxu0 0.0
    %92 = vmatpush1.msra.mxu0 0.0
    %93 = vmatprep.subr.mxu0 0.0
    %v94 = vand.u32 %v59, 4294901760
    %95 = vmatpush1.msra.mxu0 %v94
    %96 = vmatprep.subr.mxu0 0.0
    %v97 = vand.u32 %v58, 4294901760
    %98 = vmatpush1.msra.mxu0 %v97
    %99 = vmatprep.subr.mxu0 0.0
    %v100 = vand.u32 %v57, 4294901760
    %101 = vmatpush1.msra.mxu0 %v100
    %102 = vmatprep.subr.mxu0 0.0
    %v103 = vand.u32 %v56, 4294901760
    %104 = vmatpush1.msra.mxu0 %v103
    %105 = vmatprep.subr.mxu0 0.0
    %106 = vmatpush2.msra.mxu0 0.0
    %107 = vmatprep.subr.mxu0 0.0
    %108 = vmatpush2.msra.mxu0 0.0
    %109 = vmatprep.subr.mxu0 0.0
    %110 = vmatpush2.msra.mxu0 0.0
    %111 = vmatprep.subr.mxu0 0.0
    %112 = vmatpush2.msra.mxu0 0.0
    %113 = vmatprep.subr.mxu0 0.0
    %114 = vmatpush2.msra.mxu0 0.0
    %115 = vmatprep.subr.mxu0 0.0
    %116 = vmatpush2.msra.mxu0 0.0
    %117 = vmatprep.subr.mxu0 0.0
    %118 = vmatpush2.msra.mxu0 0.0
    %119 = vmatprep.subr.mxu0 0.0
    %120 = vmatpush2.msra.mxu0 0.0
    %121 = vmatprep.subr.mxu0 0.0
    %122 = vmatpush2.msra.mxu0 0.0
    %123 = vmatprep.subr.mxu0 0.0
    %124 = vmatpush2.msra.mxu0 0.0
    %125 = vmatprep.subr.mxu0 0.0
    %126 = vmatpush2.msra.mxu0 0.0
    %127 = vmatprep.subr.mxu0 0.0
    %128 = vmatpush2.msra.mxu0 0.0
    %129 = vmatprep.subr.mxu0 0.0
    %130 = vmatpush2.msra.mxu0 0.0
    %131 = vmatprep.subr.mxu0 0.0
    %132 = vmatpush2.msra.mxu0 0.0
    %133 = vmatprep.subr.mxu0 0.0
    %134 = vmatpush2.msra.mxu0 0.0
    %135 = vmatprep.subr.mxu0 0.0
    %136 = vmatpush2.msra.mxu0 0.0
    %137 = vmatprep.mubr.f32.mxu0 0.0
    %v138 = vand.u32 %v64, 4294901760
    %v139 = vsub.f32 %v64, %v138
    %v140 = vand.u32 %v139, 4294901760
    %v141 = vsub.f32 %v139, %v140
    %v142 = vand.u32 %v141, 4294901760
    %143 = vmatmul.mubr.f32.gmra.mxu0 %v142
    %v144 = vpop.f32.mrf.mxu0
    %v145 = vadd.f32 %v60, %v144
    %v146 = vpop.f32.mrf.mxu0
    %147 = vmatprep.mubr.f32.mxu0 0.0
    %v148 = vand.u32 %v67, 4294901760
    %v149 = vsub.f32 %v67, %v148
    %v150 = vand.u32 %v149, 4294901760
    %v151 = vsub.f32 %v149, %v150
    %v152 = vand.u32 %v151, 4294901760
    %153 = vmatmul.mubr.f32.gmra.mxu0 %v152
    %v154 = vpop.f32.mrf.mxu0
    %v155 = vadd.f32 %v61, %v154
    %v156 = vpop.f32.mrf.mxu0
    %157 = vdwg.mxu0
    %158 = vmatprep.subr.mxu0 0.0
    %159 = vmatpush1.msra.mxu0 0.0
    %160 = vmatprep.subr.mxu0 0.0
    %161 = vmatpush1.msra.mxu0 0.0
    %162 = vmatprep.subr.mxu0 0.0
    %163 = vmatpush1.msra.mxu0 0.0
    %164 = vmatprep.subr.mxu0 0.0
    %165 = vmatpush1.msra.mxu0 0.0
    %166 = vmatprep.subr.mxu0 0.0
    %167 = vmatpush1.msra.mxu0 0.0
    %168 = vmatprep.subr.mxu0 0.0
    %169 = vmatpush1.msra.mxu0 0.0
    %170 = vmatprep.subr.mxu0 0.0
    %171 = vmatpush1.msra.mxu0 0.0
    %172 = vmatprep.subr.mxu0 0.0
    %173 = vmatpush1.msra.mxu0 0.0
    %174 = vmatprep.subr.mxu0 0.0
    %175 = vmatpush1.msra.mxu0 0.0
    %176 = vmatprep.subr.mxu0 0.0
    %177 = vmatpush1.msra.mxu0 0.0
    %178 = vmatprep.subr.mxu0 0.0
    %179 = vmatpush1.msra.mxu0 0.0
    %180 = vmatprep.subr.mxu0 0.0
    %181 = vmatpush1.msra.mxu0 0.0
    %182 = vmatprep.subr.mxu0 0.0
    %v183 = vand.u32 %v59, 4294901760
    %v184 = vsub.f32 %v59, %v183
    %v185 = vand.u32 %v184, 4294901760
    %v186 = vsub.f32 %v184, %v185
    %v187 = vand.u32 %v186, 4294901760
    %188 = vmatpush1.msra.mxu0 %v187
    %189 = vmatprep.subr.mxu0 0.0
    %v190 = vand.u32 %v58, 4294901760
    %v191 = vsub.f32 %v58, %v190
    %v192 = vand.u32 %v191, 4294901760
    %v193 = vsub.f32 %v191, %v192
    %v194 = vand.u32 %v193, 4294901760
    %195 = vmatpush1.msra.mxu0 %v194
    %196 = vmatprep.subr.mxu0 0.0
    %v197 = vand.u32 %v57, 4294901760
    %v198 = vsub.f32 %v57, %v197
    %v199 = vand.u32 %v198, 4294901760
    %v200 = vsub.f32 %v198, %v199
    %v201 = vand.u32 %v200, 4294901760
    %202 = vmatpush1.msra.mxu0 %v201
    %203 = vmatprep.subr.mxu0 0.0
    %v204 = vand.u32 %v56, 4294901760
    %v205 = vsub.f32 %v56, %v204
    %v206 = vand.u32 %v205, 4294901760
    %v207 = vsub.f32 %v205, %v206
    %v208 = vand.u32 %v207, 4294901760
    %209 = vmatpush1.msra.mxu0 %v208
    %210 = vmatprep.subr.mxu0 0.0
    %211 = vmatpush2.msra.mxu0 0.0
    %212 = vmatprep.subr.mxu0 0.0
    %213 = vmatpush2.msra.mxu0 0.0
    %214 = vmatprep.subr.mxu0 0.0
    %215 = vmatpush2.msra.mxu0 0.0
    %216 = vmatprep.subr.mxu0 0.0
    %217 = vmatpush2.msra.mxu0 0.0
    %218 = vmatprep.subr.mxu0 0.0
    %219 = vmatpush2.msra.mxu0 0.0
    %220 = vmatprep.subr.mxu0 0.0
    %221 = vmatpush2.msra.mxu0 0.0
    %222 = vmatprep.subr.mxu0 0.0
    %223 = vmatpush2.msra.mxu0 0.0
    %224 = vmatprep.subr.mxu0 0.0
    %225 = vmatpush2.msra.mxu0 0.0
    %226 = vmatprep.subr.mxu0 0.0
    %227 = vmatpush2.msra.mxu0 0.0
    %228 = vmatprep.subr.mxu0 0.0
    %229 = vmatpush2.msra.mxu0 0.0
    %230 = vmatprep.subr.mxu0 0.0
    %231 = vmatpush2.msra.mxu0 0.0
    %232 = vmatprep.subr.mxu0 0.0
    %233 = vmatpush2.msra.mxu0 0.0
    %234 = vmatprep.subr.mxu0 0.0
    %235 = vmatpush2.msra.mxu0 0.0
    %236 = vmatprep.subr.mxu0 0.0
    %237 = vmatpush2.msra.mxu0 0.0
    %238 = vmatprep.subr.mxu0 0.0
    %239 = vmatpush2.msra.mxu0 0.0
    %240 = vmatprep.subr.mxu0 0.0
    %241 = vmatpush2.msra.mxu0 0.0
    %242 = vmatprep.mubr.f32.mxu0 0.0
    %v243 = vand.u32 %v64, 4294901760
    %244 = vmatmul.mubr.f32.gmra.mxu0 %v243
    %v245 = vpop.f32.mrf.mxu0
    %v246 = vadd.f32 %v145, %v245
    %v247 = vpop.f32.mrf.mxu0
    %248 = vmatprep.mubr.f32.mxu0 0.0
    %v249 = vand.u32 %v67, 4294901760
    %250 = vmatmul.mubr.f32.gmra.mxu0 %v249
    %v251 = vpop.f32.mrf.mxu0
    %v252 = vadd.f32 %v155, %v251
    %v253 = vpop.f32.mrf.mxu0
    %254 = vdwg.mxu0
    %255 = vmatprep.subr.mxu0 0.0
    %256 = vmatpush1.msra.mxu0 0.0
    %257 = vmatprep.subr.mxu0 0.0
    %258 = vmatpush1.msra.mxu0 0.0
    %259 = vmatprep.subr.mxu0 0.0
    %260 = vmatpush1.msra.mxu0 0.0
    %261 = vmatprep.subr.mxu0 0.0
    %262 = vmatpush1.msra.mxu0 0.0
    %263 = vmatprep.subr.mxu0 0.0
    %264 = vmatpush1.msra.mxu0 0.0
    %265 = vmatprep.subr.mxu0 0.0
    %266 = vmatpush1.msra.mxu0 0.0
    %267 = vmatprep.subr.mxu0 0.0
    %268 = vmatpush1.msra.mxu0 0.0
    %269 = vmatprep.subr.mxu0 0.0
    %270 = vmatpush1.msra.mxu0 0.0
    %271 = vmatprep.subr.mxu0 0.0
    %272 = vmatpush1.msra.mxu0 0.0
    %273 = vmatprep.subr.mxu0 0.0
    %274 = vmatpush1.msra.mxu0 0.0
    %275 = vmatprep.subr.mxu0 0.0
    %276 = vmatpush1.msra.mxu0 0.0
    %277 = vmatprep.subr.mxu0 0.0
    %278 = vmatpush1.msra.mxu0 0.0
    %279 = vmatprep.subr.mxu0 0.0
    %v280 = vand.u32 %v59, 4294901760
    %v281 = vsub.f32 %v59, %v280
    %282 = vmatpush1.msra.mxu0 %v281
    %283 = vmatprep.subr.mxu0 0.0
    %v284 = vand.u32 %v58, 4294901760
    %v285 = vsub.f32 %v58, %v284
    %286 = vmatpush1.msra.mxu0 %v285
    %287 = vmatprep.subr.mxu0 0.0
    %v288 = vand.u32 %v57, 4294901760
    %v289 = vsub.f32 %v57, %v288
    %290 = vmatpush1.msra.mxu0 %v289
    %291 = vmatprep.subr.mxu0 0.0
    %v292 = vand.u32 %v56, 4294901760
    %v293 = vsub.f32 %v56, %v292
    %294 = vmatpush1.msra.mxu0 %v293
    %295 = vmatprep.subr.mxu0 0.0
    %296 = vmatpush2.msra.mxu0 0.0
    %297 = vmatprep.subr.mxu0 0.0
    %298 = vmatpush2.msra.mxu0 0.0
    %299 = vmatprep.subr.mxu0 0.0
    %300 = vmatpush2.msra.mxu0 0.0
    %301 = vmatprep.subr.mxu0 0.0
    %302 = vmatpush2.msra.mxu0 0.0
    %303 = vmatprep.subr.mxu0 0.0
    %304 = vmatpush2.msra.mxu0 0.0
    %305 = vmatprep.subr.mxu0 0.0
    %306 = vmatpush2.msra.mxu0 0.0
    %307 = vmatprep.subr.mxu0 0.0
    %308 = vmatpush2.msra.mxu0 0.0
    %309 = vmatprep.subr.mxu0 0.0
    %310 = vmatpush2.msra.mxu0 0.0
    %311 = vmatprep.subr.mxu0 0.0
    %312 = vmatpush2.msra.mxu0 0.0
    %313 = vmatprep.subr.mxu0 0.0
    %314 = vmatpush2.msra.mxu0 0.0
    %315 = vmatprep.subr.mxu0 0.0
    %316 = vmatpush2.msra.mxu0 0.0
    %317 = vmatprep.subr.mxu0 0.0
    %318 = vmatpush2.msra.mxu0 0.0
    %319 = vmatprep.subr.mxu0 0.0
    %320 = vmatpush2.msra.mxu0 0.0
    %321 = vmatprep.subr.mxu0 0.0
    %322 = vmatpush2.msra.mxu0 0.0
    %323 = vmatprep.subr.mxu0 0.0
    %324 = vmatpush2.msra.mxu0 0.0
    %325 = vmatprep.subr.mxu0 0.0
    %326 = vmatpush2.msra.mxu0 0.0
    %327 = vmatprep.mubr.f32.mxu0 0.0
    %v328 = vand.u32 %v64, 4294901760
    %v329 = vsub.f32 %v64, %v328
    %330 = vmatmul.mubr.f32.gmra.mxu0 %v329
    %v331 = vpop.f32.mrf.mxu0
    %v332 = vadd.f32 %v246, %v331
    %v333 = vpop.f32.mrf.mxu0
    %334 = vmatprep.mubr.f32.mxu0 0.0
    %v335 = vand.u32 %v67, 4294901760
    %v336 = vsub.f32 %v67, %v335
    %337 = vmatmul.mubr.f32.gmra.mxu0 %v336
    %v338 = vpop.f32.mrf.mxu0
    %v339 = vadd.f32 %v252, %v338
    %v340 = vpop.f32.mrf.mxu0
    %341 = vdwg.mxu0
    %342 = vmatprep.subr.mxu0 0.0
    %343 = vmatpush1.msra.mxu0 0.0
    %344 = vmatprep.subr.mxu0 0.0
    %345 = vmatpush1.msra.mxu0 0.0
    %346 = vmatprep.subr.mxu0 0.0
    %347 = vmatpush1.msra.mxu0 0.0
    %348 = vmatprep.subr.mxu0 0.0
    %349 = vmatpush1.msra.mxu0 0.0
    %350 = vmatprep.subr.mxu0 0.0
    %351 = vmatpush1.msra.mxu0 0.0
    %352 = vmatprep.subr.mxu0 0.0
    %353 = vmatpush1.msra.mxu0 0.0
    %354 = vmatprep.subr.mxu0 0.0
    %355 = vmatpush1.msra.mxu0 0.0
    %356 = vmatprep.subr.mxu0 0.0
    %357 = vmatpush1.msra.mxu0 0.0
    %358 = vmatprep.subr.mxu0 0.0
    %359 = vmatpush1.msra.mxu0 0.0
    %360 = vmatprep.subr.mxu0 0.0
    %361 = vmatpush1.msra.mxu0 0.0
    %362 = vmatprep.subr.mxu0 0.0
    %363 = vmatpush1.msra.mxu0 0.0
    %364 = vmatprep.subr.mxu0 0.0
    %365 = vmatpush1.msra.mxu0 0.0
    %366 = vmatprep.subr.mxu0 0.0
    %v367 = vand.u32 %v59, 4294901760
    %368 = vmatpush1.msra.mxu0 %v367
    %369 = vmatprep.subr.mxu0 0.0
    %v370 = vand.u32 %v58, 4294901760
    %371 = vmatpush1.msra.mxu0 %v370
    %372 = vmatprep.subr.mxu0 0.0
    %v373 = vand.u32 %v57, 4294901760
    %374 = vmatpush1.msra.mxu0 %v373
    %375 = vmatprep.subr.mxu0 0.0
    %v376 = vand.u32 %v56, 4294901760
    %377 = vmatpush1.msra.mxu0 %v376
    %378 = vmatprep.subr.mxu0 0.0
    %379 = vmatpush2.msra.mxu0 0.0
    %380 = vmatprep.subr.mxu0 0.0
    %381 = vmatpush2.msra.mxu0 0.0
    %382 = vmatprep.subr.mxu0 0.0
    %383 = vmatpush2.msra.mxu0 0.0
    %384 = vmatprep.subr.mxu0 0.0
    %385 = vmatpush2.msra.mxu0 0.0
    %386 = vmatprep.subr.mxu0 0.0
    %387 = vmatpush2.msra.mxu0 0.0
    %388 = vmatprep.subr.mxu0 0.0
    %389 = vmatpush2.msra.mxu0 0.0
    %390 = vmatprep.subr.mxu0 0.0
    %391 = vmatpush2.msra.mxu0 0.0
    %392 = vmatprep.subr.mxu0 0.0
    %393 = vmatpush2.msra.mxu0 0.0
    %394 = vmatprep.subr.mxu0 0.0
    %395 = vmatpush2.msra.mxu0 0.0
    %396 = vmatprep.subr.mxu0 0.0
    %397 = vmatpush2.msra.mxu0 0.0
    %398 = vmatprep.subr.mxu0 0.0
    %399 = vmatpush2.msra.mxu0 0.0
    %400 = vmatprep.subr.mxu0 0.0
    %401 = vmatpush2.msra.mxu0 0.0
    %402 = vmatprep.subr.mxu0 0.0
    %403 = vmatpush2.msra.mxu0 0.0
    %404 = vmatprep.subr.mxu0 0.0
    %405 = vmatpush2.msra.mxu0 0.0
    %406 = vmatprep.subr.mxu0 0.0
    %407 = vmatpush2.msra.mxu0 0.0
    %408 = vmatprep.subr.mxu0 0.0
    %409 = vmatpush2.msra.mxu0 0.0
    %410 = vmatprep.mubr.f32.mxu0 0.0
    %v411 = vand.u32 %v64, 4294901760
    %v412 = vsub.f32 %v64, %v411
    %v413 = vand.u32 %v412, 4294901760
    %414 = vmatmul.mubr.f32.gmra.mxu0 %v413
    %v415 = vpop.f32.mrf.mxu0
    %v416 = vadd.f32 %v332, %v415
    %v417 = vpop.f32.mrf.mxu0
    %418 = vmatprep.mubr.f32.mxu0 0.0
    %v419 = vand.u32 %v67, 4294901760
    %v420 = vsub.f32 %v67, %v419
    %v421 = vand.u32 %v420, 4294901760
    %422 = vmatmul.mubr.f32.gmra.mxu0 %v421
    %v423 = vpop.f32.mrf.mxu0
    %v424 = vadd.f32 %v339, %v423
    %v425 = vpop.f32.mrf.mxu0
    %426 = vdwg.mxu0
    %427 = vmatprep.subr.mxu0 0.0
    %428 = vmatpush1.msra.mxu0 0.0
    %429 = vmatprep.subr.mxu0 0.0
    %430 = vmatpush1.msra.mxu0 0.0
    %431 = vmatprep.subr.mxu0 0.0
    %432 = vmatpush1.msra.mxu0 0.0
    %433 = vmatprep.subr.mxu0 0.0
    %434 = vmatpush1.msra.mxu0 0.0
    %435 = vmatprep.subr.mxu0 0.0
    %436 = vmatpush1.msra.mxu0 0.0
    %437 = vmatprep.subr.mxu0 0.0
    %438 = vmatpush1.msra.mxu0 0.0
    %439 = vmatprep.subr.mxu0 0.0
    %440 = vmatpush1.msra.mxu0 0.0
    %441 = vmatprep.subr.mxu0 0.0
    %442 = vmatpush1.msra.mxu0 0.0
    %443 = vmatprep.subr.mxu0 0.0
    %444 = vmatpush1.msra.mxu0 0.0
    %445 = vmatprep.subr.mxu0 0.0
    %446 = vmatpush1.msra.mxu0 0.0
    %447 = vmatprep.subr.mxu0 0.0
    %448 = vmatpush1.msra.mxu0 0.0
    %449 = vmatprep.subr.mxu0 0.0
    %450 = vmatpush1.msra.mxu0 0.0
    %451 = vmatprep.subr.mxu0 0.0
    %v452 = vand.u32 %v59, 4294901760
    %v453 = vsub.f32 %v59, %v452
    %v454 = vand.u32 %v453, 4294901760
    %455 = vmatpush1.msra.mxu0 %v454
    %456 = vmatprep.subr.mxu0 0.0
    %v457 = vand.u32 %v58, 4294901760
    %v458 = vsub.f32 %v58, %v457
    %v459 = vand.u32 %v458, 4294901760
    %460 = vmatpush1.msra.mxu0 %v459
    %461 = vmatprep.subr.mxu0 0.0
    %v462 = vand.u32 %v57, 4294901760
    %v463 = vsub.f32 %v57, %v462
    %v464 = vand.u32 %v463, 4294901760
    %465 = vmatpush1.msra.mxu0 %v464
    %466 = vmatprep.subr.mxu0 0.0
    %v467 = vand.u32 %v56, 4294901760
    %v468 = vsub.f32 %v56, %v467
    %v469 = vand.u32 %v468, 4294901760
    %470 = vmatpush1.msra.mxu0 %v469
    %471 = vmatprep.subr.mxu0 0.0
    %472 = vmatpush2.msra.mxu0 0.0
    %473 = vmatprep.subr.mxu0 0.0
    %474 = vmatpush2.msra.mxu0 0.0
    %475 = vmatprep.subr.mxu0 0.0
    %476 = vmatpush2.msra.mxu0 0.0
    %477 = vmatprep.subr.mxu0 0.0
    %478 = vmatpush2.msra.mxu0 0.0
    %479 = vmatprep.subr.mxu0 0.0
    %480 = vmatpush2.msra.mxu0 0.0
    %481 = vmatprep.subr.mxu0 0.0
    %482 = vmatpush2.msra.mxu0 0.0
    %483 = vmatprep.subr.mxu0 0.0
    %484 = vmatpush2.msra.mxu0 0.0
    %485 = vmatprep.subr.mxu0 0.0
    %486 = vmatpush2.msra.mxu0 0.0
    %487 = vmatprep.subr.mxu0 0.0
    %488 = vmatpush2.msra.mxu0 0.0
    %489 = vmatprep.subr.mxu0 0.0
    %490 = vmatpush2.msra.mxu0 0.0
    %491 = vmatprep.subr.mxu0 0.0
    %492 = vmatpush2.msra.mxu0 0.0
    %493 = vmatprep.subr.mxu0 0.0
    %494 = vmatpush2.msra.mxu0 0.0
    %495 = vmatprep.subr.mxu0 0.0
    %496 = vmatpush2.msra.mxu0 0.0
    %497 = vmatprep.subr.mxu0 0.0
    %498 = vmatpush2.msra.mxu0 0.0
    %499 = vmatprep.subr.mxu0 0.0
    %500 = vmatpush2.msra.mxu0 0.0
    %501 = vmatprep.subr.mxu0 0.0
    %502 = vmatpush2.msra.mxu0 0.0
    %503 = vmatprep.mubr.f32.mxu0 0.0
    %v504 = vand.u32 %v64, 4294901760
    %505 = vmatmul.mubr.f32.gmra.mxu0 %v504
    %v506 = vpop.f32.mrf.mxu0
    %v507 = vadd.f32 %v416, %v506
    %v508 = vpop.f32.mrf.mxu0
    %509 = vmatprep.mubr.f32.mxu0 0.0
    %v510 = vand.u32 %v67, 4294901760
    %511 = vmatmul.mubr.f32.gmra.mxu0 %v510
    %v512 = vpop.f32.mrf.mxu0
    %v513 = vadd.f32 %v424, %v512
    %v514 = vpop.f32.mrf.mxu0
    %515 = vdwg.mxu0
    %516 = vmatprep.subr.mxu0 0.0
    %517 = vmatpush1.msra.mxu0 0.0
    %518 = vmatprep.subr.mxu0 0.0
    %519 = vmatpush1.msra.mxu0 0.0
    %520 = vmatprep.subr.mxu0 0.0
    %521 = vmatpush1.msra.mxu0 0.0
    %522 = vmatprep.subr.mxu0 0.0
    %523 = vmatpush1.msra.mxu0 0.0
    %524 = vmatprep.subr.mxu0 0.0
    %525 = vmatpush1.msra.mxu0 0.0
    %526 = vmatprep.subr.mxu0 0.0
    %527 = vmatpush1.msra.mxu0 0.0
    %528 = vmatprep.subr.mxu0 0.0
    %529 = vmatpush1.msra.mxu0 0.0
    %530 = vmatprep.subr.mxu0 0.0
    %531 = vmatpush1.msra.mxu0 0.0
    %532 = vmatprep.subr.mxu0 0.0
    %533 = vmatpush1.msra.mxu0 0.0
    %534 = vmatprep.subr.mxu0 0.0
    %535 = vmatpush1.msra.mxu0 0.0
    %536 = vmatprep.subr.mxu0 0.0
    %537 = vmatpush1.msra.mxu0 0.0
    %538 = vmatprep.subr.mxu0 0.0
    %539 = vmatpush1.msra.mxu0 0.0
    %540 = vmatprep.subr.mxu0 0.0
    %v541 = vand.u32 %v59, 4294901760
    %542 = vmatpush1.msra.mxu0 %v541
    %543 = vmatprep.subr.mxu0 0.0
    %v544 = vand.u32 %v58, 4294901760
    %545 = vmatpush1.msra.mxu0 %v544
    %546 = vmatprep.subr.mxu0 0.0
    %v547 = vand.u32 %v57, 4294901760
    %548 = vmatpush1.msra.mxu0 %v547
    %549 = vmatprep.subr.mxu0 0.0
    %v550 = vand.u32 %v56, 4294901760
    %551 = vmatpush1.msra.mxu0 %v550
    %552 = vmatprep.subr.mxu0 0.0
    %553 = vmatpush2.msra.mxu0 0.0
    %554 = vmatprep.subr.mxu0 0.0
    %555 = vmatpush2.msra.mxu0 0.0
    %556 = vmatprep.subr.mxu0 0.0
    %557 = vmatpush2.msra.mxu0 0.0
    %558 = vmatprep.subr.mxu0 0.0
    %559 = vmatpush2.msra.mxu0 0.0
    %560 = vmatprep.subr.mxu0 0.0
    %561 = vmatpush2.msra.mxu0 0.0
    %562 = vmatprep.subr.mxu0 0.0
    %563 = vmatpush2.msra.mxu0 0.0
    %564 = vmatprep.subr.mxu0 0.0
    %565 = vmatpush2.msra.mxu0 0.0
    %566 = vmatprep.subr.mxu0 0.0
    %567 = vmatpush2.msra.mxu0 0.0
    %568 = vmatprep.subr.mxu0 0.0
    %569 = vmatpush2.msra.mxu0 0.0
    %570 = vmatprep.subr.mxu0 0.0
    %571 = vmatpush2.msra.mxu0 0.0
    %572 = vmatprep.subr.mxu0 0.0
    %573 = vmatpush2.msra.mxu0 0.0
    %574 = vmatprep.subr.mxu0 0.0
    %575 = vmatpush2.msra.mxu0 0.0
    %576 = vmatprep.subr.mxu0 0.0
    %577 = vmatpush2.msra.mxu0 0.0
    %578 = vmatprep.subr.mxu0 0.0
    %579 = vmatpush2.msra.mxu0 0.0
    %580 = vmatprep.subr.mxu0 0.0
    %581 = vmatpush2.msra.mxu0 0.0
    %582 = vmatprep.subr.mxu0 0.0
    %583 = vmatpush2.msra.mxu0 0.0
    %584 = vmatprep.mubr.f32.mxu0 0.0
    %v585 = vand.u32 %v64, 4294901760
    %586 = vmatmul.mubr.f32.gmra.mxu0 %v585
    %v587 = vpop.f32.mrf.mxu0
    %v588 = vadd.f32 %v507, %v587
    %v589 = vpop.f32.mrf.mxu0
    %590 = vmatprep.mubr.f32.mxu0 0.0
    %v591 = vand.u32 %v67, 4294901760
    %592 = vmatmul.mubr.f32.gmra.mxu0 %v591
    %v593 = vpop.f32.mrf.mxu0
    %v594 = vadd.f32 %v513, %v593
    %v595 = vpop.f32.mrf.mxu0
    %596 = vdwg.mxu0
    %v597 = vld [vmem:[%s2] sm:$0xf]
    %v598 = vld [vmem:[%s2 + $0x4] sm:$0xf]
    %v599 = vld [vmem:[%s2 + $0x8] sm:$0xf]
    %v600 = vld [vmem:[%s2 + $0xc] sm:$0xf]
    %v601 = vld [vmem:[%s2 + $0x10] sm:$0xf]
    %v602 = vld [vmem:[%s2 + $0x14] sm:$0xf]
    %v603 = vld [vmem:[%s2 + $0x18] sm:$0xf]
    %v604 = vld [vmem:[%s2 + $0x1c] sm:$0xf]
    %v605 = vld [vmem:[%s1 + $0x30] sm:$0xff]
    %v606 = vld [vmem:[%s1 + $0x38] sm:$0xff]
    %v607 = vld [vmem:[%s1 + $0x40] sm:$0xff]
    %v608 = vld [vmem:[%s1 + $0x48] sm:$0xff]
    %v609 = vld [vmem:[%s1 + $0x50] sm:$0xff]
    %v610 = vld [vmem:[%s1 + $0x58] sm:$0xff]
    %v611 = vld [vmem:[%s1 + $0x60] sm:$0xff]
    %v612 = vld [vmem:[%s1 + $0x68] sm:$0xff]
    %v613 = vld [vmem:[%s1 + $0x70] sm:$0xff]
    %v614 = vld [vmem:[%s1 + $0x78] sm:$0xff]
    %v615 = vld [vmem:[%s1 + $0x80] sm:$0xff]
    %v616 = vld [vmem:[%s1 + $0x88] sm:$0xff]
    %v617 = vld [vmem:[%s1 + $0x90] sm:$0xff]
    %v618 = vld [vmem:[%s1 + $0x98] sm:$0xff]
    %v619 = vld [vmem:[%s1 + $0xa0] sm:$0xff]
    %v620 = vld [vmem:[%s1 + $0xa8] sm:$0xff]
    %v621 = vld [vmem:[%s1 + $0xb0] sm:$0xff]
    %v622 = vld [vmem:[%s1 + $0xb8] sm:$0xff]
    %v623 = vld [vmem:[%s1 + $0xc0] sm:$0xff]
    %v624 = vld [vmem:[%s1 + $0xc8] sm:$0xff]
    %v625 = vld [vmem:[%s3] sm:$0x1]
    %v626 = vld [vmem:[%s3 + $0x1] sm:$0x1]
    %v627 = vld [vmem:[%s3 + $0x2] sm:$0x1]
    %v628 = vld [vmem:[%s3 + $0x3] sm:$0x1]
    %v629 = vld [vmem:[%s3 + $0x4] sm:$0x1]
    %v630 = vld [vmem:[%s3 + $0x5] sm:$0x1]
    %v631 = vld [vmem:[%s3 + $0x6] sm:$0x1]
    %v632 = vld [vmem:[%s3 + $0x7] sm:$0x1]
    %v633 = vpack.c.bf16 %v594, %v588
    %v634 = vlaneseq
    %v635 = vshrl.u32 %v634, 7
    %v636 = vsub.s32 0, %v635
    %v637 = vrot.slane %v625, %v636
    %v642 = vunpack.c.l.b16 %v597
    %v643 = vunpack.c.l.b16 %v598
    %v644 = vunpack.c.l.b16 %v599
    %v645 = vunpack.c.l.b16 %v600
    %v646 = vpack.c.b16 %v643, %v642
    %v647 = vpack.c.b16 %v645, %v644
    %v651 = vsel %vm62, %v633, 0
    %653 = vmatprep.subr.bf16.mxu0 0
    %654 = vmatpush1.bf16.msra.mxu0 0
    %655 = vmatprep.subr.bf16.mxu0 0
    %656 = vmatpush1.bf16.msra.mxu0 0
    %657 = vmatprep.subr.bf16.mxu0 0
    %658 = vmatpush1.bf16.msra.mxu0 0
    %659 = vmatprep.subr.bf16.mxu0 0
    %660 = vmatpush1.bf16.msra.mxu0 0
    %661 = vmatprep.subr.bf16.mxu0 0
    %662 = vmatpush1.bf16.msra.mxu0 0
    %663 = vmatprep.subr.bf16.mxu0 0
    %664 = vmatpush1.bf16.msra.mxu0 0
    %665 = vmatprep.subr.bf16.mxu0 0
    %666 = vmatpush1.bf16.msra.mxu0 %v647
    %667 = vmatprep.subr.bf16.mxu0 0
    %668 = vmatpush1.bf16.msra.mxu0 %v646
    %669 = vmatprep.subr.bf16.mxu0 0
    %670 = vmatpush2.bf16.msra.mxu0 0
    %671 = vmatprep.subr.bf16.mxu0 0
    %672 = vmatpush2.bf16.msra.mxu0 0
    %673 = vmatprep.subr.bf16.mxu0 0
    %674 = vmatpush2.bf16.msra.mxu0 0
    %675 = vmatprep.subr.bf16.mxu0 0
    %676 = vmatpush2.bf16.msra.mxu0 0
    %677 = vmatprep.subr.bf16.mxu0 0
    %678 = vmatpush2.bf16.msra.mxu0 0
    %679 = vmatprep.subr.bf16.mxu0 0
    %680 = vmatpush2.bf16.msra.mxu0 0
    %681 = vmatprep.subr.bf16.mxu0 0
    %682 = vmatpush2.bf16.msra.mxu0 0
    %683 = vmatprep.subr.bf16.mxu0 0
    %684 = vmatpush2.bf16.msra.mxu0 0
    %685 = vmatprep.mubr.bf16.mxu0 0
    %686 = vmatmul.mubr.bf16.gmra.mxu0 %v651
    %v687 = vpop.f32.mrf.mxu0
    %v688 = vadd.f32 %v637, %v687
    %v689 = vpop.f32.mrf.mxu0
    %v690 = vpop.f32.mrf.mxu0
    %v691 = vadd.f32 %v637, %v690
    %v692 = vpop.f32.mrf.mxu0
    %693 = vdwg.mxu0
    %702 = vrot.lane.b32.xlu0 %v24, 32
    %v703 = vpop.permute.xlu0 %702
    %704 = vrot.lane.b32.xlu0 %v25, 32
    %v705 = vpop.permute.xlu0 %704
    %706 = vrot.lane.b32.xlu0 %v26, 32
    %v707 = vpop.permute.xlu0 %706
    %708 = vrot.lane.b32.xlu0 %v27, 32
    %v709 = vpop.permute.xlu0 %708
    %710 = vrot.lane.b32.xlu0 %v28, 32
    %v711 = vpop.permute.xlu0 %710
    %712 = vrot.lane.b32.xlu0 %v29, 32
    %v713 = vpop.permute.xlu0 %712
    %714 = vrot.lane.b32.xlu0 %v30, 32
    %v715 = vpop.permute.xlu0 %714
    %716 = vrot.lane.b32.xlu0 %v31, 32
    %v717 = vpop.permute.xlu0 %716
    %v726 = vmul.f32 %v688, %v703
    %v727 = vmul.f32 %v691, %v705
    %v728 = vmul.f32 %v688, %v707
    %v729 = vmul.f32 %v691, %v709
    %v730 = vmul.f32 %v688, %v711
    %v731 = vmul.f32 %v691, %v713
    %v732 = vmul.f32 %v688, %v715
    %v733 = vmul.f32 %v691, %v717
    %734 = vrot.lane.b32.xlu0 %v24, 64
    %v735 = vpop.permute.xlu0 %734
    %736 = vrot.lane.b32.xlu0 %v25, 64
    %v737 = vpop.permute.xlu0 %736
    %738 = vrot.lane.b32.xlu0 %v26, 64
    %v739 = vpop.permute.xlu0 %738
    %740 = vrot.lane.b32.xlu0 %v27, 64
    %v741 = vpop.permute.xlu0 %740
    %742 = vrot.lane.b32.xlu0 %v28, 64
    %v743 = vpop.permute.xlu0 %742
    %744 = vrot.lane.b32.xlu0 %v29, 64
    %v745 = vpop.permute.xlu0 %744
    %746 = vrot.lane.b32.xlu0 %v30, 64
    %v747 = vpop.permute.xlu0 %746
    %748 = vrot.lane.b32.xlu0 %v31, 64
    %v749 = vpop.permute.xlu0 %748
    %v758 = vmul.f32 %v688, %v735
    %v759 = vmul.f32 %v691, %v737
    %v760 = vmul.f32 %v688, %v739
    %v761 = vmul.f32 %v691, %v741
    %v762 = vmul.f32 %v688, %v743
    %v763 = vmul.f32 %v691, %v745
    %v764 = vmul.f32 %v688, %v747
    %v765 = vmul.f32 %v691, %v749
    %v766 = vpack.c.bf16 %v691, %v688
    %v767 = vpack.c.bf16 %v727, %v726
    %v768 = vpack.c.bf16 %v729, %v728
    %v769 = vpack.c.bf16 %v731, %v730
    %v770 = vpack.c.bf16 %v733, %v732
    %775 = vrot.lane.b32.xlu0 %v767, 96
    %v776 = vpop.permute.xlu0 %775
    %777 = vrot.lane.b32.xlu0 %v768, 96
    %v778 = vpop.permute.xlu0 %777
    %779 = vrot.lane.b32.xlu0 %v769, 96
    %v780 = vpop.permute.xlu0 %779
    %781 = vrot.lane.b32.xlu0 %v770, 96
    %v782 = vpop.permute.xlu0 %781
    %v784 = vsel %vm62, %v766, 0
    %v787 = vsel %vm62, %v776, 0
    %v790 = vsel %vm62, %v778, 0
    %v793 = vsel %vm62, %v780, 0
    %v796 = vsel %vm62, %v782, 0
    %798 = vmatprep.subr.bf16.mxu0 0
    %799 = vmatpush1.bf16.xpose.msra.mxu0 0
    %800 = vmatprep.subr.bf16.mxu0 0
    %801 = vmatpush1.bf16.xpose.msra.mxu0 0
    %802 = vmatprep.subr.bf16.mxu0 0
    %803 = vmatpush1.bf16.xpose.msra.mxu0 0
    %804 = vmatprep.subr.bf16.mxu0 0
    %805 = vmatpush1.bf16.xpose.msra.mxu0 0
    %806 = vmatprep.subr.bf16.mxu0 0
    %807 = vmatpush1.bf16.xpose.msra.mxu0 %v796
    %808 = vmatprep.subr.bf16.mxu0 0
    %809 = vmatpush1.bf16.xpose.msra.mxu0 %v793
    %810 = vmatprep.subr.bf16.mxu0 0
    %811 = vmatpush1.bf16.xpose.msra.mxu0 %v790
    %812 = vmatprep.subr.bf16.mxu0 0
    %813 = vmatpush1.bf16.xpose.msra.mxu0 %v787
    %814 = vmatprep.subr.bf16.mxu0 0
    %815 = vmatpush2.bf16.xpose.msra.mxu0 0
    %816 = vmatprep.subr.bf16.mxu0 0
    %817 = vmatpush2.bf16.xpose.msra.mxu0 0
    %818 = vmatprep.subr.bf16.mxu0 0
    %819 = vmatpush2.bf16.xpose.msra.mxu0 0
    %820 = vmatprep.subr.bf16.mxu0 0
    %821 = vmatpush2.bf16.xpose.msra.mxu0 0
    %822 = vmatprep.subr.bf16.mxu0 0
    %823 = vmatpush2.bf16.xpose.msra.mxu0 0
    %824 = vmatprep.subr.bf16.mxu0 0
    %825 = vmatpush2.bf16.xpose.msra.mxu0 0
    %826 = vmatprep.subr.bf16.mxu0 0
    %827 = vmatpush2.bf16.xpose.msra.mxu0 0
    %828 = vmatprep.subr.bf16.mxu0 0
    %829 = vmatpush2.bf16.xpose.msra.mxu0 0
    %830 = vmatprep.mubr.bf16.mxu0 0
    %831 = vmatmul.mubr.bf16.gmra.mxu0 %v784
    %v832 = vpop.f32.mrf.mxu0
    %v833 = vadd.f32 %v22, %v832
    %v834 = vpop.f32.mrf.mxu0
    %v835 = vpop.f32.mrf.mxu0
    %v836 = vadd.f32 %v23, %v835
    %v837 = vpop.f32.mrf.mxu0
    %838 = vdwg.mxu0
    %vm839 = vcmask 523264
    %v840 = vsel %vm839, %v833, -inf
    %841 = vmax.xlane.f32.xlu0 %v840
    %v842 = vpop.xlane.xlu0 %841
    %v843 = vsel %vm839, %v836, -inf
    %844 = vmax.xlane.f32.xlu0 %v843
    %v845 = vpop.xlane.xlu0 %844
    %v846 = vsub.f32 %v833, %v842
    %v847 = vsub.f32 %v836, %v845
    %v848 = vmul.f32 %v846, 1.442695
    %v849 = vpow.pop %v848
    %v850 = vmul.f32 %v847, 1.442695
    %v851 = vpow.pop %v850
    %v853 = vsel %vm839, %v849, 0
    %v856 = vsel %vm839, %v851, 0
    %858 = vmatprep.subr.mxu0 0.0
    %859 = vmatpush1.msra.mxu0 0.0
    %860 = vmatprep.subr.mxu0 0.0
    %861 = vmatpush1.msra.mxu0 0.0
    %862 = vmatprep.subr.mxu0 0.0
    %863 = vmatpush1.msra.mxu0 0.0
    %864 = vmatprep.subr.mxu0 0.0
    %865 = vmatpush1.msra.mxu0 0.0
    %866 = vmatprep.subr.mxu0 0.0
    %867 = vmatpush1.msra.mxu0 0.0
    %868 = vmatprep.subr.mxu0 0.0
    %869 = vmatpush1.msra.mxu0 0.0
    %870 = vmatprep.subr.mxu0 0.0
    %871 = vmatpush1.msra.mxu0 0.0
    %872 = vmatprep.subr.mxu0 0.0
    %873 = vmatpush1.msra.mxu0 0.0
    %874 = vmatprep.subr.mxu0 0.0
    %v875 = vand.u32 %v39, 4294901760
    %876 = vmatpush1.msra.mxu0 %v875
    %877 = vmatprep.subr.mxu0 0.0
    %v878 = vand.u32 %v38, 4294901760
    %879 = vmatpush1.msra.mxu0 %v878
    %880 = vmatprep.subr.mxu0 0.0
    %v881 = vand.u32 %v37, 4294901760
    %882 = vmatpush1.msra.mxu0 %v881
    %883 = vmatprep.subr.mxu0 0.0
    %v884 = vand.u32 %v36, 4294901760
    %885 = vmatpush1.msra.mxu0 %v884
    %886 = vmatprep.subr.mxu0 0.0
    %v887 = vand.u32 %v35, 4294901760
    %888 = vmatpush1.msra.mxu0 %v887
    %889 = vmatprep.subr.mxu0 0.0
    %v890 = vand.u32 %v34, 4294901760
    %891 = vmatpush1.msra.mxu0 %v890
    %892 = vmatprep.subr.mxu0 0.0
    %v893 = vand.u32 %v33, 4294901760
    %894 = vmatpush1.msra.mxu0 %v893
    %895 = vmatprep.subr.mxu0 0.0
    %v896 = vand.u32 %v32, 4294901760
    %897 = vmatpush1.msra.mxu0 %v896
    %898 = vmatprep.subr.mxu0 0.0
    %899 = vmatpush2.msra.mxu0 0.0
    %900 = vmatprep.subr.mxu0 0.0
    %901 = vmatpush2.msra.mxu0 0.0
    %902 = vmatprep.subr.mxu0 0.0
    %903 = vmatpush2.msra.mxu0 0.0
    %904 = vmatprep.subr.mxu0 0.0
    %905 = vmatpush2.msra.mxu0 0.0
    %906 = vmatprep.subr.mxu0 0.0
    %907 = vmatpush2.msra.mxu0 0.0
    %908 = vmatprep.subr.mxu0 0.0
    %909 = vmatpush2.msra.mxu0 0.0
    %910 = vmatprep.subr.mxu0 0.0
    %911 = vmatpush2.msra.mxu0 0.0
    %912 = vmatprep.subr.mxu0 0.0
    %913 = vmatpush2.msra.mxu0 0.0
    %914 = vmatprep.subr.mxu0 0.0
    %915 = vmatpush2.msra.mxu0 0.0
    %916 = vmatprep.subr.mxu0 0.0
    %917 = vmatpush2.msra.mxu0 0.0
    %918 = vmatprep.subr.mxu0 0.0
    %919 = vmatpush2.msra.mxu0 0.0
    %920 = vmatprep.subr.mxu0 0.0
    %921 = vmatpush2.msra.mxu0 0.0
    %922 = vmatprep.subr.mxu0 0.0
    %923 = vmatpush2.msra.mxu0 0.0
    %924 = vmatprep.subr.mxu0 0.0
    %925 = vmatpush2.msra.mxu0 0.0
    %926 = vmatprep.subr.mxu0 0.0
    %927 = vmatpush2.msra.mxu0 0.0
    %928 = vmatprep.subr.mxu0 0.0
    %929 = vmatpush2.msra.mxu0 0.0
    %930 = vmatprep.mubr.f32.mxu0 0.0
    %v931 = vand.u32 %v853, 4294901760
    %v932 = vsub.f32 %v853, %v931
    %v933 = vand.u32 %v932, 4294901760
    %v934 = vsub.f32 %v932, %v933
    %v935 = vand.u32 %v934, 4294901760
    %936 = vmatmul.mubr.f32.gmra.mxu0 %v935
    %v937 = vpop.f32.mrf.mxu0
    %v938 = vadd.f32 0.0, %v937
    %v939 = vpop.f32.mrf.mxu0
    %940 = vmatprep.mubr.f32.mxu0 0.0
    %v941 = vand.u32 %v856, 4294901760
    %v942 = vsub.f32 %v856, %v941
    %v943 = vand.u32 %v942, 4294901760
    %v944 = vsub.f32 %v942, %v943
    %v945 = vand.u32 %v944, 4294901760
    %946 = vmatmul.mubr.f32.gmra.mxu0 %v945
    %v947 = vpop.f32.mrf.mxu0
    %v948 = vadd.f32 0.0, %v947
    %v949 = vpop.f32.mrf.mxu0
    %950 = vdwg.mxu0
    %951 = vmatprep.subr.mxu0 0.0
    %952 = vmatpush1.msra.mxu0 0.0
    %953 = vmatprep.subr.mxu0 0.0
    %954 = vmatpush1.msra.mxu0 0.0
    %955 = vmatprep.subr.mxu0 0.0
    %956 = vmatpush1.msra.mxu0 0.0
    %957 = vmatprep.subr.mxu0 0.0
    %958 = vmatpush1.msra.mxu0 0.0
    %959 = vmatprep.subr.mxu0 0.0
    %960 = vmatpush1.msra.mxu0 0.0
    %961 = vmatprep.subr.mxu0 0.0
    %962 = vmatpush1.msra.mxu0 0.0
    %963 = vmatprep.subr.mxu0 0.0
    %964 = vmatpush1.msra.mxu0 0.0
    %965 = vmatprep.subr.mxu0 0.0
    %966 = vmatpush1.msra.mxu0 0.0
    %967 = vmatprep.subr.mxu0 0.0
    %v968 = vand.u32 %v39, 4294901760
    %v969 = vsub.f32 %v39, %v968
    %v970 = vand.u32 %v969, 4294901760
    %v971 = vsub.f32 %v969, %v970
    %v972 = vand.u32 %v971, 4294901760
    %973 = vmatpush1.msra.mxu0 %v972
    %974 = vmatprep.subr.mxu0 0.0
    %v975 = vand.u32 %v38, 4294901760
    %v976 = vsub.f32 %v38, %v975
    %v977 = vand.u32 %v976, 4294901760
    %v978 = vsub.f32 %v976, %v977
    %v979 = vand.u32 %v978, 4294901760
    %980 = vmatpush1.msra.mxu0 %v979
    %981 = vmatprep.subr.mxu0 0.0
    %v982 = vand.u32 %v37, 4294901760
    %v983 = vsub.f32 %v37, %v982
    %v984 = vand.u32 %v983, 4294901760
    %v985 = vsub.f32 %v983, %v984
    %v986 = vand.u32 %v985, 4294901760
    %987 = vmatpush1.msra.mxu0 %v986
    %988 = vmatprep.subr.mxu0 0.0
    %v989 = vand.u32 %v36, 4294901760
    %v990 = vsub.f32 %v36, %v989
    %v991 = vand.u32 %v990, 4294901760
    %v992 = vsub.f32 %v990, %v991
    %v993 = vand.u32 %v992, 4294901760
    %994 = vmatpush1.msra.mxu0 %v993
    %995 = vmatprep.subr.mxu0 0.0
    %v996 = vand.u32 %v35, 4294901760
    %v997 = vsub.f32 %v35, %v996
    %v998 = vand.u32 %v997, 4294901760
    %v999 = vsub.f32 %v997, %v998
    %v1000 = vand.u32 %v999, 4294901760
    %1001 = vmatpush1.msra.mxu0 %v1000
    %1002 = vmatprep.subr.mxu0 0.0
    %v1003 = vand.u32 %v34, 4294901760
    %v1004 = vsub.f32 %v34, %v1003
    %v1005 = vand.u32 %v1004, 4294901760
    %v1006 = vsub.f32 %v1004, %v1005
    %v1007 = vand.u32 %v1006, 4294901760
    %1008 = vmatpush1.msra.mxu0 %v1007
    %1009 = vmatprep.subr.mxu0 0.0
    %v1010 = vand.u32 %v33, 4294901760
    %v1011 = vsub.f32 %v33, %v1010
    %v1012 = vand.u32 %v1011, 4294901760
    %v1013 = vsub.f32 %v1011, %v1012
    %v1014 = vand.u32 %v1013, 4294901760
    %1015 = vmatpush1.msra.mxu0 %v1014
    %1016 = vmatprep.subr.mxu0 0.0
    %v1017 = vand.u32 %v32, 4294901760
    %v1018 = vsub.f32 %v32, %v1017
    %v1019 = vand.u32 %v1018, 4294901760
    %v1020 = vsub.f32 %v1018, %v1019
    %v1021 = vand.u32 %v1020, 4294901760
    %1022 = vmatpush1.msra.mxu0 %v1021
    %1023 = vmatprep.subr.mxu0 0.0
    %1024 = vmatpush2.msra.mxu0 0.0
    %1025 = vmatprep.subr.mxu0 0.0
    %1026 = vmatpush2.msra.mxu0 0.0
    %1027 = vmatprep.subr.mxu0 0.0
    %1028 = vmatpush2.msra.mxu0 0.0
    %1029 = vmatprep.subr.mxu0 0.0
    %1030 = vmatpush2.msra.mxu0 0.0
    %1031 = vmatprep.subr.mxu0 0.0
    %1032 = vmatpush2.msra.mxu0 0.0
    %1033 = vmatprep.subr.mxu0 0.0
    %1034 = vmatpush2.msra.mxu0 0.0
    %1035 = vmatprep.subr.mxu0 0.0
    %1036 = vmatpush2.msra.mxu0 0.0
    %1037 = vmatprep.subr.mxu0 0.0
    %1038 = vmatpush2.msra.mxu0 0.0
    %1039 = vmatprep.subr.mxu0 0.0
    %1040 = vmatpush2.msra.mxu0 0.0
    %1041 = vmatprep.subr.mxu0 0.0
    %1042 = vmatpush2.msra.mxu0 0.0
    %1043 = vmatprep.subr.mxu0 0.0
    %1044 = vmatpush2.msra.mxu0 0.0
    %1045 = vmatprep.subr.mxu0 0.0
    %1046 = vmatpush2.msra.mxu0 0.0
    %1047 = vmatprep.subr.mxu0 0.0
    %1048 = vmatpush2.msra.mxu0 0.0
    %1049 = vmatprep.subr.mxu0 0.0
    %1050 = vmatpush2.msra.mxu0 0.0
    %1051 = vmatprep.subr.mxu0 0.0
    %1052 = vmatpush2.msra.mxu0 0.0
    %1053 = vmatprep.subr.mxu0 0.0
    %1054 = vmatpush2.msra.mxu0 0.0
    %1055 = vmatprep.mubr.f32.mxu0 0.0
    %v1056 = vand.u32 %v853, 4294901760
    %1057 = vmatmul.mubr.f32.gmra.mxu0 %v1056
    %v1058 = vpop.f32.mrf.mxu0
    %v1059 = vadd.f32 %v938, %v1058
    %v1060 = vpop.f32.mrf.mxu0
    %1061 = vmatprep.mubr.f32.mxu0 0.0
    %v1062 = vand.u32 %v856, 4294901760
    %1063 = vmatmul.mubr.f32.gmra.mxu0 %v1062
    %v1064 = vpop.f32.mrf.mxu0
    %v1065 = vadd.f32 %v948, %v1064
    %v1066 = vpop.f32.mrf.mxu0
    %1067 = vdwg.mxu0
    %1068 = vmatprep.subr.mxu0 0.0
    %1069 = vmatpush1.msra.mxu0 0.0
    %1070 = vmatprep.subr.mxu0 0.0
    %1071 = vmatpush1.msra.mxu0 0.0
    %1072 = vmatprep.subr.mxu0 0.0
    %1073 = vmatpush1.msra.mxu0 0.0
    %1074 = vmatprep.subr.mxu0 0.0
    %1075 = vmatpush1.msra.mxu0 0.0
    %1076 = vmatprep.subr.mxu0 0.0
    %1077 = vmatpush1.msra.mxu0 0.0
    %1078 = vmatprep.subr.mxu0 0.0
    %1079 = vmatpush1.msra.mxu0 0.0
    %1080 = vmatprep.subr.mxu0 0.0
    %1081 = vmatpush1.msra.mxu0 0.0
    %1082 = vmatprep.subr.mxu0 0.0
    %1083 = vmatpush1.msra.mxu0 0.0
    %1084 = vmatprep.subr.mxu0 0.0
    %v1085 = vand.u32 %v39, 4294901760
    %v1086 = vsub.f32 %v39, %v1085
    %1087 = vmatpush1.msra.mxu0 %v1086
    %1088 = vmatprep.subr.mxu0 0.0
    %v1089 = vand.u32 %v38, 4294901760
    %v1090 = vsub.f32 %v38, %v1089
    %1091 = vmatpush1.msra.mxu0 %v1090
    %1092 = vmatprep.subr.mxu0 0.0
    %v1093 = vand.u32 %v37, 4294901760
    %v1094 = vsub.f32 %v37, %v1093
    %1095 = vmatpush1.msra.mxu0 %v1094
    %1096 = vmatprep.subr.mxu0 0.0
    %v1097 = vand.u32 %v36, 4294901760
    %v1098 = vsub.f32 %v36, %v1097
    %1099 = vmatpush1.msra.mxu0 %v1098
    %1100 = vmatprep.subr.mxu0 0.0
    %v1101 = vand.u32 %v35, 4294901760
    %v1102 = vsub.f32 %v35, %v1101
    %1103 = vmatpush1.msra.mxu0 %v1102
    %1104 = vmatprep.subr.mxu0 0.0
    %v1105 = vand.u32 %v34, 4294901760
    %v1106 = vsub.f32 %v34, %v1105
    %1107 = vmatpush1.msra.mxu0 %v1106
    %1108 = vmatprep.subr.mxu0 0.0
    %v1109 = vand.u32 %v33, 4294901760
    %v1110 = vsub.f32 %v33, %v1109
    %1111 = vmatpush1.msra.mxu0 %v1110
    %1112 = vmatprep.subr.mxu0 0.0
    %v1113 = vand.u32 %v32, 4294901760
    %v1114 = vsub.f32 %v32, %v1113
    %1115 = vmatpush1.msra.mxu0 %v1114
    %1116 = vmatprep.subr.mxu0 0.0
    %1117 = vmatpush2.msra.mxu0 0.0
    %1118 = vmatprep.subr.mxu0 0.0
    %1119 = vmatpush2.msra.mxu0 0.0
    %1120 = vmatprep.subr.mxu0 0.0
    %1121 = vmatpush2.msra.mxu0 0.0
    %1122 = vmatprep.subr.mxu0 0.0
    %1123 = vmatpush2.msra.mxu0 0.0
    %1124 = vmatprep.subr.mxu0 0.0
    %1125 = vmatpush2.msra.mxu0 0.0
    %1126 = vmatprep.subr.mxu0 0.0
    %1127 = vmatpush2.msra.mxu0 0.0
    %1128 = vmatprep.subr.mxu0 0.0
    %1129 = vmatpush2.msra.mxu0 0.0
    %1130 = vmatprep.subr.mxu0 0.0
    %1131 = vmatpush2.msra.mxu0 0.0
    %1132 = vmatprep.subr.mxu0 0.0
    %1133 = vmatpush2.msra.mxu0 0.0
    %1134 = vmatprep.subr.mxu0 0.0
    %1135 = vmatpush2.msra.mxu0 0.0
    %1136 = vmatprep.subr.mxu0 0.0
    %1137 = vmatpush2.msra.mxu0 0.0
    %1138 = vmatprep.subr.mxu0 0.0
    %1139 = vmatpush2.msra.mxu0 0.0
    %1140 = vmatprep.subr.mxu0 0.0
    %1141 = vmatpush2.msra.mxu0 0.0
    %1142 = vmatprep.subr.mxu0 0.0
    %1143 = vmatpush2.msra.mxu0 0.0
    %1144 = vmatprep.subr.mxu0 0.0
    %1145 = vmatpush2.msra.mxu0 0.0
    %1146 = vmatprep.subr.mxu0 0.0
    %1147 = vmatpush2.msra.mxu0 0.0
    %1148 = vmatprep.mubr.f32.mxu0 0.0
    %v1149 = vand.u32 %v853, 4294901760
    %v1150 = vsub.f32 %v853, %v1149
    %1151 = vmatmul.mubr.f32.gmra.mxu0 %v1150
    %v1152 = vpop.f32.mrf.mxu0
    %v1153 = vadd.f32 %v1059, %v1152
    %v1154 = vpop.f32.mrf.mxu0
    %1155 = vmatprep.mubr.f32.mxu0 0.0
    %v1156 = vand.u32 %v856, 4294901760
    %v1157 = vsub.f32 %v856, %v1156
    %1158 = vmatmul.mubr.f32.gmra.mxu0 %v1157
    %v1159 = vpop.f32.mrf.mxu0
    %v1160 = vadd.f32 %v1065, %v1159
    %v1161 = vpop.f32.mrf.mxu0
    %1162 = vdwg.mxu0
    %1163 = vmatprep.subr.mxu0 0.0
    %1164 = vmatpush1.msra.mxu0 0.0
    %1165 = vmatprep.subr.mxu0 0.0
    %1166 = vmatpush1.msra.mxu0 0.0
    %1167 = vmatprep.subr.mxu0 0.0
    %1168 = vmatpush1.msra.mxu0 0.0
    %1169 = vmatprep.subr.mxu0 0.0
    %1170 = vmatpush1.msra.mxu0 0.0
    %1171 = vmatprep.subr.mxu0 0.0
    %1172 = vmatpush1.msra.mxu0 0.0
    %1173 = vmatprep.subr.mxu0 0.0
    %1174 = vmatpush1.msra.mxu0 0.0
    %1175 = vmatprep.subr.mxu0 0.0
    %1176 = vmatpush1.msra.mxu0 0.0
    %1177 = vmatprep.subr.mxu0 0.0
    %1178 = vmatpush1.msra.mxu0 0.0
    %1179 = vmatprep.subr.mxu0 0.0
    %v1180 = vand.u32 %v39, 4294901760
    %1181 = vmatpush1.msra.mxu0 %v1180
    %1182 = vmatprep.subr.mxu0 0.0
    %v1183 = vand.u32 %v38, 4294901760
    %1184 = vmatpush1.msra.mxu0 %v1183
    %1185 = vmatprep.subr.mxu0 0.0
    %v1186 = vand.u32 %v37, 4294901760
    %1187 = vmatpush1.msra.mxu0 %v1186
    %1188 = vmatprep.subr.mxu0 0.0
    %v1189 = vand.u32 %v36, 4294901760
    %1190 = vmatpush1.msra.mxu0 %v1189
    %1191 = vmatprep.subr.mxu0 0.0
    %v1192 = vand.u32 %v35, 4294901760
    %1193 = vmatpush1.msra.mxu0 %v1192
    %1194 = vmatprep.subr.mxu0 0.0
    %v1195 = vand.u32 %v34, 4294901760
    %1196 = vmatpush1.msra.mxu0 %v1195
    %1197 = vmatprep.subr.mxu0 0.0
    %v1198 = vand.u32 %v33, 4294901760
    %1199 = vmatpush1.msra.mxu0 %v1198
    %1200 = vmatprep.subr.mxu0 0.0
    %v1201 = vand.u32 %v32, 4294901760
    %1202 = vmatpush1.msra.mxu0 %v1201
    %1203 = vmatprep.subr.mxu0 0.0
    %1204 = vmatpush2.msra.mxu0 0.0
    %1205 = vmatprep.subr.mxu0 0.0
    %1206 = vmatpush2.msra.mxu0 0.0
    %1207 = vmatprep.subr.mxu0 0.0
    %1208 = vmatpush2.msra.mxu0 0.0
    %1209 = vmatprep.subr.mxu0 0.0
    %1210 = vmatpush2.msra.mxu0 0.0
    %1211 = vmatprep.subr.mxu0 0.0
    %1212 = vmatpush2.msra.mxu0 0.0
    %1213 = vmatprep.subr.mxu0 0.0
    %1214 = vmatpush2.msra.mxu0 0.0
    %1215 = vmatprep.subr.mxu0 0.0
    %1216 = vmatpush2.msra.mxu0 0.0
    %1217 = vmatprep.subr.mxu0 0.0
    %1218 = vmatpush2.msra.mxu0 0.0
    %1219 = vmatprep.subr.mxu0 0.0
    %1220 = vmatpush2.msra.mxu0 0.0
    %1221 = vmatprep.subr.mxu0 0.0
    %1222 = vmatpush2.msra.mxu0 0.0
    %1223 = vmatprep.subr.mxu0 0.0
    %1224 = vmatpush2.msra.mxu0 0.0
    %1225 = vmatprep.subr.mxu0 0.0
    %1226 = vmatpush2.msra.mxu0 0.0
    %1227 = vmatprep.subr.mxu0 0.0
    %1228 = vmatpush2.msra.mxu0 0.0
    %1229 = vmatprep.subr.mxu0 0.0
    %1230 = vmatpush2.msra.mxu0 0.0
    %1231 = vmatprep.subr.mxu0 0.0
    %1232 = vmatpush2.msra.mxu0 0.0
    %1233 = vmatprep.subr.mxu0 0.0
    %1234 = vmatpush2.msra.mxu0 0.0
    %1235 = vmatprep.mubr.f32.mxu0 0.0
    %v1236 = vand.u32 %v853, 4294901760
    %v1237 = vsub.f32 %v853, %v1236
    %v1238 = vand.u32 %v1237, 4294901760
    %1239 = vmatmul.mubr.f32.gmra.mxu0 %v1238
    %v1240 = vpop.f32.mrf.mxu0
    %v1241 = vadd.f32 %v1153, %v1240
    %v1242 = vpop.f32.mrf.mxu0
    %1243 = vmatprep.mubr.f32.mxu0 0.0
    %v1244 = vand.u32 %v856, 4294901760
    %v1245 = vsub.f32 %v856, %v1244
    %v1246 = vand.u32 %v1245, 4294901760
    %1247 = vmatmul.mubr.f32.gmra.mxu0 %v1246
    %v1248 = vpop.f32.mrf.mxu0
    %v1249 = vadd.f32 %v1160, %v1248
    %v1250 = vpop.f32.mrf.mxu0
    %1251 = vdwg.mxu0
    %1252 = vmatprep.subr.mxu0 0.0
    %1253 = vmatpush1.msra.mxu0 0.0
    %1254 = vmatprep.subr.mxu0 0.0
    %1255 = vmatpush1.msra.mxu0 0.0
    %1256 = vmatprep.subr.mxu0 0.0
    %1257 = vmatpush1.msra.mxu0 0.0
    %1258 = vmatprep.subr.mxu0 0.0
    %1259 = vmatpush1.msra.mxu0 0.0
    %1260 = vmatprep.subr.mxu0 0.0
    %1261 = vmatpush1.msra.mxu0 0.0
    %1262 = vmatprep.subr.mxu0 0.0
    %1263 = vmatpush1.msra.mxu0 0.0
    %1264 = vmatprep.subr.mxu0 0.0
    %1265 = vmatpush1.msra.mxu0 0.0
    %1266 = vmatprep.subr.mxu0 0.0
    %1267 = vmatpush1.msra.mxu0 0.0
    %1268 = vmatprep.subr.mxu0 0.0
    %v1269 = vand.u32 %v39, 4294901760
    %v1270 = vsub.f32 %v39, %v1269
    %v1271 = vand.u32 %v1270, 4294901760
    %1272 = vmatpush1.msra.mxu0 %v1271
    %1273 = vmatprep.subr.mxu0 0.0
    %v1274 = vand.u32 %v38, 4294901760
    %v1275 = vsub.f32 %v38, %v1274
    %v1276 = vand.u32 %v1275, 4294901760
    %1277 = vmatpush1.msra.mxu0 %v1276
    %1278 = vmatprep.subr.mxu0 0.0
    %v1279 = vand.u32 %v37, 4294901760
    %v1280 = vsub.f32 %v37, %v1279
    %v1281 = vand.u32 %v1280, 4294901760
    %1282 = vmatpush1.msra.mxu0 %v1281
    %1283 = vmatprep.subr.mxu0 0.0
    %v1284 = vand.u32 %v36, 4294901760
    %v1285 = vsub.f32 %v36, %v1284
    %v1286 = vand.u32 %v1285, 4294901760
    %1287 = vmatpush1.msra.mxu0 %v1286
    %1288 = vmatprep.subr.mxu0 0.0
    %v1289 = vand.u32 %v35, 4294901760
    %v1290 = vsub.f32 %v35, %v1289
    %v1291 = vand.u32 %v1290, 4294901760
    %1292 = vmatpush1.msra.mxu0 %v1291
    %1293 = vmatprep.subr.mxu0 0.0
    %v1294 = vand.u32 %v34, 4294901760
    %v1295 = vsub.f32 %v34, %v1294
    %v1296 = vand.u32 %v1295, 4294901760
    %1297 = vmatpush1.msra.mxu0 %v1296
    %1298 = vmatprep.subr.mxu0 0.0
    %v1299 = vand.u32 %v33, 4294901760
    %v1300 = vsub.f32 %v33, %v1299
    %v1301 = vand.u32 %v1300, 4294901760
    %1302 = vmatpush1.msra.mxu0 %v1301
    %1303 = vmatprep.subr.mxu0 0.0
    %v1304 = vand.u32 %v32, 4294901760
    %v1305 = vsub.f32 %v32, %v1304
    %v1306 = vand.u32 %v1305, 4294901760
    %1307 = vmatpush1.msra.mxu0 %v1306
    %1308 = vmatprep.subr.mxu0 0.0
    %1309 = vmatpush2.msra.mxu0 0.0
    %1310 = vmatprep.subr.mxu0 0.0
    %1311 = vmatpush2.msra.mxu0 0.0
    %1312 = vmatprep.subr.mxu0 0.0
    %1313 = vmatpush2.msra.mxu0 0.0
    %1314 = vmatprep.subr.mxu0 0.0
    %1315 = vmatpush2.msra.mxu0 0.0
    %1316 = vmatprep.subr.mxu0 0.0
    %1317 = vmatpush2.msra.mxu0 0.0
    %1318 = vmatprep.subr.mxu0 0.0
    %1319 = vmatpush2.msra.mxu0 0.0
    %1320 = vmatprep.subr.mxu0 0.0
    %1321 = vmatpush2.msra.mxu0 0.0
    %1322 = vmatprep.subr.mxu0 0.0
    %1323 = vmatpush2.msra.mxu0 0.0
    %1324 = vmatprep.subr.mxu0 0.0
    %1325 = vmatpush2.msra.mxu0 0.0
    %1326 = vmatprep.subr.mxu0 0.0
    %1327 = vmatpush2.msra.mxu0 0.0
    %1328 = vmatprep.subr.mxu0 0.0
    %1329 = vmatpush2.msra.mxu0 0.0
    %1330 = vmatprep.subr.mxu0 0.0
    %1331 = vmatpush2.msra.mxu0 0.0
    %1332 = vmatprep.subr.mxu0 0.0
    %1333 = vmatpush2.msra.mxu0 0.0
    %1334 = vmatprep.subr.mxu0 0.0
    %1335 = vmatpush2.msra.mxu0 0.0
    %1336 = vmatprep.subr.mxu0 0.0
    %1337 = vmatpush2.msra.mxu0 0.0
    %1338 = vmatprep.subr.mxu0 0.0
    %1339 = vmatpush2.msra.mxu0 0.0
    %1340 = vmatprep.mubr.f32.mxu0 0.0
    %v1341 = vand.u32 %v853, 4294901760
    %1342 = vmatmul.mubr.f32.gmra.mxu0 %v1341
    %v1343 = vpop.f32.mrf.mxu0
    %v1344 = vadd.f32 %v1241, %v1343
    %v1345 = vpop.f32.mrf.mxu0
    %1346 = vmatprep.mubr.f32.mxu0 0.0
    %v1347 = vand.u32 %v856, 4294901760
    %1348 = vmatmul.mubr.f32.gmra.mxu0 %v1347
    %v1349 = vpop.f32.mrf.mxu0
    %v1350 = vadd.f32 %v1249, %v1349
    %v1351 = vpop.f32.mrf.mxu0
    %1352 = vdwg.mxu0
    %1353 = vmatprep.subr.mxu0 0.0
    %1354 = vmatpush1.msra.mxu0 0.0
    %1355 = vmatprep.subr.mxu0 0.0
    %1356 = vmatpush1.msra.mxu0 0.0
    %1357 = vmatprep.subr.mxu0 0.0
    %1358 = vmatpush1.msra.mxu0 0.0
    %1359 = vmatprep.subr.mxu0 0.0
    %1360 = vmatpush1.msra.mxu0 0.0
    %1361 = vmatprep.subr.mxu0 0.0
    %1362 = vmatpush1.msra.mxu0 0.0
    %1363 = vmatprep.subr.mxu0 0.0
    %1364 = vmatpush1.msra.mxu0 0.0
    %1365 = vmatprep.subr.mxu0 0.0
    %1366 = vmatpush1.msra.mxu0 0.0
    %1367 = vmatprep.subr.mxu0 0.0
    %1368 = vmatpush1.msra.mxu0 0.0
    %1369 = vmatprep.subr.mxu0 0.0
    %v1370 = vand.u32 %v39, 4294901760
    %1371 = vmatpush1.msra.mxu0 %v1370
    %1372 = vmatprep.subr.mxu0 0.0
    %v1373 = vand.u32 %v38, 4294901760
    %1374 = vmatpush1.msra.mxu0 %v1373
    %1375 = vmatprep.subr.mxu0 0.0
    %v1376 = vand.u32 %v37, 4294901760
    %1377 = vmatpush1.msra.mxu0 %v1376
    %1378 = vmatprep.subr.mxu0 0.0
    %v1379 = vand.u32 %v36, 4294901760
    %1380 = vmatpush1.msra.mxu0 %v1379
    %1381 = vmatprep.subr.mxu0 0.0
    %v1382 = vand.u32 %v35, 4294901760
    %1383 = vmatpush1.msra.mxu0 %v1382
    %1384 = vmatprep.subr.mxu0 0.0
    %v1385 = vand.u32 %v34, 4294901760
    %1386 = vmatpush1.msra.mxu0 %v1385
    %1387 = vmatprep.subr.mxu0 0.0
    %v1388 = vand.u32 %v33, 4294901760
    %1389 = vmatpush1.msra.mxu0 %v1388
    %1390 = vmatprep.subr.mxu0 0.0
    %v1391 = vand.u32 %v32, 4294901760
    %1392 = vmatpush1.msra.mxu0 %v1391
    %1393 = vmatprep.subr.mxu0 0.0
    %1394 = vmatpush2.msra.mxu0 0.0
    %1395 = vmatprep.subr.mxu0 0.0
    %1396 = vmatpush2.msra.mxu0 0.0
    %1397 = vmatprep.subr.mxu0 0.0
    %1398 = vmatpush2.msra.mxu0 0.0
    %1399 = vmatprep.subr.mxu0 0.0
    %1400 = vmatpush2.msra.mxu0 0.0
    %1401 = vmatprep.subr.mxu0 0.0
    %1402 = vmatpush2.msra.mxu0 0.0
    %1403 = vmatprep.subr.mxu0 0.0
    %1404 = vmatpush2.msra.mxu0 0.0
    %1405 = vmatprep.subr.mxu0 0.0
    %1406 = vmatpush2.msra.mxu0 0.0
    %1407 = vmatprep.subr.mxu0 0.0
    %1408 = vmatpush2.msra.mxu0 0.0
    %1409 = vmatprep.subr.mxu0 0.0
    %1410 = vmatpush2.msra.mxu0 0.0
    %1411 = vmatprep.subr.mxu0 0.0
    %1412 = vmatpush2.msra.mxu0 0.0
    %1413 = vmatprep.subr.mxu0 0.0
    %1414 = vmatpush2.msra.mxu0 0.0
    %1415 = vmatprep.subr.mxu0 0.0
    %1416 = vmatpush2.msra.mxu0 0.0
    %1417 = vmatprep.subr.mxu0 0.0
    %1418 = vmatpush2.msra.mxu0 0.0
    %1419 = vmatprep.subr.mxu0 0.0
    %1420 = vmatpush2.msra.mxu0 0.0
    %1421 = vmatprep.subr.mxu0 0.0
    %1422 = vmatpush2.msra.mxu0 0.0
    %1423 = vmatprep.subr.mxu0 0.0
    %1424 = vmatpush2.msra.mxu0 0.0
    %1425 = vmatprep.mubr.f32.mxu0 0.0
    %v1426 = vand.u32 %v853, 4294901760
    %1427 = vmatmul.mubr.f32.gmra.mxu0 %v1426
    %v1428 = vpop.f32.mrf.mxu0
    %v1429 = vadd.f32 %v1344, %v1428
    %v1430 = vpop.f32.mrf.mxu0
    %1431 = vmatprep.mubr.f32.mxu0 0.0
    %v1432 = vand.u32 %v856, 4294901760
    %1433 = vmatmul.mubr.f32.gmra.mxu0 %v1432
    %v1434 = vpop.f32.mrf.mxu0
    %v1435 = vadd.f32 %v1350, %v1434
    %v1436 = vpop.f32.mrf.mxu0
    %1437 = vdwg.mxu0
    %v1438 = vrcp.pop %v1429
    %v1439 = vrcp.pop %v1435
    %v1440 = vmul.f32 %v849, %v1438
    %v1441 = vmul.f32 %v851, %v1439
    %v1442 = vpack.c.bf16 %v1441, %v1440
    %v1443 = vpack.c.bf16 %v759, %v758
    %v1444 = vpack.c.bf16 %v761, %v760
    %v1445 = vpack.c.bf16 %v763, %v762
    %v1446 = vpack.c.bf16 %v765, %v764
    %1451 = vrot.lane.b32.xlu0 %v1443, 64
    %v1452 = vpop.permute.xlu0 %1451
    %1453 = vrot.lane.b32.xlu0 %v1444, 64
    %v1454 = vpop.permute.xlu0 %1453
    %1455 = vrot.lane.b32.xlu0 %v1445, 64
    %v1456 = vpop.permute.xlu0 %1455
    %1457 = vrot.lane.b32.xlu0 %v1446, 64
    %v1458 = vpop.permute.xlu0 %1457
    %v1464 = vsel %vm839, %v1442, 0
    %1466 = vmatprep.subr.bf16.mxu0 0
    %1467 = vmatpush1.bf16.msra.mxu0 0
    %1468 = vmatprep.subr.bf16.mxu0 0
    %1469 = vmatpush1.bf16.msra.mxu0 0
    %1470 = vmatprep.subr.bf16.mxu0 0
    %1471 = vmatpush1.bf16.msra.mxu0 0
    %1472 = vmatprep.subr.bf16.mxu0 0
    %1473 = vmatpush1.bf16.msra.mxu0 0
    %1474 = vmatprep.subr.bf16.mxu0 0
    %1475 = vmatpush1.bf16.msra.mxu0 %v1458
    %1476 = vmatprep.subr.bf16.mxu0 0
    %1477 = vmatpush1.bf16.msra.mxu0 %v1456
    %1478 = vmatprep.subr.bf16.mxu0 0
    %1479 = vmatpush1.bf16.msra.mxu0 %v1454
    %1480 = vmatprep.subr.bf16.mxu0 0
    %1481 = vmatpush1.bf16.msra.mxu0 %v1452
    %1482 = vmatprep.subr.bf16.mxu0 0
    %1483 = vmatpush2.bf16.msra.mxu0 0
    %1484 = vmatprep.subr.bf16.mxu0 0
    %1485 = vmatpush2.bf16.msra.mxu0 0
    %1486 = vmatprep.subr.bf16.mxu0 0
    %1487 = vmatpush2.bf16.msra.mxu0 0
    %1488 = vmatprep.subr.bf16.mxu0 0
    %1489 = vmatpush2.bf16.msra.mxu0 0
    %1490 = vmatprep.subr.bf16.mxu0 0
    %1491 = vmatpush2.bf16.msra.mxu0 0
    %1492 = vmatprep.subr.bf16.mxu0 0
    %1493 = vmatpush2.bf16.msra.mxu0 0
    %1494 = vmatprep.subr.bf16.mxu0 0
    %1495 = vmatpush2.bf16.msra.mxu0 0
    %1496 = vmatprep.subr.bf16.mxu0 0
    %1497 = vmatpush2.bf16.msra.mxu0 0
    %1498 = vmatprep.mubr.bf16.mxu0 0
    %1499 = vmatmul.mubr.bf16.gmra.mxu0 %v1464
    %v1500 = vpop.f32.mrf.mxu0
    %v1501 = vadd.f32 0.0, %v1500
    %v1502 = vpop.f32.mrf.mxu0
    %v1503 = vpop.f32.mrf.mxu0
    %v1504 = vadd.f32 0.0, %v1503
    %v1505 = vpop.f32.mrf.mxu0
    %1506 = vdwg.mxu0
    %v1507 = vpack.c.bf16 %v1504, %v1501
    %v1508 = vpack.c.bf16 %v606, %v605
    %v1509 = vpack.c.bf16 %v608, %v607
    %v1510 = vlaneseq
    %v1511 = vshrl.u32 %v1510, 7
    %v1512 = vsub.s32 0, %v1511
    %v1513 = vrot.slane %v626, %v1512
    %v1515 = vsel %vm62, %v1507, 0
    %1517 = vmatprep.subr.bf16.mxu0 0
    %1518 = vmatpush1.bf16.msra.mxu0 0
    %1519 = vmatprep.subr.bf16.mxu0 0
    %1520 = vmatpush1.bf16.msra.mxu0 0
    %1521 = vmatprep.subr.bf16.mxu0 0
    %1522 = vmatpush1.bf16.msra.mxu0 0
    %1523 = vmatprep.subr.bf16.mxu0 0
    %1524 = vmatpush1.bf16.msra.mxu0 0
    %1525 = vmatprep.subr.bf16.mxu0 0
    %1526 = vmatpush1.bf16.msra.mxu0 0
    %1527 = vmatprep.subr.bf16.mxu0 0
    %1528 = vmatpush1.bf16.msra.mxu0 0
    %1529 = vmatprep.subr.bf16.mxu0 0
    %1530 = vmatpush1.bf16.msra.mxu0 %v1509
    %1531 = vmatprep.subr.bf16.mxu0 0
    %1532 = vmatpush1.bf16.msra.mxu0 %v1508
    %1533 = vmatprep.subr.bf16.mxu0 0
    %1534 = vmatpush2.bf16.msra.mxu0 0
    %1535 = vmatprep.subr.bf16.mxu0 0
    %1536 = vmatpush2.bf16.msra.mxu0 0
    %1537 = vmatprep.subr.bf16.mxu0 0
    %1538 = vmatpush2.bf16.msra.mxu0 0
    %1539 = vmatprep.subr.bf16.mxu0 0
    %1540 = vmatpush2.bf16.msra.mxu0 0
    %1541 = vmatprep.subr.bf16.mxu0 0
    %1542 = vmatpush2.bf16.msra.mxu0 0
    %1543 = vmatprep.subr.bf16.mxu0 0
    %1544 = vmatpush2.bf16.msra.mxu0 0
    %1545 = vmatprep.subr.bf16.mxu0 0
    %1546 = vmatpush2.bf16.msra.mxu0 0
    %1547 = vmatprep.subr.bf16.mxu0 0
    %1548 = vmatpush2.bf16.msra.mxu0 0
    %1549 = vmatprep.mubr.bf16.mxu0 0
    %1550 = vmatmul.mubr.bf16.gmra.mxu0 %v1515
    %v1551 = vpop.f32.mrf.mxu0
    %v1552 = vadd.f32 %v1513, %v1551
    %v1553 = vpop.f32.mrf.mxu0
    %v1554 = vpop.f32.mrf.mxu0
    %v1555 = vadd.f32 %v1513, %v1554
    %v1556 = vpop.f32.mrf.mxu0
    %1557 = vdwg.mxu0
    %v1558 = vadd.f32 %v588, %v1552
    %v1559 = vadd.f32 %v594, %v1555
    %v1560 = vsel %vm62, %v1558, 0.0
    %1561 = vadd.xlane.f32.xlu0 %v1560
    %v1562 = vpop.xlane.xlu0 %1561
    %v1563 = vsel %vm62, %v1559, 0.0
    %1564 = vadd.xlane.f32.xlu0 %v1563
    %v1565 = vpop.xlane.xlu0 %1564
    %v1566 = vrcp.pop 32.0
    %v1567 = vmul.f32 %v1562, %v1566
    %v1568 = vmul.f32 %v1565, %v1566
    %v1569 = vmul.f32 %v1558, %v1558
    %v1570 = vmul.f32 %v1559, %v1559
    %v1571 = vsel %vm62, %v1569, 0.0
    %1572 = vadd.xlane.f32.xlu0 %v1571
    %v1573 = vpop.xlane.xlu0 %1572
    %v1574 = vsel %vm62, %v1570, 0.0
    %1575 = vadd.xlane.f32.xlu0 %v1574
    %v1576 = vpop.xlane.xlu0 %1575
    %v1577 = vmul.f32 %v1573, %v1566
    %v1578 = vmul.f32 %v1576, %v1566
    %v1579 = vmul.f32 %v1567, %v1567
    %v1580 = vmul.f32 %v1568, %v1568
    %v1581 = vsub.f32 %v1577, %v1579
    %v1582 = vsub.f32 %v1578, %v1580
    %v1583 = vsub.f32 %v1558, %v1567
    %v1584 = vsub.f32 %v1559, %v1568
    %v1585 = vadd.f32 %v1581, 1e-05
    %v1586 = vadd.f32 %v1582, 1e-05
    %v1587 = vrsqrt.pop %v1585
    %v1588 = vrsqrt.pop %v1586
    %v1589 = vmul.f32 %v1583, %v1587
    %v1590 = vmul.f32 %v1584, %v1588
    %v1591 = vlaneseq
    %v1592 = vshrl.u32 %v1591, 7
    %v1593 = vsub.s32 0, %v1592
    %v1594 = vrot.slane %v627, %v1593
    %v1595 = vmul.f32 %v1589, %v1594
    %v1596 = vmul.f32 %v1590, %v1594
    %v1597 = vlaneseq
    %v1598 = vshrl.u32 %v1597, 7
    %v1599 = vsub.s32 0, %v1598
    %v1600 = vrot.slane %v628, %v1599
    %v1601 = vadd.f32 %v1595, %v1600
    %v1602 = vadd.f32 %v1596, %v1600
    %v1603 = vpack.c.bf16 %v1602, %v1601
    %v1604 = vlaneseq
    %v1605 = vshrl.u32 %v1604, 7
    %v1606 = vsub.s32 0, %v1605
    %v1607 = vrot.slane %v629, %v1606
    %v1612 = vunpack.c.l.b16 %v601
    %v1613 = vunpack.c.l.b16 %v602
    %v1614 = vunpack.c.l.b16 %v603
    %v1615 = vunpack.c.l.b16 %v604
    %v1616 = vpack.c.b16 %v1613, %v1612
    %v1617 = vpack.c.b16 %v1615, %v1614
    %v1621 = vsel %vm62, %v1603, 0
    %1623 = vmatprep.subr.bf16.mxu0 0
    %1624 = vmatpush1.bf16.msra.mxu0 0
    %1625 = vmatprep.subr.bf16.mxu0 0
    %1626 = vmatpush1.bf16.msra.mxu0 0
    %1627 = vmatprep.subr.bf16.mxu0 0
    %1628 = vmatpush1.bf16.msra.mxu0 0
    %1629 = vmatprep.subr.bf16.mxu0 0
    %1630 = vmatpush1.bf16.msra.mxu0 0
    %1631 = vmatprep.subr.bf16.mxu0 0
    %1632 = vmatpush1.bf16.msra.mxu0 0
    %1633 = vmatprep.subr.bf16.mxu0 0
    %1634 = vmatpush1.bf16.msra.mxu0 0
    %1635 = vmatprep.subr.bf16.mxu0 0
    %1636 = vmatpush1.bf16.msra.mxu0 %v1617
    %1637 = vmatprep.subr.bf16.mxu0 0
    %1638 = vmatpush1.bf16.msra.mxu0 %v1616
    %1639 = vmatprep.subr.bf16.mxu0 0
    %1640 = vmatpush2.bf16.msra.mxu0 0
    %1641 = vmatprep.subr.bf16.mxu0 0
    %1642 = vmatpush2.bf16.msra.mxu0 0
    %1643 = vmatprep.subr.bf16.mxu0 0
    %1644 = vmatpush2.bf16.msra.mxu0 0
    %1645 = vmatprep.subr.bf16.mxu0 0
    %1646 = vmatpush2.bf16.msra.mxu0 0
    %1647 = vmatprep.subr.bf16.mxu0 0
    %1648 = vmatpush2.bf16.msra.mxu0 0
    %1649 = vmatprep.subr.bf16.mxu0 0
    %1650 = vmatpush2.bf16.msra.mxu0 0
    %1651 = vmatprep.subr.bf16.mxu0 0
    %1652 = vmatpush2.bf16.msra.mxu0 0
    %1653 = vmatprep.subr.bf16.mxu0 0
    %1654 = vmatpush2.bf16.msra.mxu0 0
    %1655 = vmatprep.mubr.bf16.mxu0 0
    %1656 = vmatmul.mubr.bf16.gmra.mxu0 %v1621
    %v1657 = vpop.f32.mrf.mxu0
    %v1658 = vadd.f32 %v1607, %v1657
    %v1659 = vpop.f32.mrf.mxu0
    %v1660 = vpop.f32.mrf.mxu0
    %v1661 = vadd.f32 %v1607, %v1660
    %v1662 = vpop.f32.mrf.mxu0
    %1663 = vdwg.mxu0
    %v1664 = vmax.f32 %v1658, 0.0
    %v1665 = vmax.f32 %v1661, 0.0
    %v1666 = vpack.c.bf16 %v1665, %v1664
    %v1667 = vpack.c.bf16 %v610, %v609
    %v1668 = vpack.c.bf16 %v612, %v611
    %v1669 = vpack.c.bf16 %v614, %v613
    %v1670 = vpack.c.bf16 %v616, %v615
    %v1671 = vpack.c.bf16 %v618, %v617
    %v1672 = vpack.c.bf16 %v620, %v619
    %v1673 = vpack.c.bf16 %v622, %v621
    %v1674 = vpack.c.bf16 %v624, %v623
    %v1675 = vlaneseq
    %v1676 = vshrl.u32 %v1675, 7
    %v1677 = vsub.s32 0, %v1676
    %v1678 = vrot.slane %v630, %v1677
    %1679 = vmatprep.subr.bf16.mxu0 0
    %1680 = vmatpush1.bf16.msra.mxu0 %v1674
    %1681 = vmatprep.subr.bf16.mxu0 0
    %1682 = vmatpush1.bf16.msra.mxu0 %v1673
    %1683 = vmatprep.subr.bf16.mxu0 0
    %1684 = vmatpush1.bf16.msra.mxu0 %v1672
    %1685 = vmatprep.subr.bf16.mxu0 0
    %1686 = vmatpush1.bf16.msra.mxu0 %v1671
    %1687 = vmatprep.subr.bf16.mxu0 0
    %1688 = vmatpush1.bf16.msra.mxu0 %v1670
    %1689 = vmatprep.subr.bf16.mxu0 0
    %1690 = vmatpush1.bf16.msra.mxu0 %v1669
    %1691 = vmatprep.subr.bf16.mxu0 0
    %1692 = vmatpush1.bf16.msra.mxu0 %v1668
    %1693 = vmatprep.subr.bf16.mxu0 0
    %1694 = vmatpush1.bf16.msra.mxu0 %v1667
    %1695 = vmatprep.subr.bf16.mxu0 0
    %1696 = vmatpush2.bf16.msra.mxu0 0
    %1697 = vmatprep.subr.bf16.mxu0 0
    %1698 = vmatpush2.bf16.msra.mxu0 0
    %1699 = vmatprep.subr.bf16.mxu0 0
    %1700 = vmatpush2.bf16.msra.mxu0 0
    %1701 = vmatprep.subr.bf16.mxu0 0
    %1702 = vmatpush2.bf16.msra.mxu0 0
    %1703 = vmatprep.subr.bf16.mxu0 0
    %1704 = vmatpush2.bf16.msra.mxu0 0
    %1705 = vmatprep.subr.bf16.mxu0 0
    %1706 = vmatpush2.bf16.msra.mxu0 0
    %1707 = vmatprep.subr.bf16.mxu0 0
    %1708 = vmatpush2.bf16.msra.mxu0 0
    %1709 = vmatprep.subr.bf16.mxu0 0
    %1710 = vmatpush2.bf16.msra.mxu0 0
    %1711 = vmatprep.mubr.bf16.mxu0 0
    %1712 = vmatmul.mubr.bf16.gmra.mxu0 %v1666
    %v1713 = vpop.f32.mrf.mxu0
    %v1714 = vadd.f32 %v1678, %v1713
    %v1715 = vpop.f32.mrf.mxu0
    %v1716 = vpop.f32.mrf.mxu0
    %v1717 = vadd.f32 %v1678, %v1716
    %v1718 = vpop.f32.mrf.mxu0
    %1719 = vdwg.mxu0
    %v1720 = vadd.f32 %v1601, %v1714
    %v1721 = vadd.f32 %v1602, %v1717
    %v1722 = vsel %vm62, %v1720, 0.0
    %1723 = vadd.xlane.f32.xlu0 %v1722
    %v1724 = vpop.xlane.xlu0 %1723
    %v1725 = vsel %vm62, %v1721, 0.0
    %1726 = vadd.xlane.f32.xlu0 %v1725
    %v1727 = vpop.xlane.xlu0 %1726
    %v1728 = vmul.f32 %v1724, %v1566
    %v1729 = vmul.f32 %v1727, %v1566
    %v1730 = vmul.f32 %v1720, %v1720
    %v1731 = vmul.f32 %v1721, %v1721
    %v1732 = vsel %vm62, %v1730, 0.0
    %1733 = vadd.xlane.f32.xlu0 %v1732
    %v1734 = vpop.xlane.xlu0 %1733
    %v1735 = vsel %vm62, %v1731, 0.0
    %1736 = vadd.xlane.f32.xlu0 %v1735
    %v1737 = vpop.xlane.xlu0 %1736
    %v1738 = vmul.f32 %v1734, %v1566
    %v1739 = vmul.f32 %v1737, %v1566
    %v1740 = vmul.f32 %v1728, %v1728
    %v1741 = vmul.f32 %v1729, %v1729
    %v1742 = vsub.f32 %v1738, %v1740
    %v1743 = vsub.f32 %v1739, %v1741
    %v1744 = vsub.f32 %v1720, %v1728
    %v1745 = vsub.f32 %v1721, %v1729
    %v1746 = vadd.f32 %v1742, 1e-05
    %v1747 = vadd.f32 %v1743, 1e-05
    %v1748 = vrsqrt.pop %v1746
    %v1749 = vrsqrt.pop %v1747
    %v1750 = vmul.f32 %v1744, %v1748
    %v1751 = vmul.f32 %v1745, %v1749
    %v1752 = vlaneseq
    %v1753 = vshrl.u32 %v1752, 7
    %v1754 = vsub.s32 0, %v1753
    %v1755 = vrot.slane %v631, %v1754
    %v1756 = vmul.f32 %v1750, %v1755
    %v1757 = vmul.f32 %v1751, %v1755
    %v1758 = vlaneseq
    %v1759 = vshrl.u32 %v1758, 7
    %v1760 = vsub.s32 0, %v1759
    %v1761 = vrot.slane %v632, %v1760
    %v1762 = vadd.f32 %v1756, %v1761
    %v1763 = vadd.f32 %v1757, %v1761
    %v1764 = vld [vmem:[%s2 + $0x20] sm:$0xf]
    %v1765 = vld [vmem:[%s2 + $0x24] sm:$0xf]
    %v1766 = vld [vmem:[%s2 + $0x28] sm:$0xf]
    %v1767 = vld [vmem:[%s2 + $0x2c] sm:$0xf]
    %v1768 = vld [vmem:[%s2 + $0x30] sm:$0xf]
    %v1769 = vld [vmem:[%s2 + $0x34] sm:$0xf]
    %v1770 = vld [vmem:[%s2 + $0x38] sm:$0xf]
    %v1771 = vld [vmem:[%s2 + $0x3c] sm:$0xf]
    %v1772 = vld [vmem:[%s1 + $0xd0] sm:$0xff]
    %v1773 = vld [vmem:[%s1 + $0xd8] sm:$0xff]
    %v1774 = vld [vmem:[%s1 + $0xe0] sm:$0xff]
    %v1775 = vld [vmem:[%s1 + $0xe8] sm:$0xff]
    %v1776 = vld [vmem:[%s1 + $0xf0] sm:$0xff]
    %v1777 = vld [vmem:[%s1 + $0xf8] sm:$0xff]
    %v1778 = vld [vmem:[%s1 + $0x100] sm:$0xff]
    %v1779 = vld [vmem:[%s1 + $0x108] sm:$0xff]
    %v1780 = vld [vmem:[%s1 + $0x110] sm:$0xff]
    %v1781 = vld [vmem:[%s1 + $0x118] sm:$0xff]
    %v1782 = vld [vmem:[%s1 + $0x120] sm:$0xff]
    %v1783 = vld [vmem:[%s1 + $0x128] sm:$0xff]
    %v1784 = vld [vmem:[%s1 + $0x130] sm:$0xff]
    %v1785 = vld [vmem:[%s1 + $0x138] sm:$0xff]
    %v1786 = vld [vmem:[%s1 + $0x140] sm:$0xff]
    %v1787 = vld [vmem:[%s1 + $0x148] sm:$0xff]
    %v1788 = vld [vmem:[%s1 + $0x150] sm:$0xff]
    %v1789 = vld [vmem:[%s1 + $0x158] sm:$0xff]
    %v1790 = vld [vmem:[%s1 + $0x160] sm:$0xff]
    %v1791 = vld [vmem:[%s1 + $0x168] sm:$0xff]
    %v1792 = vld [vmem:[%s3 + $0x8] sm:$0x1]
    %v1793 = vld [vmem:[%s3 + $0x9] sm:$0x1]
    %v1794 = vld [vmem:[%s3 + $0xa] sm:$0x1]
    %v1795 = vld [vmem:[%s3 + $0xb] sm:$0x1]
    %v1796 = vld [vmem:[%s3 + $0xc] sm:$0x1]
    %v1797 = vld [vmem:[%s3 + $0xd] sm:$0x1]
    %v1798 = vld [vmem:[%s3 + $0xe] sm:$0x1]
    %v1799 = vld [vmem:[%s3 + $0xf] sm:$0x1]
    %v1800 = vpack.c.bf16 %v1763, %v1762
    %v1801 = vlaneseq
    %v1802 = vshrl.u32 %v1801, 7
    %v1803 = vsub.s32 0, %v1802
    %v1804 = vrot.slane %v1792, %v1803
    %v1809 = vunpack.c.l.b16 %v1764
    %v1810 = vunpack.c.l.b16 %v1765
    %v1811 = vunpack.c.l.b16 %v1766
    %v1812 = vunpack.c.l.b16 %v1767
    %v1813 = vpack.c.b16 %v1810, %v1809
    %v1814 = vpack.c.b16 %v1812, %v1811
    %v1818 = vsel %vm62, %v1800, 0
    %1820 = vmatprep.subr.bf16.mxu0 0
    %1821 = vmatpush1.bf16.msra.mxu0 0
    %1822 = vmatprep.subr.bf16.mxu0 0
    %1823 = vmatpush1.bf16.msra.mxu0 0
    %1824 = vmatprep.subr.bf16.mxu0 0
    %1825 = vmatpush1.bf16.msra.mxu0 0
    %1826 = vmatprep.subr.bf16.mxu0 0
    %1827 = vmatpush1.bf16.msra.mxu0 0
    %1828 = vmatprep.subr.bf16.mxu0 0
    %1829 = vmatpush1.bf16.msra.mxu0 0
    %1830 = vmatprep.subr.bf16.mxu0 0
    %1831 = vmatpush1.bf16.msra.mxu0 0
    %1832 = vmatprep.subr.bf16.mxu0 0
    %1833 = vmatpush1.bf16.msra.mxu0 %v1814
    %1834 = vmatprep.subr.bf16.mxu0 0
    %1835 = vmatpush1.bf16.msra.mxu0 %v1813
    %1836 = vmatprep.subr.bf16.mxu0 0
    %1837 = vmatpush2.bf16.msra.mxu0 0
    %1838 = vmatprep.subr.bf16.mxu0 0
    %1839 = vmatpush2.bf16.msra.mxu0 0
    %1840 = vmatprep.subr.bf16.mxu0 0
    %1841 = vmatpush2.bf16.msra.mxu0 0
    %1842 = vmatprep.subr.bf16.mxu0 0
    %1843 = vmatpush2.bf16.msra.mxu0 0
    %1844 = vmatprep.subr.bf16.mxu0 0
    %1845 = vmatpush2.bf16.msra.mxu0 0
    %1846 = vmatprep.subr.bf16.mxu0 0
    %1847 = vmatpush2.bf16.msra.mxu0 0
    %1848 = vmatprep.subr.bf16.mxu0 0
    %1849 = vmatpush2.bf16.msra.mxu0 0
    %1850 = vmatprep.subr.bf16.mxu0 0
    %1851 = vmatpush2.bf16.msra.mxu0 0
    %1852 = vmatprep.mubr.bf16.mxu0 0
    %1853 = vmatmul.mubr.bf16.gmra.mxu0 %v1818
    %v1854 = vpop.f32.mrf.mxu0
    %v1855 = vadd.f32 %v1804, %v1854
    %v1856 = vpop.f32.mrf.mxu0
    %v1857 = vpop.f32.mrf.mxu0
    %v1858 = vadd.f32 %v1804, %v1857
    %v1859 = vpop.f32.mrf.mxu0
    %1860 = vdwg.mxu0
    %v1861 = vmul.f32 %v1855, %v703
    %v1862 = vmul.f32 %v1858, %v705
    %v1863 = vmul.f32 %v1855, %v707
    %v1864 = vmul.f32 %v1858, %v709
    %v1865 = vmul.f32 %v1855, %v711
    %v1866 = vmul.f32 %v1858, %v713
    %v1867 = vmul.f32 %v1855, %v715
    %v1868 = vmul.f32 %v1858, %v717
    %v1869 = vmul.f32 %v1855, %v735
    %v1870 = vmul.f32 %v1858, %v737
    %v1871 = vmul.f32 %v1855, %v739
    %v1872 = vmul.f32 %v1858, %v741
    %v1873 = vmul.f32 %v1855, %v743
    %v1874 = vmul.f32 %v1858, %v745
    %v1875 = vmul.f32 %v1855, %v747
    %v1876 = vmul.f32 %v1858, %v749
    %v1877 = vpack.c.bf16 %v1858, %v1855
    %v1878 = vpack.c.bf16 %v1862, %v1861
    %v1879 = vpack.c.bf16 %v1864, %v1863
    %v1880 = vpack.c.bf16 %v1866, %v1865
    %v1881 = vpack.c.bf16 %v1868, %v1867
    %1886 = vrot.lane.b32.xlu0 %v1878, 96
    %v1887 = vpop.permute.xlu0 %1886
    %1888 = vrot.lane.b32.xlu0 %v1879, 96
    %v1889 = vpop.permute.xlu0 %1888
    %1890 = vrot.lane.b32.xlu0 %v1880, 96
    %v1891 = vpop.permute.xlu0 %1890
    %1892 = vrot.lane.b32.xlu0 %v1881, 96
    %v1893 = vpop.permute.xlu0 %1892
    %v1895 = vsel %vm62, %v1877, 0
    %v1898 = vsel %vm62, %v1887, 0
    %v1901 = vsel %vm62, %v1889, 0
    %v1904 = vsel %vm62, %v1891, 0
    %v1907 = vsel %vm62, %v1893, 0
    %1909 = vmatprep.subr.bf16.mxu0 0
    %1910 = vmatpush1.bf16.xpose.msra.mxu0 0
    %1911 = vmatprep.subr.bf16.mxu0 0
    %1912 = vmatpush1.bf16.xpose.msra.mxu0 0
    %1913 = vmatprep.subr.bf16.mxu0 0
    %1914 = vmatpush1.bf16.xpose.msra.mxu0 0
    %1915 = vmatprep.subr.bf16.mxu0 0
    %1916 = vmatpush1.bf16.xpose.msra.mxu0 0
    %1917 = vmatprep.subr.bf16.mxu0 0
    %1918 = vmatpush1.bf16.xpose.msra.mxu0 %v1907
    %1919 = vmatprep.subr.bf16.mxu0 0
    %1920 = vmatpush1.bf16.xpose.msra.mxu0 %v1904
    %1921 = vmatprep.subr.bf16.mxu0 0
    %1922 = vmatpush1.bf16.xpose.msra.mxu0 %v1901
    %1923 = vmatprep.subr.bf16.mxu0 0
    %1924 = vmatpush1.bf16.xpose.msra.mxu0 %v1898
    %1925 = vmatprep.subr.bf16.mxu0 0
    %1926 = vmatpush2.bf16.xpose.msra.mxu0 0
    %1927 = vmatprep.subr.bf16.mxu0 0
    %1928 = vmatpush2.bf16.xpose.msra.mxu0 0
    %1929 = vmatprep.subr.bf16.mxu0 0
    %1930 = vmatpush2.bf16.xpose.msra.mxu0 0
    %1931 = vmatprep.subr.bf16.mxu0 0
    %1932 = vmatpush2.bf16.xpose.msra.mxu0 0
    %1933 = vmatprep.subr.bf16.mxu0 0
    %1934 = vmatpush2.bf16.xpose.msra.mxu0 0
    %1935 = vmatprep.subr.bf16.mxu0 0
    %1936 = vmatpush2.bf16.xpose.msra.mxu0 0
    %1937 = vmatprep.subr.bf16.mxu0 0
    %1938 = vmatpush2.bf16.xpose.msra.mxu0 0
    %1939 = vmatprep.subr.bf16.mxu0 0
    %1940 = vmatpush2.bf16.xpose.msra.mxu0 0
    %1941 = vmatprep.mubr.bf16.mxu0 0
    %1942 = vmatmul.mubr.bf16.gmra.mxu0 %v1895
    %v1943 = vpop.f32.mrf.mxu0
    %v1944 = vadd.f32 %v22, %v1943
    %v1945 = vpop.f32.mrf.mxu0
    %v1946 = vpop.f32.mrf.mxu0
    %v1947 = vadd.f32 %v23, %v1946
    %v1948 = vpop.f32.mrf.mxu0
    %1949 = vdwg.mxu0
    %v1950 = vsel %vm839, %v1944, -inf
    %1951 = vmax.xlane.f32.xlu0 %v1950
    %v1952 = vpop.xlane.xlu0 %1951
    %v1953 = vsel %vm839, %v1947, -inf
    %1954 = vmax.xlane.f32.xlu0 %v1953
    %v1955 = vpop.xlane.xlu0 %1954
    %v1956 = vsub.f32 %v1944, %v1952
    %v1957 = vsub.f32 %v1947, %v1955
    %v1958 = vmul.f32 %v1956, 1.442695
    %v1959 = vpow.pop %v1958
    %v1960 = vmul.f32 %v1957, 1.442695
    %v1961 = vpow.pop %v1960
    %v1963 = vsel %vm839, %v1959, 0
    %v1966 = vsel %vm839, %v1961, 0
    %1968 = vmatprep.subr.mxu0 0.0
    %1969 = vmatpush1.msra.mxu0 0.0
    %1970 = vmatprep.subr.mxu0 0.0
    %1971 = vmatpush1.msra.mxu0 0.0
    %1972 = vmatprep.subr.mxu0 0.0
    %1973 = vmatpush1.msra.mxu0 0.0
    %1974 = vmatprep.subr.mxu0 0.0
    %1975 = vmatpush1.msra.mxu0 0.0
    %1976 = vmatprep.subr.mxu0 0.0
    %1977 = vmatpush1.msra.mxu0 0.0
    %1978 = vmatprep.subr.mxu0 0.0
    %1979 = vmatpush1.msra.mxu0 0.0
    %1980 = vmatprep.subr.mxu0 0.0
    %1981 = vmatpush1.msra.mxu0 0.0
    %1982 = vmatprep.subr.mxu0 0.0
    %1983 = vmatpush1.msra.mxu0 0.0
    %1984 = vmatprep.subr.mxu0 0.0
    %v1985 = vand.u32 %v39, 4294901760
    %1986 = vmatpush1.msra.mxu0 %v1985
    %1987 = vmatprep.subr.mxu0 0.0
    %v1988 = vand.u32 %v38, 4294901760
    %1989 = vmatpush1.msra.mxu0 %v1988
    %1990 = vmatprep.subr.mxu0 0.0
    %v1991 = vand.u32 %v37, 4294901760
    %1992 = vmatpush1.msra.mxu0 %v1991
    %1993 = vmatprep.subr.mxu0 0.0
    %v1994 = vand.u32 %v36, 4294901760
    %1995 = vmatpush1.msra.mxu0 %v1994
    %1996 = vmatprep.subr.mxu0 0.0
    %v1997 = vand.u32 %v35, 4294901760
    %1998 = vmatpush1.msra.mxu0 %v1997
    %1999 = vmatprep.subr.mxu0 0.0
    %v2000 = vand.u32 %v34, 4294901760
    %2001 = vmatpush1.msra.mxu0 %v2000
    %2002 = vmatprep.subr.mxu0 0.0
    %v2003 = vand.u32 %v33, 4294901760
    %2004 = vmatpush1.msra.mxu0 %v2003
    %2005 = vmatprep.subr.mxu0 0.0
    %v2006 = vand.u32 %v32, 4294901760
    %2007 = vmatpush1.msra.mxu0 %v2006
    %2008 = vmatprep.subr.mxu0 0.0
    %2009 = vmatpush2.msra.mxu0 0.0
    %2010 = vmatprep.subr.mxu0 0.0
    %2011 = vmatpush2.msra.mxu0 0.0
    %2012 = vmatprep.subr.mxu0 0.0
    %2013 = vmatpush2.msra.mxu0 0.0
    %2014 = vmatprep.subr.mxu0 0.0
    %2015 = vmatpush2.msra.mxu0 0.0
    %2016 = vmatprep.subr.mxu0 0.0
    %2017 = vmatpush2.msra.mxu0 0.0
    %2018 = vmatprep.subr.mxu0 0.0
    %2019 = vmatpush2.msra.mxu0 0.0
    %2020 = vmatprep.subr.mxu0 0.0
    %2021 = vmatpush2.msra.mxu0 0.0
    %2022 = vmatprep.subr.mxu0 0.0
    %2023 = vmatpush2.msra.mxu0 0.0
    %2024 = vmatprep.subr.mxu0 0.0
    %2025 = vmatpush2.msra.mxu0 0.0
    %2026 = vmatprep.subr.mxu0 0.0
    %2027 = vmatpush2.msra.mxu0 0.0
    %2028 = vmatprep.subr.mxu0 0.0
    %2029 = vmatpush2.msra.mxu0 0.0
    %2030 = vmatprep.subr.mxu0 0.0
    %2031 = vmatpush2.msra.mxu0 0.0
    %2032 = vmatprep.subr.mxu0 0.0
    %2033 = vmatpush2.msra.mxu0 0.0
    %2034 = vmatprep.subr.mxu0 0.0
    %2035 = vmatpush2.msra.mxu0 0.0
    %2036 = vmatprep.subr.mxu0 0.0
    %2037 = vmatpush2.msra.mxu0 0.0
    %2038 = vmatprep.subr.mxu0 0.0
    %2039 = vmatpush2.msra.mxu0 0.0
    %2040 = vmatprep.mubr.f32.mxu0 0.0
    %v2041 = vand.u32 %v1963, 4294901760
    %v2042 = vsub.f32 %v1963, %v2041
    %v2043 = vand.u32 %v2042, 4294901760
    %v2044 = vsub.f32 %v2042, %v2043
    %v2045 = vand.u32 %v2044, 4294901760
    %2046 = vmatmul.mubr.f32.gmra.mxu0 %v2045
    %v2047 = vpop.f32.mrf.mxu0
    %v2048 = vadd.f32 0.0, %v2047
    %v2049 = vpop.f32.mrf.mxu0
    %2050 = vmatprep.mubr.f32.mxu0 0.0
    %v2051 = vand.u32 %v1966, 4294901760
    %v2052 = vsub.f32 %v1966, %v2051
    %v2053 = vand.u32 %v2052, 4294901760
    %v2054 = vsub.f32 %v2052, %v2053
    %v2055 = vand.u32 %v2054, 4294901760
    %2056 = vmatmul.mubr.f32.gmra.mxu0 %v2055
    %v2057 = vpop.f32.mrf.mxu0
    %v2058 = vadd.f32 0.0, %v2057
    %v2059 = vpop.f32.mrf.mxu0
    %2060 = vdwg.mxu0
    %2061 = vmatprep.subr.mxu0 0.0
    %2062 = vmatpush1.msra.mxu0 0.0
    %2063 = vmatprep.subr.mxu0 0.0
    %2064 = vmatpush1.msra.mxu0 0.0
    %2065 = vmatprep.subr.mxu0 0.0
    %2066 = vmatpush1.msra.mxu0 0.0
    %2067 = vmatprep.subr.mxu0 0.0
    %2068 = vmatpush1.msra.mxu0 0.0
    %2069 = vmatprep.subr.mxu0 0.0
    %2070 = vmatpush1.msra.mxu0 0.0
    %2071 = vmatprep.subr.mxu0 0.0
    %2072 = vmatpush1.msra.mxu0 0.0
    %2073 = vmatprep.subr.mxu0 0.0
    %2074 = vmatpush1.msra.mxu0 0.0
    %2075 = vmatprep.subr.mxu0 0.0
    %2076 = vmatpush1.msra.mxu0 0.0
    %2077 = vmatprep.subr.mxu0 0.0
    %v2078 = vand.u32 %v39, 4294901760
    %v2079 = vsub.f32 %v39, %v2078
    %v2080 = vand.u32 %v2079, 4294901760
    %v2081 = vsub.f32 %v2079, %v2080
    %v2082 = vand.u32 %v2081, 4294901760
    %2083 = vmatpush1.msra.mxu0 %v2082
    %2084 = vmatprep.subr.mxu0 0.0
    %v2085 = vand.u32 %v38, 4294901760
    %v2086 = vsub.f32 %v38, %v2085
    %v2087 = vand.u32 %v2086, 4294901760
    %v2088 = vsub.f32 %v2086, %v2087
    %v2089 = vand.u32 %v2088, 4294901760
    %2090 = vmatpush1.msra.mxu0 %v2089
    %2091 = vmatprep.subr.mxu0 0.0
    %v2092 = vand.u32 %v37, 4294901760
    %v2093 = vsub.f32 %v37, %v2092
    %v2094 = vand.u32 %v2093, 4294901760
    %v2095 = vsub.f32 %v2093, %v2094
    %v2096 = vand.u32 %v2095, 4294901760
    %2097 = vmatpush1.msra.mxu0 %v2096
    %2098 = vmatprep.subr.mxu0 0.0
    %v2099 = vand.u32 %v36, 4294901760
    %v2100 = vsub.f32 %v36, %v2099
    %v2101 = vand.u32 %v2100, 4294901760
    %v2102 = vsub.f32 %v2100, %v2101
    %v2103 = vand.u32 %v2102, 4294901760
    %2104 = vmatpush1.msra.mxu0 %v2103
    %2105 = vmatprep.subr.mxu0 0.0
    %v2106 = vand.u32 %v35, 4294901760
    %v2107 = vsub.f32 %v35, %v2106
    %v2108 = vand.u32 %v2107, 4294901760
    %v2109 = vsub.f32 %v2107, %v2108
    %v2110 = vand.u32 %v2109, 4294901760
    %2111 = vmatpush1.msra.mxu0 %v2110
    %2112 = vmatprep.subr.mxu0 0.0
    %v2113 = vand.u32 %v34, 4294901760
    %v2114 = vsub.f32 %v34, %v2113
    %v2115 = vand.u32 %v2114, 4294901760
    %v2116 = vsub.f32 %v2114, %v2115
    %v2117 = vand.u32 %v2116, 4294901760
    %2118 = vmatpush1.msra.mxu0 %v2117
    %2119 = vmatprep.subr.mxu0 0.0
    %v2120 = vand.u32 %v33, 4294901760
    %v2121 = vsub.f32 %v33, %v2120
    %v2122 = vand.u32 %v2121, 4294901760
    %v2123 = vsub.f32 %v2121, %v2122
    %v2124 = vand.u32 %v2123, 4294901760
    %2125 = vmatpush1.msra.mxu0 %v2124
    %2126 = vmatprep.subr.mxu0 0.0
    %v2127 = vand.u32 %v32, 4294901760
    %v2128 = vsub.f32 %v32, %v2127
    %v2129 = vand.u32 %v2128, 4294901760
    %v2130 = vsub.f32 %v2128, %v2129
    %v2131 = vand.u32 %v2130, 4294901760
    %2132 = vmatpush1.msra.mxu0 %v2131
    %2133 = vmatprep.subr.mxu0 0.0
    %2134 = vmatpush2.msra.mxu0 0.0
    %2135 = vmatprep.subr.mxu0 0.0
    %2136 = vmatpush2.msra.mxu0 0.0
    %2137 = vmatprep.subr.mxu0 0.0
    %2138 = vmatpush2.msra.mxu0 0.0
    %2139 = vmatprep.subr.mxu0 0.0
    %2140 = vmatpush2.msra.mxu0 0.0
    %2141 = vmatprep.subr.mxu0 0.0
    %2142 = vmatpush2.msra.mxu0 0.0
    %2143 = vmatprep.subr.mxu0 0.0
    %2144 = vmatpush2.msra.mxu0 0.0
    %2145 = vmatprep.subr.mxu0 0.0
    %2146 = vmatpush2.msra.mxu0 0.0
    %2147 = vmatprep.subr.mxu0 0.0
    %2148 = vmatpush2.msra.mxu0 0.0
    %2149 = vmatprep.subr.mxu0 0.0
    %2150 = vmatpush2.msra.mxu0 0.0
    %2151 = vmatprep.subr.mxu0 0.0
    %2152 = vmatpush2.msra.mxu0 0.0
    %2153 = vmatprep.subr.mxu0 0.0
    %2154 = vmatpush2.msra.mxu0 0.0
    %2155 = vmatprep.subr.mxu0 0.0
    %2156 = vmatpush2.msra.mxu0 0.0
    %2157 = vmatprep.subr.mxu0 0.0
    %2158 = vmatpush2.msra.mxu0 0.0
    %2159 = vmatprep.subr.mxu0 0.0
    %2160 = vmatpush2.msra.mxu0 0.0
    %2161 = vmatprep.subr.mxu0 0.0
    %2162 = vmatpush2.msra.mxu0 0.0
    %2163 = vmatprep.subr.mxu0 0.0
    %2164 = vmatpush2.msra.mxu0 0.0
    %2165 = vmatprep.mubr.f32.mxu0 0.0
    %v2166 = vand.u32 %v1963, 4294901760
    %2167 = vmatmul.mubr.f32.gmra.mxu0 %v2166
    %v2168 = vpop.f32.mrf.mxu0
    %v2169 = vadd.f32 %v2048, %v2168
    %v2170 = vpop.f32.mrf.mxu0
    %2171 = vmatprep.mubr.f32.mxu0 0.0
    %v2172 = vand.u32 %v1966, 4294901760
    %2173 = vmatmul.mubr.f32.gmra.mxu0 %v2172
    %v2174 = vpop.f32.mrf.mxu0
    %v2175 = vadd.f32 %v2058, %v2174
    %v2176 = vpop.f32.mrf.mxu0
    %2177 = vdwg.mxu0
    %2178 = vmatprep.subr.mxu0 0.0
    %2179 = vmatpush1.msra.mxu0 0.0
    %2180 = vmatprep.subr.mxu0 0.0
    %2181 = vmatpush1.msra.mxu0 0.0
    %2182 = vmatprep.subr.mxu0 0.0
    %2183 = vmatpush1.msra.mxu0 0.0
    %2184 = vmatprep.subr.mxu0 0.0
    %2185 = vmatpush1.msra.mxu0 0.0
    %2186 = vmatprep.subr.mxu0 0.0
    %2187 = vmatpush1.msra.mxu0 0.0
    %2188 = vmatprep.subr.mxu0 0.0
    %2189 = vmatpush1.msra.mxu0 0.0
    %2190 = vmatprep.subr.mxu0 0.0
    %2191 = vmatpush1.msra.mxu0 0.0
    %2192 = vmatprep.subr.mxu0 0.0
    %2193 = vmatpush1.msra.mxu0 0.0
    %2194 = vmatprep.subr.mxu0 0.0
    %v2195 = vand.u32 %v39, 4294901760
    %v2196 = vsub.f32 %v39, %v2195
    %2197 = vmatpush1.msra.mxu0 %v2196
    %2198 = vmatprep.subr.mxu0 0.0
    %v2199 = vand.u32 %v38, 4294901760
    %v2200 = vsub.f32 %v38, %v2199
    %2201 = vmatpush1.msra.mxu0 %v2200
    %2202 = vmatprep.subr.mxu0 0.0
    %v2203 = vand.u32 %v37, 4294901760
    %v2204 = vsub.f32 %v37, %v2203
    %2205 = vmatpush1.msra.mxu0 %v2204
    %2206 = vmatprep.subr.mxu0 0.0
    %v2207 = vand.u32 %v36, 4294901760
    %v2208 = vsub.f32 %v36, %v2207
    %2209 = vmatpush1.msra.mxu0 %v2208
    %2210 = vmatprep.subr.mxu0 0.0
    %v2211 = vand.u32 %v35, 4294901760
    %v2212 = vsub.f32 %v35, %v2211
    %2213 = vmatpush1.msra.mxu0 %v2212
    %2214 = vmatprep.subr.mxu0 0.0
    %v2215 = vand.u32 %v34, 4294901760
    %v2216 = vsub.f32 %v34, %v2215
    %2217 = vmatpush1.msra.mxu0 %v2216
    %2218 = vmatprep.subr.mxu0 0.0
    %v2219 = vand.u32 %v33, 4294901760
    %v2220 = vsub.f32 %v33, %v2219
    %2221 = vmatpush1.msra.mxu0 %v2220
    %2222 = vmatprep.subr.mxu0 0.0
    %v2223 = vand.u32 %v32, 4294901760
    %v2224 = vsub.f32 %v32, %v2223
    %2225 = vmatpush1.msra.mxu0 %v2224
    %2226 = vmatprep.subr.mxu0 0.0
    %2227 = vmatpush2.msra.mxu0 0.0
    %2228 = vmatprep.subr.mxu0 0.0
    %2229 = vmatpush2.msra.mxu0 0.0
    %2230 = vmatprep.subr.mxu0 0.0
    %2231 = vmatpush2.msra.mxu0 0.0
    %2232 = vmatprep.subr.mxu0 0.0
    %2233 = vmatpush2.msra.mxu0 0.0
    %2234 = vmatprep.subr.mxu0 0.0
    %2235 = vmatpush2.msra.mxu0 0.0
    %2236 = vmatprep.subr.mxu0 0.0
    %2237 = vmatpush2.msra.mxu0 0.0
    %2238 = vmatprep.subr.mxu0 0.0
    %2239 = vmatpush2.msra.mxu0 0.0
    %2240 = vmatprep.subr.mxu0 0.0
    %2241 = vmatpush2.msra.mxu0 0.0
    %2242 = vmatprep.subr.mxu0 0.0
    %2243 = vmatpush2.msra.mxu0 0.0
    %2244 = vmatprep.subr.mxu0 0.0
    %2245 = vmatpush2.msra.mxu0 0.0
    %2246 = vmatprep.subr.mxu0 0.0
    %2247 = vmatpush2.msra.mxu0 0.0
    %2248 = vmatprep.subr.mxu0 0.0
    %2249 = vmatpush2.msra.mxu0 0.0
    %2250 = vmatprep.subr.mxu0 0.0
    %2251 = vmatpush2.msra.mxu0 0.0
    %2252 = vmatprep.subr.mxu0 0.0
    %2253 = vmatpush2.msra.mxu0 0.0
    %2254 = vmatprep.subr.mxu0 0.0
    %2255 = vmatpush2.msra.mxu0 0.0
    %2256 = vmatprep.subr.mxu0 0.0
    %2257 = vmatpush2.msra.mxu0 0.0
    %2258 = vmatprep.mubr.f32.mxu0 0.0
    %v2259 = vand.u32 %v1963, 4294901760
    %v2260 = vsub.f32 %v1963, %v2259
    %2261 = vmatmul.mubr.f32.gmra.mxu0 %v2260
    %v2262 = vpop.f32.mrf.mxu0
    %v2263 = vadd.f32 %v2169, %v2262
    %v2264 = vpop.f32.mrf.mxu0
    %2265 = vmatprep.mubr.f32.mxu0 0.0
    %v2266 = vand.u32 %v1966, 4294901760
    %v2267 = vsub.f32 %v1966, %v2266
    %2268 = vmatmul.mubr.f32.gmra.mxu0 %v2267
    %v2269 = vpop.f32.mrf.mxu0
    %v2270 = vadd.f32 %v2175, %v2269
    %v2271 = vpop.f32.mrf.mxu0
    %2272 = vdwg.mxu0
    %2273 = vmatprep.subr.mxu0 0.0
    %2274 = vmatpush1.msra.mxu0 0.0
    %2275 = vmatprep.subr.mxu0 0.0
    %2276 = vmatpush1.msra.mxu0 0.0
    %2277 = vmatprep.subr.mxu0 0.0
    %2278 = vmatpush1.msra.mxu0 0.0
    %2279 = vmatprep.subr.mxu0 0.0
    %2280 = vmatpush1.msra.mxu0 0.0
    %2281 = vmatprep.subr.mxu0 0.0
    %2282 = vmatpush1.msra.mxu0 0.0
    %2283 = vmatprep.subr.mxu0 0.0
    %2284 = vmatpush1.msra.mxu0 0.0
    %2285 = vmatprep.subr.mxu0 0.0
    %2286 = vmatpush1.msra.mxu0 0.0
    %2287 = vmatprep.subr.mxu0 0.0
    %2288 = vmatpush1.msra.mxu0 0.0
    %2289 = vmatprep.subr.mxu0 0.0
    %v2290 = vand.u32 %v39, 4294901760
    %2291 = vmatpush1.msra.mxu0 %v2290
    %2292 = vmatprep.subr.mxu0 0.0
    %v2293 = vand.u32 %v38, 4294901760
    %2294 = vmatpush1.msra.mxu0 %v2293
    %2295 = vmatprep.subr.mxu0 0.0
    %v2296 = vand.u32 %v37, 4294901760
    %2297 = vmatpush1.msra.mxu0 %v2296
    %2298 = vmatprep.subr.mxu0 0.0
    %v2299 = vand.u32 %v36, 4294901760
    %2300 = vmatpush1.msra.mxu0 %v2299
    %2301 = vmatprep.subr.mxu0 0.0
    %v2302 = vand.u32 %v35, 4294901760
    %2303 = vmatpush1.msra.mxu0 %v2302
    %2304 = vmatprep.subr.mxu0 0.0
    %v2305 = vand.u32 %v34, 4294901760
    %2306 = vmatpush1.msra.mxu0 %v2305
    %2307 = vmatprep.subr.mxu0 0.0
    %v2308 = vand.u32 %v33, 4294901760
    %2309 = vmatpush1.msra.mxu0 %v2308
    %2310 = vmatprep.subr.mxu0 0.0
    %v2311 = vand.u32 %v32, 4294901760
    %2312 = vmatpush1.msra.mxu0 %v2311
    %2313 = vmatprep.subr.mxu0 0.0
    %2314 = vmatpush2.msra.mxu0 0.0
    %2315 = vmatprep.subr.mxu0 0.0
    %2316 = vmatpush2.msra.mxu0 0.0
    %2317 = vmatprep.subr.mxu0 0.0
    %2318 = vmatpush2.msra.mxu0 0.0
    %2319 = vmatprep.subr.mxu0 0.0
    %2320 = vmatpush2.msra.mxu0 0.0
    %2321 = vmatprep.subr.mxu0 0.0
    %2322 = vmatpush2.msra.mxu0 0.0
    %2323 = vmatprep.subr.mxu0 0.0
    %2324 = vmatpush2.msra.mxu0 0.0
    %2325 = vmatprep.subr.mxu0 0.0
    %2326 = vmatpush2.msra.mxu0 0.0
    %2327 = vmatprep.subr.mxu0 0.0
    %2328 = vmatpush2.msra.mxu0 0.0
    %2329 = vmatprep.subr.mxu0 0.0
    %2330 = vmatpush2.msra.mxu0 0.0
    %2331 = vmatprep.subr.mxu0 0.0
    %2332 = vmatpush2.msra.mxu0 0.0
    %2333 = vmatprep.subr.mxu0 0.0
    %2334 = vmatpush2.msra.mxu0 0.0
    %2335 = vmatprep.subr.mxu0 0.0
    %2336 = vmatpush2.msra.mxu0 0.0
    %2337 = vmatprep.subr.mxu0 0.0
    %2338 = vmatpush2.msra.mxu0 0.0
    %2339 = vmatprep.subr.mxu0 0.0
    %2340 = vmatpush2.msra.mxu0 0.0
    %2341 = vmatprep.subr.mxu0 0.0
    %2342 = vmatpush2.msra.mxu0 0.0
    %2343 = vmatprep.subr.mxu0 0.0
    %2344 = vmatpush2.msra.mxu0 0.0
    %2345 = vmatprep.mubr.f32.mxu0 0.0
    %v2346 = vand.u32 %v1963, 4294901760
    %v2347 = vsub.f32 %v1963, %v2346
    %v2348 = vand.u32 %v2347, 4294901760
    %2349 = vmatmul.mubr.f32.gmra.mxu0 %v2348
    %v2350 = vpop.f32.mrf.mxu0
    %v2351 = vadd.f32 %v2263, %v2350
    %v2352 = vpop.f32.mrf.mxu0
    %2353 = vmatprep.mubr.f32.mxu0 0.0
    %v2354 = vand.u32 %v1966, 4294901760
    %v2355 = vsub.f32 %v1966, %v2354
    %v2356 = vand.u32 %v2355, 4294901760
    %2357 = vmatmul.mubr.f32.gmra.mxu0 %v2356
    %v2358 = vpop.f32.mrf.mxu0
    %v2359 = vadd.f32 %v2270, %v2358
    %v2360 = vpop.f32.mrf.mxu0
    %2361 = vdwg.mxu0
    %2362 = vmatprep.subr.mxu0 0.0
    %2363 = vmatpush1.msra.mxu0 0.0
    %2364 = vmatprep.subr.mxu0 0.0
    %2365 = vmatpush1.msra.mxu0 0.0
    %2366 = vmatprep.subr.mxu0 0.0
    %2367 = vmatpush1.msra.mxu0 0.0
    %2368 = vmatprep.subr.mxu0 0.0
    %2369 = vmatpush1.msra.mxu0 0.0
    %2370 = vmatprep.subr.mxu0 0.0
    %2371 = vmatpush1.msra.mxu0 0.0
    %2372 = vmatprep.subr.mxu0 0.0
    %2373 = vmatpush1.msra.mxu0 0.0
    %2374 = vmatprep.subr.mxu0 0.0
    %2375 = vmatpush1.msra.mxu0 0.0
    %2376 = vmatprep.subr.mxu0 0.0
    %2377 = vmatpush1.msra.mxu0 0.0
    %2378 = vmatprep.subr.mxu0 0.0
    %v2379 = vand.u32 %v39, 4294901760
    %v2380 = vsub.f32 %v39, %v2379
    %v2381 = vand.u32 %v2380, 4294901760
    %2382 = vmatpush1.msra.mxu0 %v2381
    %2383 = vmatprep.subr.mxu0 0.0
    %v2384 = vand.u32 %v38, 4294901760
    %v2385 = vsub.f32 %v38, %v2384
    %v2386 = vand.u32 %v2385, 4294901760
    %2387 = vmatpush1.msra.mxu0 %v2386
    %2388 = vmatprep.subr.mxu0 0.0
    %v2389 = vand.u32 %v37, 4294901760
    %v2390 = vsub.f32 %v37, %v2389
    %v2391 = vand.u32 %v2390, 4294901760
    %2392 = vmatpush1.msra.mxu0 %v2391
    %2393 = vmatprep.subr.mxu0 0.0
    %v2394 = vand.u32 %v36, 4294901760
    %v2395 = vsub.f32 %v36, %v2394
    %v2396 = vand.u32 %v2395, 4294901760
    %2397 = vmatpush1.msra.mxu0 %v2396
    %2398 = vmatprep.subr.mxu0 0.0
    %v2399 = vand.u32 %v35, 4294901760
    %v2400 = vsub.f32 %v35, %v2399
    %v2401 = vand.u32 %v2400, 4294901760
    %2402 = vmatpush1.msra.mxu0 %v2401
    %2403 = vmatprep.subr.mxu0 0.0
    %v2404 = vand.u32 %v34, 4294901760
    %v2405 = vsub.f32 %v34, %v2404
    %v2406 = vand.u32 %v2405, 4294901760
    %2407 = vmatpush1.msra.mxu0 %v2406
    %2408 = vmatprep.subr.mxu0 0.0
    %v2409 = vand.u32 %v33, 4294901760
    %v2410 = vsub.f32 %v33, %v2409
    %v2411 = vand.u32 %v2410, 4294901760
    %2412 = vmatpush1.msra.mxu0 %v2411
    %2413 = vmatprep.subr.mxu0 0.0
    %v2414 = vand.u32 %v32, 4294901760
    %v2415 = vsub.f32 %v32, %v2414
    %v2416 = vand.u32 %v2415, 4294901760
    %2417 = vmatpush1.msra.mxu0 %v2416
    %2418 = vmatprep.subr.mxu0 0.0
    %2419 = vmatpush2.msra.mxu0 0.0
    %2420 = vmatprep.subr.mxu0 0.0
    %2421 = vmatpush2.msra.mxu0 0.0
    %2422 = vmatprep.subr.mxu0 0.0
    %2423 = vmatpush2.msra.mxu0 0.0
    %2424 = vmatprep.subr.mxu0 0.0
    %2425 = vmatpush2.msra.mxu0 0.0
    %2426 = vmatprep.subr.mxu0 0.0
    %2427 = vmatpush2.msra.mxu0 0.0
    %2428 = vmatprep.subr.mxu0 0.0
    %2429 = vmatpush2.msra.mxu0 0.0
    %2430 = vmatprep.subr.mxu0 0.0
    %2431 = vmatpush2.msra.mxu0 0.0
    %2432 = vmatprep.subr.mxu0 0.0
    %2433 = vmatpush2.msra.mxu0 0.0
    %2434 = vmatprep.subr.mxu0 0.0
    %2435 = vmatpush2.msra.mxu0 0.0
    %2436 = vmatprep.subr.mxu0 0.0
    %2437 = vmatpush2.msra.mxu0 0.0
    %2438 = vmatprep.subr.mxu0 0.0
    %2439 = vmatpush2.msra.mxu0 0.0
    %2440 = vmatprep.subr.mxu0 0.0
    %2441 = vmatpush2.msra.mxu0 0.0
    %2442 = vmatprep.subr.mxu0 0.0
    %2443 = vmatpush2.msra.mxu0 0.0
    %2444 = vmatprep.subr.mxu0 0.0
    %2445 = vmatpush2.msra.mxu0 0.0
    %2446 = vmatprep.subr.mxu0 0.0
    %2447 = vmatpush2.msra.mxu0 0.0
    %2448 = vmatprep.subr.mxu0 0.0
    %2449 = vmatpush2.msra.mxu0 0.0
    %2450 = vmatprep.mubr.f32.mxu0 0.0
    %v2451 = vand.u32 %v1963, 4294901760
    %2452 = vmatmul.mubr.f32.gmra.mxu0 %v2451
    %v2453 = vpop.f32.mrf.mxu0
    %v2454 = vadd.f32 %v2351, %v2453
    %v2455 = vpop.f32.mrf.mxu0
    %2456 = vmatprep.mubr.f32.mxu0 0.0
    %v2457 = vand.u32 %v1966, 4294901760
    %2458 = vmatmul.mubr.f32.gmra.mxu0 %v2457
    %v2459 = vpop.f32.mrf.mxu0
    %v2460 = vadd.f32 %v2359, %v2459
    %v2461 = vpop.f32.mrf.mxu0
    %2462 = vdwg.mxu0
    %2463 = vmatprep.subr.mxu0 0.0
    %2464 = vmatpush1.msra.mxu0 0.0
    %2465 = vmatprep.subr.mxu0 0.0
    %2466 = vmatpush1.msra.mxu0 0.0
    %2467 = vmatprep.subr.mxu0 0.0
    %2468 = vmatpush1.msra.mxu0 0.0
    %2469 = vmatprep.subr.mxu0 0.0
    %2470 = vmatpush1.msra.mxu0 0.0
    %2471 = vmatprep.subr.mxu0 0.0
    %2472 = vmatpush1.msra.mxu0 0.0
    %2473 = vmatprep.subr.mxu0 0.0
    %2474 = vmatpush1.msra.mxu0 0.0
    %2475 = vmatprep.subr.mxu0 0.0
    %2476 = vmatpush1.msra.mxu0 0.0
    %2477 = vmatprep.subr.mxu0 0.0
    %2478 = vmatpush1.msra.mxu0 0.0
    %2479 = vmatprep.subr.mxu0 0.0
    %v2480 = vand.u32 %v39, 4294901760
    %2481 = vmatpush1.msra.mxu0 %v2480
    %2482 = vmatprep.subr.mxu0 0.0
    %v2483 = vand.u32 %v38, 4294901760
    %2484 = vmatpush1.msra.mxu0 %v2483
    %2485 = vmatprep.subr.mxu0 0.0
    %v2486 = vand.u32 %v37, 4294901760
    %2487 = vmatpush1.msra.mxu0 %v2486
    %2488 = vmatprep.subr.mxu0 0.0
    %v2489 = vand.u32 %v36, 4294901760
    %2490 = vmatpush1.msra.mxu0 %v2489
    %2491 = vmatprep.subr.mxu0 0.0
    %v2492 = vand.u32 %v35, 4294901760
    %2493 = vmatpush1.msra.mxu0 %v2492
    %2494 = vmatprep.subr.mxu0 0.0
    %v2495 = vand.u32 %v34, 4294901760
    %2496 = vmatpush1.msra.mxu0 %v2495
    %2497 = vmatprep.subr.mxu0 0.0
    %v2498 = vand.u32 %v33, 4294901760
    %2499 = vmatpush1.msra.mxu0 %v2498
    %2500 = vmatprep.subr.mxu0 0.0
    %v2501 = vand.u32 %v32, 4294901760
    %2502 = vmatpush1.msra.mxu0 %v2501
    %2503 = vmatprep.subr.mxu0 0.0
    %2504 = vmatpush2.msra.mxu0 0.0
    %2505 = vmatprep.subr.mxu0 0.0
    %2506 = vmatpush2.msra.mxu0 0.0
    %2507 = vmatprep.subr.mxu0 0.0
    %2508 = vmatpush2.msra.mxu0 0.0
    %2509 = vmatprep.subr.mxu0 0.0
    %2510 = vmatpush2.msra.mxu0 0.0
    %2511 = vmatprep.subr.mxu0 0.0
    %2512 = vmatpush2.msra.mxu0 0.0
    %2513 = vmatprep.subr.mxu0 0.0
    %2514 = vmatpush2.msra.mxu0 0.0
    %2515 = vmatprep.subr.mxu0 0.0
    %2516 = vmatpush2.msra.mxu0 0.0
    %2517 = vmatprep.subr.mxu0 0.0
    %2518 = vmatpush2.msra.mxu0 0.0
    %2519 = vmatprep.subr.mxu0 0.0
    %2520 = vmatpush2.msra.mxu0 0.0
    %2521 = vmatprep.subr.mxu0 0.0
    %2522 = vmatpush2.msra.mxu0 0.0
    %2523 = vmatprep.subr.mxu0 0.0
    %2524 = vmatpush2.msra.mxu0 0.0
    %2525 = vmatprep.subr.mxu0 0.0
    %2526 = vmatpush2.msra.mxu0 0.0
    %2527 = vmatprep.subr.mxu0 0.0
    %2528 = vmatpush2.msra.mxu0 0.0
    %2529 = vmatprep.subr.mxu0 0.0
    %2530 = vmatpush2.msra.mxu0 0.0
    %2531 = vmatprep.subr.mxu0 0.0
    %2532 = vmatpush2.msra.mxu0 0.0
    %2533 = vmatprep.subr.mxu0 0.0
    %2534 = vmatpush2.msra.mxu0 0.0
    %2535 = vmatprep.mubr.f32.mxu0 0.0
    %v2536 = vand.u32 %v1963, 4294901760
    %2537 = vmatmul.mubr.f32.gmra.mxu0 %v2536
    %v2538 = vpop.f32.mrf.mxu0
    %v2539 = vadd.f32 %v2454, %v2538
    %v2540 = vpop.f32.mrf.mxu0
    %2541 = vmatprep.mubr.f32.mxu0 0.0
    %v2542 = vand.u32 %v1966, 4294901760
    %2543 = vmatmul.mubr.f32.gmra.mxu0 %v2542
    %v2544 = vpop.f32.mrf.mxu0
    %v2545 = vadd.f32 %v2460, %v2544
    %v2546 = vpop.f32.mrf.mxu0
    %2547 = vdwg.mxu0
    %v2548 = vrcp.pop %v2539
    %v2549 = vrcp.pop %v2545
    %v2550 = vmul.f32 %v1959, %v2548
    %v2551 = vmul.f32 %v1961, %v2549
    %v2552 = vpack.c.bf16 %v2551, %v2550
    %v2553 = vpack.c.bf16 %v1870, %v1869
    %v2554 = vpack.c.bf16 %v1872, %v1871
    %v2555 = vpack.c.bf16 %v1874, %v1873
    %v2556 = vpack.c.bf16 %v1876, %v1875
    %2561 = vrot.lane.b32.xlu0 %v2553, 64
    %v2562 = vpop.permute.xlu0 %2561
    %2563 = vrot.lane.b32.xlu0 %v2554, 64
    %v2564 = vpop.permute.xlu0 %2563
    %2565 = vrot.lane.b32.xlu0 %v2555, 64
    %v2566 = vpop.permute.xlu0 %2565
    %2567 = vrot.lane.b32.xlu0 %v2556, 64
    %v2568 = vpop.permute.xlu0 %2567
    %v2574 = vsel %vm839, %v2552, 0
    %2576 = vmatprep.subr.bf16.mxu0 0
    %2577 = vmatpush1.bf16.msra.mxu0 0
    %2578 = vmatprep.subr.bf16.mxu0 0
    %2579 = vmatpush1.bf16.msra.mxu0 0
    %2580 = vmatprep.subr.bf16.mxu0 0
    %2581 = vmatpush1.bf16.msra.mxu0 0
    %2582 = vmatprep.subr.bf16.mxu0 0
    %2583 = vmatpush1.bf16.msra.mxu0 0
    %2584 = vmatprep.subr.bf16.mxu0 0
    %2585 = vmatpush1.bf16.msra.mxu0 %v2568
    %2586 = vmatprep.subr.bf16.mxu0 0
    %2587 = vmatpush1.bf16.msra.mxu0 %v2566
    %2588 = vmatprep.subr.bf16.mxu0 0
    %2589 = vmatpush1.bf16.msra.mxu0 %v2564
    %2590 = vmatprep.subr.bf16.mxu0 0
    %2591 = vmatpush1.bf16.msra.mxu0 %v2562
    %2592 = vmatprep.subr.bf16.mxu0 0
    %2593 = vmatpush2.bf16.msra.mxu0 0
    %2594 = vmatprep.subr.bf16.mxu0 0
    %2595 = vmatpush2.bf16.msra.mxu0 0
    %2596 = vmatprep.subr.bf16.mxu0 0
    %2597 = vmatpush2.bf16.msra.mxu0 0
    %2598 = vmatprep.subr.bf16.mxu0 0
    %2599 = vmatpush2.bf16.msra.mxu0 0
    %2600 = vmatprep.subr.bf16.mxu0 0
    %2601 = vmatpush2.bf16.msra.mxu0 0
    %2602 = vmatprep.subr.bf16.mxu0 0
    %2603 = vmatpush2.bf16.msra.mxu0 0
    %2604 = vmatprep.subr.bf16.mxu0 0
    %2605 = vmatpush2.bf16.msra.mxu0 0
    %2606 = vmatprep.subr.bf16.mxu0 0
    %2607 = vmatpush2.bf16.msra.mxu0 0
    %2608 = vmatprep.mubr.bf16.mxu0 0
    %2609 = vmatmul.mubr.bf16.gmra.mxu0 %v2574
    %v2610 = vpop.f32.mrf.mxu0
    %v2611 = vadd.f32 0.0, %v2610
    %v2612 = vpop.f32.mrf.mxu0
    %v2613 = vpop.f32.mrf.mxu0
    %v2614 = vadd.f32 0.0, %v2613
    %v2615 = vpop.f32.mrf.mxu0
    %2616 = vdwg.mxu0
    %v2617 = vpack.c.bf16 %v2614, %v2611
    %v2618 = vpack.c.bf16 %v1773, %v1772
    %v2619 = vpack.c.bf16 %v1775, %v1774
    %v2620 = vlaneseq
    %v2621 = vshrl.u32 %v2620, 7
    %v2622 = vsub.s32 0, %v2621
    %v2623 = vrot.slane %v1793, %v2622
    %v2625 = vsel %vm62, %v2617, 0
    %2627 = vmatprep.subr.bf16.mxu0 0
    %2628 = vmatpush1.bf16.msra.mxu0 0
    %2629 = vmatprep.subr.bf16.mxu0 0
    %2630 = vmatpush1.bf16.msra.mxu0 0
    %2631 = vmatprep.subr.bf16.mxu0 0
    %2632 = vmatpush1.bf16.msra.mxu0 0
    %2633 = vmatprep.subr.bf16.mxu0 0
    %2634 = vmatpush1.bf16.msra.mxu0 0
    %2635 = vmatprep.subr.bf16.mxu0 0
    %2636 = vmatpush1.bf16.msra.mxu0 0
    %2637 = vmatprep.subr.bf16.mxu0 0
    %2638 = vmatpush1.bf16.msra.mxu0 0
    %2639 = vmatprep.subr.bf16.mxu0 0
    %2640 = vmatpush1.bf16.msra.mxu0 %v2619
    %2641 = vmatprep.subr.bf16.mxu0 0
    %2642 = vmatpush1.bf16.msra.mxu0 %v2618
    %2643 = vmatprep.subr.bf16.mxu0 0
    %2644 = vmatpush2.bf16.msra.mxu0 0
    %2645 = vmatprep.subr.bf16.mxu0 0
    %2646 = vmatpush2.bf16.msra.mxu0 0
    %2647 = vmatprep.subr.bf16.mxu0 0
    %2648 = vmatpush2.bf16.msra.mxu0 0
    %2649 = vmatprep.subr.bf16.mxu0 0
    %2650 = vmatpush2.bf16.msra.mxu0 0
    %2651 = vmatprep.subr.bf16.mxu0 0
    %2652 = vmatpush2.bf16.msra.mxu0 0
    %2653 = vmatprep.subr.bf16.mxu0 0
    %2654 = vmatpush2.bf16.msra.mxu0 0
    %2655 = vmatprep.subr.bf16.mxu0 0
    %2656 = vmatpush2.bf16.msra.mxu0 0
    %2657 = vmatprep.subr.bf16.mxu0 0
    %2658 = vmatpush2.bf16.msra.mxu0 0
    %2659 = vmatprep.mubr.bf16.mxu0 0
    %2660 = vmatmul.mubr.bf16.gmra.mxu0 %v2625
    %v2661 = vpop.f32.mrf.mxu0
    %v2662 = vadd.f32 %v2623, %v2661
    %v2663 = vpop.f32.mrf.mxu0
    %v2664 = vpop.f32.mrf.mxu0
    %v2665 = vadd.f32 %v2623, %v2664
    %v2666 = vpop.f32.mrf.mxu0
    %2667 = vdwg.mxu0
    %v2668 = vadd.f32 %v1762, %v2662
    %v2669 = vadd.f32 %v1763, %v2665
    %v2670 = vsel %vm62, %v2668, 0.0
    %2671 = vadd.xlane.f32.xlu0 %v2670
    %v2672 = vpop.xlane.xlu0 %2671
    %v2673 = vsel %vm62, %v2669, 0.0
    %2674 = vadd.xlane.f32.xlu0 %v2673
    %v2675 = vpop.xlane.xlu0 %2674
    %v2676 = vmul.f32 %v2672, %v1566
    %v2677 = vmul.f32 %v2675, %v1566
    %v2678 = vmul.f32 %v2668, %v2668
    %v2679 = vmul.f32 %v2669, %v2669
    %v2680 = vsel %vm62, %v2678, 0.0
    %2681 = vadd.xlane.f32.xlu0 %v2680
    %v2682 = vpop.xlane.xlu0 %2681
    %v2683 = vsel %vm62, %v2679, 0.0
    %2684 = vadd.xlane.f32.xlu0 %v2683
    %v2685 = vpop.xlane.xlu0 %2684
    %v2686 = vmul.f32 %v2682, %v1566
    %v2687 = vmul.f32 %v2685, %v1566
    %v2688 = vmul.f32 %v2676, %v2676
    %v2689 = vmul.f32 %v2677, %v2677
    %v2690 = vsub.f32 %v2686, %v2688
    %v2691 = vsub.f32 %v2687, %v2689
    %v2692 = vsub.f32 %v2668, %v2676
    %v2693 = vsub.f32 %v2669, %v2677
    %v2694 = vadd.f32 %v2690, 1e-05
    %v2695 = vadd.f32 %v2691, 1e-05
    %v2696 = vrsqrt.pop %v2694
    %v2697 = vrsqrt.pop %v2695
    %v2698 = vmul.f32 %v2692, %v2696
    %v2699 = vmul.f32 %v2693, %v2697
    %v2700 = vlaneseq
    %v2701 = vshrl.u32 %v2700, 7
    %v2702 = vsub.s32 0, %v2701
    %v2703 = vrot.slane %v1794, %v2702
    %v2704 = vmul.f32 %v2698, %v2703
    %v2705 = vmul.f32 %v2699, %v2703
    %v2706 = vlaneseq
    %v2707 = vshrl.u32 %v2706, 7
    %v2708 = vsub.s32 0, %v2707
    %v2709 = vrot.slane %v1795, %v2708
    %v2710 = vadd.f32 %v2704, %v2709
    %v2711 = vadd.f32 %v2705, %v2709
    %v2712 = vpack.c.bf16 %v2711, %v2710
    %v2713 = vlaneseq
    %v2714 = vshrl.u32 %v2713, 7
    %v2715 = vsub.s32 0, %v2714
    %v2716 = vrot.slane %v1796, %v2715
    %v2721 = vunpack.c.l.b16 %v1768
    %v2722 = vunpack.c.l.b16 %v1769
    %v2723 = vunpack.c.l.b16 %v1770
    %v2724 = vunpack.c.l.b16 %v1771
    %v2725 = vpack.c.b16 %v2722, %v2721
    %v2726 = vpack.c.b16 %v2724, %v2723
    %v2730 = vsel %vm62, %v2712, 0
    %2732 = vmatprep.subr.bf16.mxu0 0
    %2733 = vmatpush1.bf16.msra.mxu0 0
    %2734 = vmatprep.subr.bf16.mxu0 0
    %2735 = vmatpush1.bf16.msra.mxu0 0
    %2736 = vmatprep.subr.bf16.mxu0 0
    %2737 = vmatpush1.bf16.msra.mxu0 0
    %2738 = vmatprep.subr.bf16.mxu0 0
    %2739 = vmatpush1.bf16.msra.mxu0 0
    %2740 = vmatprep.subr.bf16.mxu0 0
    %2741 = vmatpush1.bf16.msra.mxu0 0
    %2742 = vmatprep.subr.bf16.mxu0 0
    %2743 = vmatpush1.bf16.msra.mxu0 0
    %2744 = vmatprep.subr.bf16.mxu0 0
    %2745 = vmatpush1.bf16.msra.mxu0 %v2726
    %2746 = vmatprep.subr.bf16.mxu0 0
    %2747 = vmatpush1.bf16.msra.mxu0 %v2725
    %2748 = vmatprep.subr.bf16.mxu0 0
    %2749 = vmatpush2.bf16.msra.mxu0 0
    %2750 = vmatprep.subr.bf16.mxu0 0
    %2751 = vmatpush2.bf16.msra.mxu0 0
    %2752 = vmatprep.subr.bf16.mxu0 0
    %2753 = vmatpush2.bf16.msra.mxu0 0
    %2754 = vmatprep.subr.bf16.mxu0 0
    %2755 = vmatpush2.bf16.msra.mxu0 0
    %2756 = vmatprep.subr.bf16.mxu0 0
    %2757 = vmatpush2.bf16.msra.mxu0 0
    %2758 = vmatprep.subr.bf16.mxu0 0
    %2759 = vmatpush2.bf16.msra.mxu0 0
    %2760 = vmatprep.subr.bf16.mxu0 0
    %2761 = vmatpush2.bf16.msra.mxu0 0
    %2762 = vmatprep.subr.bf16.mxu0 0
    %2763 = vmatpush2.bf16.msra.mxu0 0
    %2764 = vmatprep.mubr.bf16.mxu0 0
    %2765 = vmatmul.mubr.bf16.gmra.mxu0 %v2730
    %v2766 = vpop.f32.mrf.mxu0
    %v2767 = vadd.f32 %v2716, %v2766
    %v2768 = vpop.f32.mrf.mxu0
    %v2769 = vpop.f32.mrf.mxu0
    %v2770 = vadd.f32 %v2716, %v2769
    %v2771 = vpop.f32.mrf.mxu0
    %2772 = vdwg.mxu0
    %v2773 = vmax.f32 %v2767, 0.0
    %v2774 = vmax.f32 %v2770, 0.0
    %v2775 = vpack.c.bf16 %v2774, %v2773
    %v2776 = vpack.c.bf16 %v1777, %v1776
    %v2777 = vpack.c.bf16 %v1779, %v1778
    %v2778 = vpack.c.bf16 %v1781, %v1780
    %v2779 = vpack.c.bf16 %v1783, %v1782
    %v2780 = vpack.c.bf16 %v1785, %v1784
    %v2781 = vpack.c.bf16 %v1787, %v1786
    %v2782 = vpack.c.bf16 %v1789, %v1788
    %v2783 = vpack.c.bf16 %v1791, %v1790
    %v2784 = vlaneseq
    %v2785 = vshrl.u32 %v2784, 7
    %v2786 = vsub.s32 0, %v2785
    %v2787 = vrot.slane %v1797, %v2786
    %2788 = vmatprep.subr.bf16.mxu0 0
    %2789 = vmatpush1.bf16.msra.mxu0 %v2783
    %2790 = vmatprep.subr.bf16.mxu0 0
    %2791 = vmatpush1.bf16.msra.mxu0 %v2782
    %2792 = vmatprep.subr.bf16.mxu0 0
    %2793 = vmatpush1.bf16.msra.mxu0 %v2781
    %2794 = vmatprep.subr.bf16.mxu0 0
    %2795 = vmatpush1.bf16.msra.mxu0 %v2780
    %2796 = vmatprep.subr.bf16.mxu0 0
    %2797 = vmatpush1.bf16.msra.mxu0 %v2779
    %2798 = vmatprep.subr.bf16.mxu0 0
    %2799 = vmatpush1.bf16.msra.mxu0 %v2778
    %2800 = vmatprep.subr.bf16.mxu0 0
    %2801 = vmatpush1.bf16.msra.mxu0 %v2777
    %2802 = vmatprep.subr.bf16.mxu0 0
    %2803 = vmatpush1.bf16.msra.mxu0 %v2776
    %2804 = vmatprep.subr.bf16.mxu0 0
    %2805 = vmatpush2.bf16.msra.mxu0 0
    %2806 = vmatprep.subr.bf16.mxu0 0
    %2807 = vmatpush2.bf16.msra.mxu0 0
    %2808 = vmatprep.subr.bf16.mxu0 0
    %2809 = vmatpush2.bf16.msra.mxu0 0
    %2810 = vmatprep.subr.bf16.mxu0 0
    %2811 = vmatpush2.bf16.msra.mxu0 0
    %2812 = vmatprep.subr.bf16.mxu0 0
    %2813 = vmatpush2.bf16.msra.mxu0 0
    %2814 = vmatprep.subr.bf16.mxu0 0
    %2815 = vmatpush2.bf16.msra.mxu0 0
    %2816 = vmatprep.subr.bf16.mxu0 0
    %2817 = vmatpush2.bf16.msra.mxu0 0
    %2818 = vmatprep.subr.bf16.mxu0 0
    %2819 = vmatpush2.bf16.msra.mxu0 0
    %2820 = vmatprep.mubr.bf16.mxu0 0
    %2821 = vmatmul.mubr.bf16.gmra.mxu0 %v2775
    %v2822 = vpop.f32.mrf.mxu0
    %v2823 = vadd.f32 %v2787, %v2822
    %v2824 = vpop.f32.mrf.mxu0
    %v2825 = vpop.f32.mrf.mxu0
    %v2826 = vadd.f32 %v2787, %v2825
    %v2827 = vpop.f32.mrf.mxu0
    %2828 = vdwg.mxu0
    %v2829 = vadd.f32 %v2710, %v2823
    %v2830 = vadd.f32 %v2711, %v2826
    %v2831 = vsel %vm62, %v2829, 0.0
    %2832 = vadd.xlane.f32.xlu0 %v2831
    %v2833 = vpop.xlane.xlu0 %2832
    %v2834 = vsel %vm62, %v2830, 0.0
    %2835 = vadd.xlane.f32.xlu0 %v2834
    %v2836 = vpop.xlane.xlu0 %2835
    %v2837 = vmul.f32 %v2833, %v1566
    %v2838 = vmul.f32 %v2836, %v1566
    %v2839 = vmul.f32 %v2829, %v2829
    %v2840 = vmul.f32 %v2830, %v2830
    %v2841 = vsel %vm62, %v2839, 0.0
    %2842 = vadd.xlane.f32.xlu0 %v2841
    %v2843 = vpop.xlane.xlu0 %2842
    %v2844 = vsel %vm62, %v2840, 0.0
    %2845 = vadd.xlane.f32.xlu0 %v2844
    %v2846 = vpop.xlane.xlu0 %2845
    %v2847 = vmul.f32 %v2843, %v1566
    %v2848 = vmul.f32 %v2846, %v1566
    %v2849 = vmul.f32 %v2837, %v2837
    %v2850 = vmul.f32 %v2838, %v2838
    %v2851 = vsub.f32 %v2847, %v2849
    %v2852 = vsub.f32 %v2848, %v2850
    %v2853 = vsub.f32 %v2829, %v2837
    %v2854 = vsub.f32 %v2830, %v2838
    %v2855 = vadd.f32 %v2851, 1e-05
    %v2856 = vadd.f32 %v2852, 1e-05
    %v2857 = vrsqrt.pop %v2855
    %v2858 = vrsqrt.pop %v2856
    %v2859 = vmul.f32 %v2853, %v2857
    %v2860 = vmul.f32 %v2854, %v2858
    %v2861 = vlaneseq
    %v2862 = vshrl.u32 %v2861, 7
    %v2863 = vsub.s32 0, %v2862
    %v2864 = vrot.slane %v1798, %v2863
    %v2865 = vmul.f32 %v2859, %v2864
    %v2866 = vmul.f32 %v2860, %v2864
    %v2867 = vlaneseq
    %v2868 = vshrl.u32 %v2867, 7
    %v2869 = vsub.s32 0, %v2868
    %v2870 = vrot.slane %v1799, %v2869
    %v2871 = vadd.f32 %v2865, %v2870
    %v2872 = vadd.f32 %v2866, %v2870
    %v2873 = vld [vmem:[%s2 + $0x40] sm:$0xf]
    %v2874 = vld [vmem:[%s2 + $0x44] sm:$0xf]
    %v2875 = vld [vmem:[%s2 + $0x48] sm:$0xf]
    %v2876 = vld [vmem:[%s2 + $0x4c] sm:$0xf]
    %v2877 = vld [vmem:[%s2 + $0x50] sm:$0xf]
    %v2878 = vld [vmem:[%s2 + $0x54] sm:$0xf]
    %v2879 = vld [vmem:[%s2 + $0x58] sm:$0xf]
    %v2880 = vld [vmem:[%s2 + $0x5c] sm:$0xf]
    %v2881 = vld [vmem:[%s2 + $0x60] sm:$0xf]
    %v2882 = vld [vmem:[%s2 + $0x64] sm:$0xf]
    %v2883 = vld [vmem:[%s2 + $0x68] sm:$0xf]
    %v2884 = vld [vmem:[%s2 + $0x6c] sm:$0xf]
    %v2885 = vld [vmem:[%s2 + $0x70] sm:$0xf]
    %v2886 = vld [vmem:[%s2 + $0x74] sm:$0xf]
    %v2887 = vld [vmem:[%s2 + $0x78] sm:$0xf]
    %v2888 = vld [vmem:[%s2 + $0x7c] sm:$0xf]
    %v2889 = vld [vmem:[%s2 + $0x80] sm:$0xf]
    %v2890 = vld [vmem:[%s2 + $0x84] sm:$0xf]
    %v2891 = vld [vmem:[%s2 + $0x88] sm:$0xf]
    %v2892 = vld [vmem:[%s2 + $0x8c] sm:$0xf]
    %v2893 = vld [vmem:[%s3 + $0x10] sm:$0x1]
    %v2894 = vld [vmem:[%s3 + $0x11] sm:$0x1]
    %v2895 = vpack.c.bf16 %v2872, %v2871
    %v2896 = vlaneseq
    %v2897 = vshrl.u32 %v2896, 7
    %v2898 = vsub.s32 0, %v2897
    %v2899 = vrot.slane %v2893, %v2898
    %v2904 = vunpack.c.l.b16 %v2873
    %v2905 = vunpack.c.l.b16 %v2874
    %v2906 = vunpack.c.l.b16 %v2875
    %v2907 = vunpack.c.l.b16 %v2876
    %v2908 = vpack.c.b16 %v2905, %v2904
    %v2909 = vpack.c.b16 %v2907, %v2906
    %v2913 = vsel %vm62, %v2895, 0
    %2915 = vmatprep.subr.bf16.mxu0 0
    %2916 = vmatpush1.bf16.msra.mxu0 0
    %2917 = vmatprep.subr.bf16.mxu0 0
    %2918 = vmatpush1.bf16.msra.mxu0 0
    %2919 = vmatprep.subr.bf16.mxu0 0
    %2920 = vmatpush1.bf16.msra.mxu0 0
    %2921 = vmatprep.subr.bf16.mxu0 0
    %2922 = vmatpush1.bf16.msra.mxu0 0
    %2923 = vmatprep.subr.bf16.mxu0 0
    %2924 = vmatpush1.bf16.msra.mxu0 0
    %2925 = vmatprep.subr.bf16.mxu0 0
    %2926 = vmatpush1.bf16.msra.mxu0 0
    %2927 = vmatprep.subr.bf16.mxu0 0
    %2928 = vmatpush1.bf16.msra.mxu0 %v2909
    %2929 = vmatprep.subr.bf16.mxu0 0
    %2930 = vmatpush1.bf16.msra.mxu0 %v2908
    %2931 = vmatprep.subr.bf16.mxu0 0
    %2932 = vmatpush2.bf16.msra.mxu0 0
    %2933 = vmatprep.subr.bf16.mxu0 0
    %2934 = vmatpush2.bf16.msra.mxu0 0
    %2935 = vmatprep.subr.bf16.mxu0 0
    %2936 = vmatpush2.bf16.msra.mxu0 0
    %2937 = vmatprep.subr.bf16.mxu0 0
    %2938 = vmatpush2.bf16.msra.mxu0 0
    %2939 = vmatprep.subr.bf16.mxu0 0
    %2940 = vmatpush2.bf16.msra.mxu0 0
    %2941 = vmatprep.subr.bf16.mxu0 0
    %2942 = vmatpush2.bf16.msra.mxu0 0
    %2943 = vmatprep.subr.bf16.mxu0 0
    %2944 = vmatpush2.bf16.msra.mxu0 0
    %2945 = vmatprep.subr.bf16.mxu0 0
    %2946 = vmatpush2.bf16.msra.mxu0 0
    %2947 = vmatprep.mubr.bf16.mxu0 0
    %2948 = vmatmul.mubr.bf16.gmra.mxu0 %v2913
    %v2949 = vpop.f32.mrf.mxu0
    %v2950 = vadd.f32 %v2899, %v2949
    %v2951 = vpop.f32.mrf.mxu0
    %v2952 = vpop.f32.mrf.mxu0
    %v2953 = vadd.f32 %v2899, %v2952
    %v2954 = vpop.f32.mrf.mxu0
    %2955 = vdwg.mxu0
    %v2956 = vmax.f32 %v2950, 0.0
    %v2957 = vmax.f32 %v2953, 0.0
    %v2958 = vpack.c.bf16 %v2957, %v2956
    %v2959 = vlaneseq
    %v2960 = vshrl.u32 %v2959, 7
    %v2961 = vsub.s32 0, %v2960
    %v2962 = vrot.slane %v2894, %v2961
    %v2979 = vunpack.c.l.b16 %v2877
    %v2980 = vunpack.c.l.b16 %v2878
    %v2981 = vunpack.c.l.b16 %v2879
    %v2982 = vunpack.c.l.b16 %v2880
    %v2983 = vunpack.c.l.b16 %v2881
    %v2984 = vunpack.c.l.b16 %v2882
    %v2985 = vunpack.c.l.b16 %v2883
    %v2986 = vunpack.c.l.b16 %v2884
    %v2987 = vunpack.c.l.b16 %v2885
    %v2988 = vunpack.c.l.b16 %v2886
    %v2989 = vunpack.c.l.b16 %v2887
    %v2990 = vunpack.c.l.b16 %v2888
    %v2991 = vunpack.c.l.b16 %v2889
    %v2992 = vunpack.c.l.b16 %v2890
    %v2993 = vunpack.c.l.b16 %v2891
    %v2994 = vunpack.c.l.b16 %v2892
    %v2995 = vpack.c.b16 %v2980, %v2979
    %v2996 = vpack.c.b16 %v2982, %v2981
    %v2997 = vpack.c.b16 %v2984, %v2983
    %v2998 = vpack.c.b16 %v2986, %v2985
    %v2999 = vpack.c.b16 %v2988, %v2987
    %v3000 = vpack.c.b16 %v2990, %v2989
    %v3001 = vpack.c.b16 %v2992, %v2991
    %v3002 = vpack.c.b16 %v2994, %v2993
    %3011 = vmatprep.subr.bf16.mxu0 0
    %3012 = vmatpush1.bf16.msra.mxu0 %v3002
    %3013 = vmatprep.subr.bf16.mxu0 0
    %3014 = vmatpush1.bf16.msra.mxu0 %v3001
    %3015 = vmatprep.subr.bf16.mxu0 0
    %3016 = vmatpush1.bf16.msra.mxu0 %v3000
    %3017 = vmatprep.subr.bf16.mxu0 0
    %3018 = vmatpush1.bf16.msra.mxu0 %v2999
    %3019 = vmatprep.subr.bf16.mxu0 0
    %3020 = vmatpush1.bf16.msra.mxu0 %v2998
    %3021 = vmatprep.subr.bf16.mxu0 0
    %3022 = vmatpush1.bf16.msra.mxu0 %v2997
    %3023 = vmatprep.subr.bf16.mxu0 0
    %3024 = vmatpush1.bf16.msra.mxu0 %v2996
    %3025 = vmatprep.subr.bf16.mxu0 0
    %3026 = vmatpush1.bf16.msra.mxu0 %v2995
    %3027 = vmatprep.subr.bf16.mxu0 0
    %3028 = vmatpush2.bf16.msra.mxu0 0
    %3029 = vmatprep.subr.bf16.mxu0 0
    %3030 = vmatpush2.bf16.msra.mxu0 0
    %3031 = vmatprep.subr.bf16.mxu0 0
    %3032 = vmatpush2.bf16.msra.mxu0 0
    %3033 = vmatprep.subr.bf16.mxu0 0
    %3034 = vmatpush2.bf16.msra.mxu0 0
    %3035 = vmatprep.subr.bf16.mxu0 0
    %3036 = vmatpush2.bf16.msra.mxu0 0
    %3037 = vmatprep.subr.bf16.mxu0 0
    %3038 = vmatpush2.bf16.msra.mxu0 0
    %3039 = vmatprep.subr.bf16.mxu0 0
    %3040 = vmatpush2.bf16.msra.mxu0 0
    %3041 = vmatprep.subr.bf16.mxu0 0
    %3042 = vmatpush2.bf16.msra.mxu0 0
    %3043 = vmatprep.mubr.bf16.mxu0 0
    %3044 = vmatmul.mubr.bf16.gmra.mxu0 %v2958
    %v3045 = vpop.f32.mrf.mxu0
    %v3046 = vadd.f32 %v2962, %v3045
    %v3047 = vpop.f32.mrf.mxu0
    %v3048 = vpop.f32.mrf.mxu0
    %v3049 = vadd.f32 %v2962, %v3048
    %v3050 = vpop.f32.mrf.mxu0
    %3051 = vdwg.mxu0
    %3052 = vst [vmem:[#allocation2] sm:$0xff] %v3046
    %3053 = vst [vmem:[#allocation2 + $0x8] sm:$0xff] %v3049
    // Predicated region
    $region22: #{gpt_forward.1} parent=1 // pred_check
      _
    $region23: #{gpt_forward.1} parent=1 // pred_check_branch
      %3055 = sbr.rel (0) target = $region25
    $region24: #{gpt_forward.1} parent=1 // pred_region
      %s3057 = ssub.s32 256, 256
      %3058 = vsyncadd [#allocation3], %s3057
      %s3059 = sshll.u32 [#allocation2], 4
      %s3060 = int_to_ptr.vmem [resolvable:$true] %s3059
      %3065 = dma.vmem_to_hbm [thread:$0]  %s3060, 256, %s5, [#allocation3], 128, 128, 8
    $region25: #{gpt_forward.1} parent=1 // pred_fallthru
      _
    // Predicated region
    $region26: #{gpt_forward.1} parent=1 // pred_check
      _
    $region27: #{gpt_forward.1} parent=1 // pred_check_branch
      %3067 = sbr.rel (0) target = $region29
    $region28: #{gpt_forward.1} parent=1 // pred_region
      %3068 = dma.done [#allocation3], 256
    $region29: #{gpt_forward.1} parent=1 // pred_fallthru
      _
    %3069 = vsyncpa [#allocation3], 1

</llo_original>
